<compile_context>
chip_gen: v5e
topology: v5e:2x2
jax: 0.10.0
libtpu: 0.0.40
codegen_flags: <defaults>
</compile_context>

<pallas_src>
import functools
import math

import jax
import jax.numpy as jnp
import numpy as np
from jax.experimental import pallas as pl
from jax.experimental.pallas import tpu as pltpu

BN_EPS = 1e-5
VMEM = pl.BlockSpec(memory_space=pltpu.MemorySpace.VMEM)


# ---------------------------------------------------------------------------
# Host-side conv-weight repacking.
# Conv1d(K, stride S, padding P) becomes a stride-1 conv with Kp taps over an
# input whose rows are groups of S original time-steps (width S*Cin):
#     y[j] = sum_t  xpad[j + t] @ wp[t]
# where xpad is the grouped input zero-padded with `lpad` rows on the left
# (and Kp-1-lpad implicit zero rows on the right).
# ---------------------------------------------------------------------------
def pack_conv_weight(w_oik, stride, padding):
    cout, cin, k = w_oik.shape
    qmin = (0 - padding) // stride
    qmax = (k - 1 - padding) // stride
    kp = qmax - qmin + 1
    wp = np.zeros((kp, stride * cin, cout), np.float32)
    w_np = np.asarray(w_oik, np.float32)
    for kk in range(k):
        i = kk - padding
        q = i // stride                       # floor division (handles negatives)
        r = i - q * stride
        wp[q - qmin, r * cin:(r + 1) * cin, :] = w_np[:, :, kk].T
    return jnp.asarray(wp, jnp.bfloat16), -qmin


# ---------------------------------------------------------------------------
# In-kernel helpers (operate on lists of per-sample 2-D f32 tiles).
# ---------------------------------------------------------------------------
def _batchnorm(raws, g_ref, b_ref, relu, rows):
    """Training-mode BatchNorm1d over per-sample (rows, C) f32 tiles (one-pass)."""
    c = raws[0].shape[-1]
    s1 = jnp.zeros((1, c), jnp.float32)
    s2 = jnp.zeros((1, c), jnp.float32)
    for r in raws:
        s1 = s1 + jnp.sum(r, axis=0, keepdims=True)
        s2 = s2 + jnp.sum(r * r, axis=0, keepdims=True)
    cnt = float(len(raws) * rows)
    mean = s1 / cnt
    var = jnp.maximum(s2 / cnt - mean * mean, 0.0)
    scale = jax.lax.rsqrt(var + BN_EPS) * g_ref[...]
    shift = b_ref[...] - mean * scale
    outs = []
    for r in raws:
        o = r * scale + shift
        if relu:
            o = jnp.maximum(o, 0.0)
        outs.append(o)
    return outs


def _conv_bn(xs, xp_ref, w_ref, kp, lpad, g_ref, b_ref, relu, n, lout):
    """Multi-tap stride-1 conv (bf16 MXU, f32 accumulation) + BatchNorm [+ ReLU]."""
    xp_ref[...] = jnp.zeros_like(xp_ref)          # zero pad rows
    for b in range(n):
        xp_ref[b, pl.ds(lpad, lout), :] = xs[b]
    raws = []
    for b in range(n):
        acc = jnp.zeros((lout, w_ref.shape[2]), jnp.float32)
        for t in range(kp):
            a = xp_ref[b, pl.ds(t, lout), :].astype(jnp.bfloat16)
            acc = acc + jnp.dot(a, w_ref[t], preferred_element_type=jnp.float32)
        raws.append(acc)
    return _batchnorm(raws, g_ref, b_ref, relu, lout)


def _sigmoid(v):
    return 1.0 / (1.0 + jnp.exp(-v))


# ---------------------------------------------------------------------------
# Kernels.
# ---------------------------------------------------------------------------
def stem_kernel(x_ref, w_ref, g_ref, b_ref, o_ref, xp_ref, *, n, lout, kp, lpad):
    # x_ref: (N, Lout, 2*Cin) stride-grouped input; w_ref: (kp, 2*Cin, 64) bf16.
    xs = [x_ref[b].astype(jnp.float32) for b in range(n)]
    h = _conv_bn(xs, xp_ref, w_ref, kp, lpad, g_ref, b_ref, relu=True, n=n, lout=lout)
    for b in range(n):
        o_ref[b] = h[b].astype(o_ref.dtype)


def fused_block_kernel(*refs, n, lout, kp1, lpad1, has_down, pool_input, final_pool):
    i = 0
    x_ref = refs[i]; i += 1
    w1_ref = refs[i]; i += 1
    g1_ref = refs[i]; i += 1
    b1_ref = refs[i]; i += 1
    w2_ref = refs[i]; i += 1
    g2_ref = refs[i]; i += 1
    b2_ref = refs[i]; i += 1
    sw1_ref = refs[i]; i += 1
    sw2_ref = refs[i]; i += 1
    if has_down:
        dw_ref = refs[i]; i += 1
        dg_ref = refs[i]; i += 1
        db_ref = refs[i]; i += 1
    if final_pool:
        pm_ref = refs[i]; i += 1
    o_ref = refs[i]; i += 1
    xp1_ref = refs[i]; i += 1
    xp2_ref = refs[i]; i += 1
    if pool_input:
        sh_ref = refs[i]; i += 1

    f32 = jnp.float32

    # ---- block input (per-sample 2-D f32 tiles) ---------------------------
    xs = []
    if pool_input:
        # MaxPool1d(k=3, s=2, p=1) prologue on the (even|odd)-paired stem output.
        c = x_ref.shape[-1] // 2
        sh_ref[...] = jnp.zeros_like(sh_ref)
        for b in range(n):
            xb = x_ref[b].astype(f32)             # (lout, 2c)
            he = xb[:, :c]                        # h[2j]
            ho = xb[:, c:]                        # h[2j+1]
            sh_ref[b, pl.ds(1, lout), :] = ho
            ho_prev = sh_ref[b, pl.ds(0, lout), :]    # h[2j-1], zero at j=0 (h >= 0)
            xs.append(jnp.maximum(jnp.maximum(he, ho), ho_prev))
    else:
        for b in range(n):
            xs.append(x_ref[b].astype(f32))

    # ---- conv1 + BN + ReLU, conv2 + BN ------------------------------------
    h1 = _conv_bn(xs, xp1_ref, w1_ref, kp1, lpad1, g1_ref, b1_ref,
                  relu=True, n=n, lout=lout)
    h2 = _conv_bn(h1, xp2_ref, w2_ref, 3, 1, g2_ref, b2_ref,
                  relu=False, n=n, lout=lout)

    # ---- squeeze-excitation gating -----------------------------------------
    gated = []
    for b in range(n):
        s = jnp.mean(h2[b], axis=0, keepdims=True)                     # (1, C)
        z = jnp.dot(s.astype(jnp.bfloat16), sw1_ref[...],
                    preferred_element_type=f32)
        z = jnp.maximum(z, 0.0)                                        # (1, C/r)
        g = _sigmoid(jnp.dot(z.astype(jnp.bfloat16), sw2_ref[...],
                             preferred_element_type=f32))              # (1, C)
        gated.append(h2[b] * g)

    # ---- residual path ------------------------------------------------------
    if has_down:
        raws = []
        for b in range(n):
            raws.append(jnp.dot(x_ref[b].astype(jnp.bfloat16), dw_ref[...],
                                preferred_element_type=f32))
        res = _batchnorm(raws, dg_ref, db_ref, relu=False, rows=lout)
    else:
        res = xs

    # ---- add + ReLU (+ adaptive avg-pool epilogue) and store ---------------
    for b in range(n):
        out = jnp.maximum(gated[b] + res[b], 0.0)                      # (lout, C)
        if final_pool:
            out = jnp.dot(pm_ref[...], out, preferred_element_type=f32)  # (8, C)
        o_ref[b] = out.astype(o_ref.dtype)


# ---------------------------------------------------------------------------
# Wrappers.
# ---------------------------------------------------------------------------
def _pcall(kernel, out_shape, n_in, scratch_shapes):
    return pl.pallas_call(
        kernel,
        out_shape=out_shape,
        in_specs=[VMEM] * n_in,
        out_specs=VMEM,
        scratch_shapes=scratch_shapes,
    )


def stem_forward(x_nlc, p):
    n, l, cin = x_nlc.shape                       # (N, 512, 8)
    xg = x_nlc.reshape(n, l // 2, 2 * cin)        # free stride-2 grouping
    wp = p["conv1_wp"]                            # (8, 16, 64) bf16
    kp, cinp, cout = wp.shape
    lout = l // 2
    kern = functools.partial(stem_kernel, n=n, lout=lout, kp=kp, lpad=p["conv1_lpad"])
    return _pcall(
        kern,
        jax.ShapeDtypeStruct((n, lout, cout), jnp.bfloat16),
        4,
        [pltpu.VMEM((n, lout + kp - 1, cinp), jnp.float32)],
    )(xg, wp, p["bn1_g"], p["bn1_b"])


def block_forward(x, p, *, pool_input, final_pool):
    n, lout = x.shape[0], x.shape[1]
    w1 = p["conv1_wp"]
    kp1, cin1, cout = w1.shape
    has_down = "down_wp" in p
    assert not (pool_input and has_down)

    args = [x, w1, p["bn1_g"], p["bn1_b"],
            p["conv2_wp"], p["bn2_g"], p["bn2_b"],
            p["se_w1"], p["se_w2"]]
    if has_down:
        args += [p["down_wp"], p["dbn_g"], p["dbn_b"]]
    if final_pool:
        assert lout % 8 == 0
        bins = lout // 8
        pm = (np.kron(np.eye(8), np.ones((1, bins))) / bins).astype(np.float32)
        args.append(jnp.asarray(pm))

    scratch = [pltpu.VMEM((n, lout + kp1 - 1, cin1), jnp.float32),
               pltpu.VMEM((n, lout + 2, cout), jnp.float32)]
    if pool_input:
        scratch.append(pltpu.VMEM((n, lout + 1, x.shape[2] // 2), jnp.float32))

    out_rows = 8 if final_pool else lout
    out_dtype = jnp.float32 if final_pool else jnp.bfloat16
    kern = functools.partial(fused_block_kernel, n=n, lout=lout, kp1=kp1,
                             lpad1=p["conv1_lpad"], has_down=has_down,
                             pool_input=pool_input, final_pool=final_pool)
    return _pcall(kern, jax.ShapeDtypeStruct((n, out_rows, cout), out_dtype),
                  len(args), scratch)(*args)


# ---------------------------------------------------------------------------
# Parameters.
# ---------------------------------------------------------------------------
def _he_conv(key, cout, cin, k):
    return jax.random.normal(key, (cout, cin, k), jnp.float32) * math.sqrt(2.0 / (cin * k))


def init_params(key, layers=(1, 1, 1, 1), reduction=16):
    params = {}
    key, k0 = jax.random.split(key)
    wp, lpad = pack_conv_weight(_he_conv(k0, 64, 8, 15), stride=2, padding=7)
    params["stem"] = dict(conv1_wp=wp, conv1_lpad=lpad,
                          bn1_g=jnp.ones((1, 64), jnp.float32),
                          bn1_b=jnp.zeros((1, 64), jnp.float32))

    inplanes = 64
    blocks = []
    for planes, nblocks, stage_stride in zip((64, 128, 256, 512), layers, (1, 2, 2, 2)):
        for bi in range(nblocks):
            s = stage_stride if bi == 0 else 1
            key, k1, k2, k3, k4, k5 = jax.random.split(key, 6)
            p = {"stride": s, "pool_input": (len(blocks) == 0)}
            wp1, lp1 = pack_conv_weight(_he_conv(k1, planes, inplanes, 3), s, 1)
            p["conv1_wp"], p["conv1_lpad"] = wp1, lp1
            p["bn1_g"] = jnp.ones((1, planes), jnp.float32)
            p["bn1_b"] = jnp.zeros((1, planes), jnp.float32)
            wp2, _ = pack_conv_weight(_he_conv(k2, planes, planes, 3), 1, 1)
            p["conv2_wp"] = wp2
            p["bn2_g"] = jnp.ones((1, planes), jnp.float32)
            p["bn2_b"] = jnp.zeros((1, planes), jnp.float32)
            cr = max(planes // reduction, 1)
            p["se_w1"] = (jax.random.normal(k3, (planes, cr), jnp.float32)
                          / math.sqrt(planes)).astype(jnp.bfloat16)
            p["se_w2"] = (jax.random.normal(k4, (cr, planes), jnp.float32)
                          / math.sqrt(cr)).astype(jnp.bfloat16)
            if s != 1 or inplanes != planes:      # block.expansion == 1
                wpd, _ = pack_conv_weight(_he_conv(k5, planes, inplanes, 1), s, 0)
                p["down_wp"] = wpd[0]             # (s*Cin, Cout)
                p["dbn_g"] = jnp.ones((1, planes), jnp.float32)
                p["dbn_b"] = jnp.zeros((1, planes), jnp.float32)
            blocks.append(p)
            inplanes = planes
    params["blocks"] = blocks
    return params


# ---------------------------------------------------------------------------
# Forward.
# ---------------------------------------------------------------------------
def seresnet_forward(params, data_ncl):
    # data_ncl: (N, 8, L) exactly like the PyTorch module input.
    x = jnp.transpose(data_ncl, (0, 2, 1)).astype(jnp.float32)   # NCL -> NLC
    x = stem_forward(x, params["stem"])                          # (N, L/2, 64) bf16
    blocks = params["blocks"]
    for i, p in enumerate(blocks):
        if p["pool_input"] or p["stride"] == 2:
            n, l, c = x.shape
            x = x.reshape(n, l // 2, 2 * c)                      # free grouping reshape
        x = block_forward(x, p, pool_input=p["pool_input"],
                          final_pool=(i == len(blocks) - 1))
    return jnp.transpose(x, (0, 2, 1))                           # (N, 512, 8)


# TODO(synk): the original file's `block` class and GRU head are not in the provided
# snippet; only the SEResNet backbone forward is modeled (SEBasicBlock assumed).

if __name__ == "__main__":
    key = jax.random.PRNGKey(0)
    kparam, kx = jax.random.split(key)
    params = init_params(kparam, layers=(1, 1, 1, 1))
    data = jax.random.normal(kx, (2, 8, 512), jnp.float32)       # (N, C_in=8, L)
    out = seresnet_forward(params, data)
    out = jax.block_until_ready(out)
    assert out.shape == (2, 512, 8), out.shape
    assert bool(jnp.all(jnp.isfinite(out))), "non-finite output"
    print("KERNEL_OK")
</pallas_src>

<mosaic_0001>
module attributes {stable_mosaic.version = 11 : i64} {
  func.func @stem_kernel(%arg0: memref<2x256x16xf32, #tpu.memory_space<vmem>>, %arg1: memref<8x16x64xbf16, #tpu.memory_space<vmem>>, %arg2: memref<1x64xf32, #tpu.memory_space<vmem>>, %arg3: memref<1x64xf32, #tpu.memory_space<vmem>>, %arg4: memref<2x256x64xbf16, #tpu.memory_space<vmem>>, %arg5: memref<2x263x16xf32, #tpu.memory_space<vmem>>) attributes {dimension_semantics = [], scalar_prefetch = 0 : i64, scratch_operands = 1 : i64, tpu.core_type = #tpu.core_type<tc>} {
    %c0 = arith.constant 0 : index
    %c0_0 = arith.constant 0 : index
    %c0_1 = arith.constant 0 : index
    %0 = vector.load %arg0[%c0, %c0_0, %c0_1] : memref<2x256x16xf32, #tpu.memory_space<vmem>>, vector<1x256x16xf32>
    %1 = vector.shape_cast %0 : vector<1x256x16xf32> to vector<256x16xf32>
    %c1 = arith.constant 1 : index
    %c0_2 = arith.constant 0 : index
    %c0_3 = arith.constant 0 : index
    %2 = vector.load %arg0[%c1, %c0_2, %c0_3] : memref<2x256x16xf32, #tpu.memory_space<vmem>>, vector<1x256x16xf32>
    %3 = vector.shape_cast %2 : vector<1x256x16xf32> to vector<256x16xf32>
    %cst = arith.constant 0.000000e+00 : f32
    %4 = vector.broadcast %cst : f32 to vector<2x263x16xf32>
    %c0_4 = arith.constant 0 : index
    %c0_5 = arith.constant 0 : index
    %c0_6 = arith.constant 0 : index
    %5 = vector.load %arg5[%c0_4, %c0_5, %c0_6] : memref<2x263x16xf32, #tpu.memory_space<vmem>>, vector<2x263x16xf32>
    tpu.vector_store %arg5[%c0_4, %c0_5, %c0_6], %4 {strides = array<i32>} : memref<2x263x16xf32, #tpu.memory_space<vmem>>, vector<2x263x16xf32>,
    %c0_7 = arith.constant 0 : index
    %c4 = arith.constant 4 : index
    %c0_8 = arith.constant 0 : index
    %6 = vector.load %arg5[%c0_7, %c4, %c0_8] : memref<2x263x16xf32, #tpu.memory_space<vmem>>, vector<1x256x16xf32>
    %7 = vector.shape_cast %6 : vector<1x256x16xf32> to vector<256x16xf32>
    %8 = vector.shape_cast %1 : vector<256x16xf32> to vector<1x256x16xf32>
    tpu.vector_store %arg5[%c0_7, %c4, %c0_8], %8 {strides = array<i32>} : memref<2x263x16xf32, #tpu.memory_space<vmem>>, vector<1x256x16xf32>,
    %c1_9 = arith.constant 1 : index
    %c4_10 = arith.constant 4 : index
    %c0_11 = arith.constant 0 : index
    %9 = vector.load %arg5[%c1_9, %c4_10, %c0_11] : memref<2x263x16xf32, #tpu.memory_space<vmem>>, vector<1x256x16xf32>
    %10 = vector.shape_cast %9 : vector<1x256x16xf32> to vector<256x16xf32>
    %11 = vector.shape_cast %3 : vector<256x16xf32> to vector<1x256x16xf32>
    tpu.vector_store %arg5[%c1_9, %c4_10, %c0_11], %11 {strides = array<i32>} : memref<2x263x16xf32, #tpu.memory_space<vmem>>, vector<1x256x16xf32>,
    %cst_12 = arith.constant 0.000000e+00 : f32
    %12 = vector.broadcast %cst_12 : f32 to vector<256x64xf32>
    %c0_13 = arith.constant 0 : index
    %c0_14 = arith.constant 0 : index
    %c0_15 = arith.constant 0 : index
    %13 = vector.load %arg5[%c0_13, %c0_14, %c0_15] : memref<2x263x16xf32, #tpu.memory_space<vmem>>, vector<1x256x16xf32>
    %14 = vector.shape_cast %13 : vector<1x256x16xf32> to vector<256x16xf32>
    %15 = arith.truncf %14 : vector<256x16xf32> to vector<256x16xbf16>
    %c0_16 = arith.constant 0 : index
    %c0_17 = arith.constant 0 : index
    %c0_18 = arith.constant 0 : index
    %16 = vector.load %arg1[%c0_16, %c0_17, %c0_18] : memref<8x16x64xbf16, #tpu.memory_space<vmem>>, vector<1x16x64xbf16>
    %17 = vector.shape_cast %16 : vector<1x16x64xbf16> to vector<16x64xbf16>
    %cst_19 = arith.constant dense<0.000000e+00> : vector<256x64xf32>
    %18 = tpu.matmul %15, %17, %cst_19 {dimension_numbers = #tpu.dot_dimension_numbers<[1], [0], [0], [1], [0, 0, 1, 1], [], []>} : vector<256x16xbf16>, vector<16x64xbf16>, vector<256x64xf32> -> vector<256x64xf32>
    %19 = arith.addf %12, %18 : vector<256x64xf32>
    %c0_20 = arith.constant 0 : index
    %c1_21 = arith.constant 1 : index
    %c0_22 = arith.constant 0 : index
    %20 = vector.load %arg5[%c0_20, %c1_21, %c0_22] : memref<2x263x16xf32, #tpu.memory_space<vmem>>, vector<1x256x16xf32>
    %21 = vector.shape_cast %20 : vector<1x256x16xf32> to vector<256x16xf32>
    %22 = arith.truncf %21 : vector<256x16xf32> to vector<256x16xbf16>
    %c1_23 = arith.constant 1 : index
    %c0_24 = arith.constant 0 : index
    %c0_25 = arith.constant 0 : index
    %23 = vector.load %arg1[%c1_23, %c0_24, %c0_25] : memref<8x16x64xbf16, #tpu.memory_space<vmem>>, vector<1x16x64xbf16>
    %24 = vector.shape_cast %23 : vector<1x16x64xbf16> to vector<16x64xbf16>
    %cst_26 = arith.constant dense<0.000000e+00> : vector<256x64xf32>
    %25 = tpu.matmul %22, %24, %cst_26 {dimension_numbers = #tpu.dot_dimension_numbers<[1], [0], [0], [1], [0, 0, 1, 1], [], []>} : vector<256x16xbf16>, vector<16x64xbf16>, vector<256x64xf32> -> vector<256x64xf32>
    %26 = arith.addf %19, %25 : vector<256x64xf32>
    %c0_27 = arith.constant 0 : index
    %c2 = arith.constant 2 : index
    %c0_28 = arith.constant 0 : index
    %27 = vector.load %arg5[%c0_27, %c2, %c0_28] : memref<2x263x16xf32, #tpu.memory_space<vmem>>, vector<1x256x16xf32>
    %28 = vector.shape_cast %27 : vector<1x256x16xf32> to vector<256x16xf32>
    %29 = arith.truncf %28 : vector<256x16xf32> to vector<256x16xbf16>
    %c2_29 = arith.constant 2 : index
    %c0_30 = arith.constant 0 : index
    %c0_31 = arith.constant 0 : index
    %30 = vector.load %arg1[%c2_29, %c0_30, %c0_31] : memref<8x16x64xbf16, #tpu.memory_space<vmem>>, vector<1x16x64xbf16>
    %31 = vector.shape_cast %30 : vector<1x16x64xbf16> to vector<16x64xbf16>
    %cst_32 = arith.constant dense<0.000000e+00> : vector<256x64xf32>
    %32 = tpu.matmul %29, %31, %cst_32 {dimension_numbers = #tpu.dot_dimension_numbers<[1], [0], [0], [1], [0, 0, 1, 1], [], []>} : vector<256x16xbf16>, vector<16x64xbf16>, vector<256x64xf32> -> vector<256x64xf32>
    %33 = arith.addf %26, %32 : vector<256x64xf32>
    %c0_33 = arith.constant 0 : index
    %c3 = arith.constant 3 : index
    %c0_34 = arith.constant 0 : index
    %34 = vector.load %arg5[%c0_33, %c3, %c0_34] : memref<2x263x16xf32, #tpu.memory_space<vmem>>, vector<1x256x16xf32>
    %35 = vector.shape_cast %34 : vector<1x256x16xf32> to vector<256x16xf32>
    %36 = arith.truncf %35 : vector<256x16xf32> to vector<256x16xbf16>
    %c3_35 = arith.constant 3 : index
    %c0_36 = arith.constant 0 : index
    %c0_37 = arith.constant 0 : index
    %37 = vector.load %arg1[%c3_35, %c0_36, %c0_37] : memref<8x16x64xbf16, #tpu.memory_space<vmem>>, vector<1x16x64xbf16>
    %38 = vector.shape_cast %37 : vector<1x16x64xbf16> to vector<16x64xbf16>
    %cst_38 = arith.constant dense<0.000000e+00> : vector<256x64xf32>
    %39 = tpu.matmul %36, %38, %cst_38 {dimension_numbers = #tpu.dot_dimension_numbers<[1], [0], [0], [1], [0, 0, 1, 1], [], []>} : vector<256x16xbf16>, vector<16x64xbf16>, vector<256x64xf32> -> vector<256x64xf32>
    %40 = arith.addf %33, %39 : vector<256x64xf32>
    %c0_39 = arith.constant 0 : index
    %c4_40 = arith.constant 4 : index
    %c0_41 = arith.constant 0 : index
    %41 = vector.load %arg5[%c0_39, %c4_40, %c0_41] : memref<2x263x16xf32, #tpu.memory_space<vmem>>, vector<1x256x16xf32>
    %42 = vector.shape_cast %41 : vector<1x256x16xf32> to vector<256x16xf32>
    %43 = arith.truncf %42 : vector<256x16xf32> to vector<256x16xbf16>
    %c4_42 = arith.constant 4 : index
    %c0_43 = arith.constant 0 : index
    %c0_44 = arith.constant 0 : index
    %44 = vector.load %arg1[%c4_42, %c0_43, %c0_44] : memref<8x16x64xbf16, #tpu.memory_space<vmem>>, vector<1x16x64xbf16>
    %45 = vector.shape_cast %44 : vector<1x16x64xbf16> to vector<16x64xbf16>
    %cst_45 = arith.constant dense<0.000000e+00> : vector<256x64xf32>
    %46 = tpu.matmul %43, %45, %cst_45 {dimension_numbers = #tpu.dot_dimension_numbers<[1], [0], [0], [1], [0, 0, 1, 1], [], []>} : vector<256x16xbf16>, vector<16x64xbf16>, vector<256x64xf32> -> vector<256x64xf32>
    %47 = arith.addf %40, %46 : vector<256x64xf32>
    %c0_46 = arith.constant 0 : index
    %c5 = arith.constant 5 : index
    %c0_47 = arith.constant 0 : index
    %48 = vector.load %arg5[%c0_46, %c5, %c0_47] : memref<2x263x16xf32, #tpu.memory_space<vmem>>, vector<1x256x16xf32>
    %49 = vector.shape_cast %48 : vector<1x256x16xf32> to vector<256x16xf32>
    %50 = arith.truncf %49 : vector<256x16xf32> to vector<256x16xbf16>
    %c5_48 = arith.constant 5 : index
    %c0_49 = arith.constant 0 : index
    %c0_50 = arith.constant 0 : index
    %51 = vector.load %arg1[%c5_48, %c0_49, %c0_50] : memref<8x16x64xbf16, #tpu.memory_space<vmem>>, vector<1x16x64xbf16>
    %52 = vector.shape_cast %51 : vector<1x16x64xbf16> to vector<16x64xbf16>
    %cst_51 = arith.constant dense<0.000000e+00> : vector<256x64xf32>
    %53 = tpu.matmul %50, %52, %cst_51 {dimension_numbers = #tpu.dot_dimension_numbers<[1], [0], [0], [1], [0, 0, 1, 1], [], []>} : vector<256x16xbf16>, vector<16x64xbf16>, vector<256x64xf32> -> vector<256x64xf32>
    %54 = arith.addf %47, %53 : vector<256x64xf32>
    %c0_52 = arith.constant 0 : index
    %c6 = arith.constant 6 : index
    %c0_53 = arith.constant 0 : index
    %55 = vector.load %arg5[%c0_52, %c6, %c0_53] : memref<2x263x16xf32, #tpu.memory_space<vmem>>, vector<1x256x16xf32>
    %56 = vector.shape_cast %55 : vector<1x256x16xf32> to vector<256x16xf32>
    %57 = arith.truncf %56 : vector<256x16xf32> to vector<256x16xbf16>
    %c6_54 = arith.constant 6 : index
    %c0_55 = arith.constant 0 : index
    %c0_56 = arith.constant 0 : index
    %58 = vector.load %arg1[%c6_54, %c0_55, %c0_56] : memref<8x16x64xbf16, #tpu.memory_space<vmem>>, vector<1x16x64xbf16>
    %59 = vector.shape_cast %58 : vector<1x16x64xbf16> to vector<16x64xbf16>
    %cst_57 = arith.constant dense<0.000000e+00> : vector<256x64xf32>
    %60 = tpu.matmul %57, %59, %cst_57 {dimension_numbers = #tpu.dot_dimension_numbers<[1], [0], [0], [1], [0, 0, 1, 1], [], []>} : vector<256x16xbf16>, vector<16x64xbf16>, vector<256x64xf32> -> vector<256x64xf32>
    %61 = arith.addf %54, %60 : vector<256x64xf32>
    %c0_58 = arith.constant 0 : index
    %c7 = arith.constant 7 : index
    %c0_59 = arith.constant 0 : index
    %62 = vector.load %arg5[%c0_58, %c7, %c0_59] : memref<2x263x16xf32, #tpu.memory_space<vmem>>, vector<1x256x16xf32>
    %63 = vector.shape_cast %62 : vector<1x256x16xf32> to vector<256x16xf32>
    %64 = arith.truncf %63 : vector<256x16xf32> to vector<256x16xbf16>
    %c7_60 = arith.constant 7 : index
    %c0_61 = arith.constant 0 : index
    %c0_62 = arith.constant 0 : index
    %65 = vector.load %arg1[%c7_60, %c0_61, %c0_62] : memref<8x16x64xbf16, #tpu.memory_space<vmem>>, vector<1x16x64xbf16>
    %66 = vector.shape_cast %65 : vector<1x16x64xbf16> to vector<16x64xbf16>
    %cst_63 = arith.constant dense<0.000000e+00> : vector<256x64xf32>
    %67 = tpu.matmul %64, %66, %cst_63 {dimension_numbers = #tpu.dot_dimension_numbers<[1], [0], [0], [1], [0, 0, 1, 1], [], []>} : vector<256x16xbf16>, vector<16x64xbf16>, vector<256x64xf32> -> vector<256x64xf32>
    %68 = arith.addf %61, %67 : vector<256x64xf32>
    %cst_64 = arith.constant 0.000000e+00 : f32
    %69 = vector.broadcast %cst_64 : f32 to vector<256x64xf32>
    %c1_65 = arith.constant 1 : index
    %c0_66 = arith.constant 0 : index
    %c0_67 = arith.constant 0 : index
    %70 = vector.load %arg5[%c1_65, %c0_66, %c0_67] : memref<2x263x16xf32, #tpu.memory_space<vmem>>, vector<1x256x16xf32>
    %71 = vector.shape_cast %70 : vector<1x256x16xf32> to vector<256x16xf32>
    %72 = arith.truncf %71 : vector<256x16xf32> to vector<256x16xbf16>
    %c0_68 = arith.constant 0 : index
    %c0_69 = arith.constant 0 : index
    %c0_70 = arith.constant 0 : index
    %73 = vector.load %arg1[%c0_68, %c0_69, %c0_70] : memref<8x16x64xbf16, #tpu.memory_space<vmem>>, vector<1x16x64xbf16>
    %74 = vector.shape_cast %73 : vector<1x16x64xbf16> to vector<16x64xbf16>
    %cst_71 = arith.constant dense<0.000000e+00> : vector<256x64xf32>
    %75 = tpu.matmul %72, %74, %cst_71 {dimension_numbers = #tpu.dot_dimension_numbers<[1], [0], [0], [1], [0, 0, 1, 1], [], []>} : vector<256x16xbf16>, vector<16x64xbf16>, vector<256x64xf32> -> vector<256x64xf32>
    %76 = arith.addf %69, %75 : vector<256x64xf32>
    %c1_72 = arith.constant 1 : index
    %c1_73 = arith.constant 1 : index
    %c0_74 = arith.constant 0 : index
    %77 = vector.load %arg5[%c1_72, %c1_73, %c0_74] : memref<2x263x16xf32, #tpu.memory_space<vmem>>, vector<1x256x16xf32>
    %78 = vector.shape_cast %77 : vector<1x256x16xf32> to vector<256x16xf32>
    %79 = arith.truncf %78 : vector<256x16xf32> to vector<256x16xbf16>
    %c1_75 = arith.constant 1 : index
    %c0_76 = arith.constant 0 : index
    %c0_77 = arith.constant 0 : index
    %80 = vector.load %arg1[%c1_75, %c0_76, %c0_77] : memref<8x16x64xbf16, #tpu.memory_space<vmem>>, vector<1x16x64xbf16>
    %81 = vector.shape_cast %80 : vector<1x16x64xbf16> to vector<16x64xbf16>
    %cst_78 = arith.constant dense<0.000000e+00> : vector<256x64xf32>
    %82 = tpu.matmul %79, %81, %cst_78 {dimension_numbers = #tpu.dot_dimension_numbers<[1], [0], [0], [1], [0, 0, 1, 1], [], []>} : vector<256x16xbf16>, vector<16x64xbf16>, vector<256x64xf32> -> vector<256x64xf32>
    %83 = arith.addf %76, %82 : vector<256x64xf32>
    %c1_79 = arith.constant 1 : index
    %c2_80 = arith.constant 2 : index
    %c0_81 = arith.constant 0 : index
    %84 = vector.load %arg5[%c1_79, %c2_80, %c0_81] : memref<2x263x16xf32, #tpu.memory_space<vmem>>, vector<1x256x16xf32>
    %85 = vector.shape_cast %84 : vector<1x256x16xf32> to vector<256x16xf32>
    %86 = arith.truncf %85 : vector<256x16xf32> to vector<256x16xbf16>
    %c2_82 = arith.constant 2 : index
    %c0_83 = arith.constant 0 : index
    %c0_84 = arith.constant 0 : index
    %87 = vector.load %arg1[%c2_82, %c0_83, %c0_84] : memref<8x16x64xbf16, #tpu.memory_space<vmem>>, vector<1x16x64xbf16>
    %88 = vector.shape_cast %87 : vector<1x16x64xbf16> to vector<16x64xbf16>
    %cst_85 = arith.constant dense<0.000000e+00> : vector<256x64xf32>
    %89 = tpu.matmul %86, %88, %cst_85 {dimension_numbers = #tpu.dot_dimension_numbers<[1], [0], [0], [1], [0, 0, 1, 1], [], []>} : vector<256x16xbf16>, vector<16x64xbf16>, vector<256x64xf32> -> vector<256x64xf32>
    %90 = arith.addf %83, %89 : vector<256x64xf32>
    %c1_86 = arith.constant 1 : index
    %c3_87 = arith.constant 3 : index
    %c0_88 = arith.constant 0 : index
    %91 = vector.load %arg5[%c1_86, %c3_87, %c0_88] : memref<2x263x16xf32, #tpu.memory_space<vmem>>, vector<1x256x16xf32>
    %92 = vector.shape_cast %91 : vector<1x256x16xf32> to vector<256x16xf32>
    %93 = arith.truncf %92 : vector<256x16xf32> to vector<256x16xbf16>
    %c3_89 = arith.constant 3 : index
    %c0_90 = arith.constant 0 : index
    %c0_91 = arith.constant 0 : index
    %94 = vector.load %arg1[%c3_89, %c0_90, %c0_91] : memref<8x16x64xbf16, #tpu.memory_space<vmem>>, vector<1x16x64xbf16>
    %95 = vector.shape_cast %94 : vector<1x16x64xbf16> to vector<16x64xbf16>
    %cst_92 = arith.constant dense<0.000000e+00> : vector<256x64xf32>
    %96 = tpu.matmul %93, %95, %cst_92 {dimension_numbers = #tpu.dot_dimension_numbers<[1], [0], [0], [1], [0, 0, 1, 1], [], []>} : vector<256x16xbf16>, vector<16x64xbf16>, vector<256x64xf32> -> vector<256x64xf32>
    %97 = arith.addf %90, %96 : vector<256x64xf32>
    %c1_93 = arith.constant 1 : index
    %c4_94 = arith.constant 4 : index
    %c0_95 = arith.constant 0 : index
    %98 = vector.load %arg5[%c1_93, %c4_94, %c0_95] : memref<2x263x16xf32, #tpu.memory_space<vmem>>, vector<1x256x16xf32>
    %99 = vector.shape_cast %98 : vector<1x256x16xf32> to vector<256x16xf32>
    %100 = arith.truncf %99 : vector<256x16xf32> to vector<256x16xbf16>
    %c4_96 = arith.constant 4 : index
    %c0_97 = arith.constant 0 : index
    %c0_98 = arith.constant 0 : index
    %101 = vector.load %arg1[%c4_96, %c0_97, %c0_98] : memref<8x16x64xbf16, #tpu.memory_space<vmem>>, vector<1x16x64xbf16>
    %102 = vector.shape_cast %101 : vector<1x16x64xbf16> to vector<16x64xbf16>
    %cst_99 = arith.constant dense<0.000000e+00> : vector<256x64xf32>
    %103 = tpu.matmul %100, %102, %cst_99 {dimension_numbers = #tpu.dot_dimension_numbers<[1], [0], [0], [1], [0, 0, 1, 1], [], []>} : vector<256x16xbf16>, vector<16x64xbf16>, vector<256x64xf32> -> vector<256x64xf32>
    %104 = arith.addf %97, %103 : vector<256x64xf32>
    %c1_100 = arith.constant 1 : index
    %c5_101 = arith.constant 5 : index
    %c0_102 = arith.constant 0 : index
    %105 = vector.load %arg5[%c1_100, %c5_101, %c0_102] : memref<2x263x16xf32, #tpu.memory_space<vmem>>, vector<1x256x16xf32>
    %106 = vector.shape_cast %105 : vector<1x256x16xf32> to vector<256x16xf32>
    %107 = arith.truncf %106 : vector<256x16xf32> to vector<256x16xbf16>
    %c5_103 = arith.constant 5 : index
    %c0_104 = arith.constant 0 : index
    %c0_105 = arith.constant 0 : index
    %108 = vector.load %arg1[%c5_103, %c0_104, %c0_105] : memref<8x16x64xbf16, #tpu.memory_space<vmem>>, vector<1x16x64xbf16>
    %109 = vector.shape_cast %108 : vector<1x16x64xbf16> to vector<16x64xbf16>
    %cst_106 = arith.constant dense<0.000000e+00> : vector<256x64xf32>
    %110 = tpu.matmul %107, %109, %cst_106 {dimension_numbers = #tpu.dot_dimension_numbers<[1], [0], [0], [1], [0, 0, 1, 1], [], []>} : vector<256x16xbf16>, vector<16x64xbf16>, vector<256x64xf32> -> vector<256x64xf32>
    %111 = arith.addf %104, %110 : vector<256x64xf32>
    %c1_107 = arith.constant 1 : index
    %c6_108 = arith.constant 6 : index
    %c0_109 = arith.constant 0 : index
    %112 = vector.load %arg5[%c1_107, %c6_108, %c0_109] : memref<2x263x16xf32, #tpu.memory_space<vmem>>, vector<1x256x16xf32>
    %113 = vector.shape_cast %112 : vector<1x256x16xf32> to vector<256x16xf32>
    %114 = arith.truncf %113 : vector<256x16xf32> to vector<256x16xbf16>
    %c6_110 = arith.constant 6 : index
    %c0_111 = arith.constant 0 : index
    %c0_112 = arith.constant 0 : index
    %115 = vector.load %arg1[%c6_110, %c0_111, %c0_112] : memref<8x16x64xbf16, #tpu.memory_space<vmem>>, vector<1x16x64xbf16>
    %116 = vector.shape_cast %115 : vector<1x16x64xbf16> to vector<16x64xbf16>
    %cst_113 = arith.constant dense<0.000000e+00> : vector<256x64xf32>
    %117 = tpu.matmul %114, %116, %cst_113 {dimension_numbers = #tpu.dot_dimension_numbers<[1], [0], [0], [1], [0, 0, 1, 1], [], []>} : vector<256x16xbf16>, vector<16x64xbf16>, vector<256x64xf32> -> vector<256x64xf32>
    %118 = arith.addf %111, %117 : vector<256x64xf32>
    %c1_114 = arith.constant 1 : index
    %c7_115 = arith.constant 7 : index
    %c0_116 = arith.constant 0 : index
    %119 = vector.load %arg5[%c1_114, %c7_115, %c0_116] : memref<2x263x16xf32, #tpu.memory_space<vmem>>, vector<1x256x16xf32>
    %120 = vector.shape_cast %119 : vector<1x256x16xf32> to vector<256x16xf32>
    %121 = arith.truncf %120 : vector<256x16xf32> to vector<256x16xbf16>
    %c7_117 = arith.constant 7 : index
    %c0_118 = arith.constant 0 : index
    %c0_119 = arith.constant 0 : index
    %122 = vector.load %arg1[%c7_117, %c0_118, %c0_119] : memref<8x16x64xbf16, #tpu.memory_space<vmem>>, vector<1x16x64xbf16>
    %123 = vector.shape_cast %122 : vector<1x16x64xbf16> to vector<16x64xbf16>
    %cst_120 = arith.constant dense<0.000000e+00> : vector<256x64xf32>
    %124 = tpu.matmul %121, %123, %cst_120 {dimension_numbers = #tpu.dot_dimension_numbers<[1], [0], [0], [1], [0, 0, 1, 1], [], []>} : vector<256x16xbf16>, vector<16x64xbf16>, vector<256x64xf32> -> vector<256x64xf32>
    %125 = arith.addf %118, %124 : vector<256x64xf32>
    %cst_121 = arith.constant 0.000000e+00 : f32
    %126 = vector.broadcast %cst_121 : f32 to vector<1x64xf32>
    %cst_122 = arith.constant 0.000000e+00 : f32
    %127 = vector.broadcast %cst_122 : f32 to vector<1x64xf32>
    %cst_123 = arith.constant dense<0.000000e+00> : vector<64xf32>
    %128 = vector.multi_reduction <add>, %68, %cst_123 [0] : vector<256x64xf32> to vector<64xf32>
    %129 = vector.shape_cast %128 : vector<64xf32> to vector<1x64xf32>
    %130 = arith.addf %126, %129 : vector<1x64xf32>
    %131 = arith.mulf %68, %68 : vector<256x64xf32>
    %cst_124 = arith.constant dense<0.000000e+00> : vector<64xf32>
    %132 = vector.multi_reduction <add>, %131, %cst_124 [0] : vector<256x64xf32> to vector<64xf32>
    %133 = vector.shape_cast %132 : vector<64xf32> to vector<1x64xf32>
    %134 = arith.addf %127, %133 : vector<1x64xf32>
    %cst_125 = arith.constant dense<0.000000e+00> : vector<64xf32>
    %135 = vector.multi_reduction <add>, %125, %cst_125 [0] : vector<256x64xf32> to vector<64xf32>
    %136 = vector.shape_cast %135 : vector<64xf32> to vector<1x64xf32>
    %137 = arith.addf %130, %136 : vector<1x64xf32>
    %138 = arith.mulf %125, %125 : vector<256x64xf32>
    %cst_126 = arith.constant dense<0.000000e+00> : vector<64xf32>
    %139 = vector.multi_reduction <add>, %138, %cst_126 [0] : vector<256x64xf32> to vector<64xf32>
    %140 = vector.shape_cast %139 : vector<64xf32> to vector<1x64xf32>
    %141 = arith.addf %134, %140 : vector<1x64xf32>
    %cst_127 = arith.constant 5.120000e+02 : f32
    %142 = vector.broadcast %cst_127 : f32 to vector<1x64xf32>
    %143 = arith.divf %137, %142 : vector<1x64xf32>
    %cst_128 = arith.constant 5.120000e+02 : f32
    %144 = vector.broadcast %cst_128 : f32 to vector<1x64xf32>
    %145 = arith.divf %141, %144 : vector<1x64xf32>
    %146 = arith.mulf %143, %143 : vector<1x64xf32>
    %147 = arith.subf %145, %146 : vector<1x64xf32>
    %cst_129 = arith.constant 0.000000e+00 : f32
    %148 = vector.broadcast %cst_129 : f32 to vector<1x64xf32>
    %149 = arith.maximumf %147, %148 : vector<1x64xf32>
    %cst_130 = arith.constant 9.99999974E-6 : f32
    %150 = vector.broadcast %cst_130 : f32 to vector<1x64xf32>
    %151 = arith.addf %149, %150 : vector<1x64xf32>
    %152 = math.rsqrt %151 : vector<1x64xf32>
    %c0_131 = arith.constant 0 : index
    %c0_132 = arith.constant 0 : index
    %153 = vector.load %arg2[%c0_131, %c0_132] : memref<1x64xf32, #tpu.memory_space<vmem>>, vector<1x64xf32>
    %154 = arith.mulf %152, %153 : vector<1x64xf32>
    %c0_133 = arith.constant 0 : index
    %c0_134 = arith.constant 0 : index
    %155 = vector.load %arg3[%c0_133, %c0_134] : memref<1x64xf32, #tpu.memory_space<vmem>>, vector<1x64xf32>
    %156 = arith.mulf %143, %154 : vector<1x64xf32>
    %157 = arith.subf %155, %156 : vector<1x64xf32>
    %158 = vector.broadcast %154 : vector<1x64xf32> to vector<256x64xf32>
    %159 = arith.mulf %68, %158 : vector<256x64xf32>
    %160 = vector.broadcast %157 : vector<1x64xf32> to vector<256x64xf32>
    %161 = arith.addf %159, %160 : vector<256x64xf32>
    %cst_135 = arith.constant 0.000000e+00 : f32
    %162 = vector.broadcast %cst_135 : f32 to vector<256x64xf32>
    %163 = arith.maximumf %161, %162 : vector<256x64xf32>
    %164 = vector.broadcast %154 : vector<1x64xf32> to vector<256x64xf32>
    %165 = arith.mulf %125, %164 : vector<256x64xf32>
    %166 = vector.broadcast %157 : vector<1x64xf32> to vector<256x64xf32>
    %167 = arith.addf %165, %166 : vector<256x64xf32>
    %cst_136 = arith.constant 0.000000e+00 : f32
    %168 = vector.broadcast %cst_136 : f32 to vector<256x64xf32>
    %169 = arith.maximumf %167, %168 : vector<256x64xf32>
    %170 = arith.truncf %163 : vector<256x64xf32> to vector<256x64xbf16>
    %c0_137 = arith.constant 0 : index
    %c0_138 = arith.constant 0 : index
    %c0_139 = arith.constant 0 : index
    %171 = vector.load %arg4[%c0_137, %c0_138, %c0_139] : memref<2x256x64xbf16, #tpu.memory_space<vmem>>, vector<1x256x64xbf16>
    %172 = vector.shape_cast %171 : vector<1x256x64xbf16> to vector<256x64xbf16>
    %173 = vector.shape_cast %170 : vector<256x64xbf16> to vector<1x256x64xbf16>
    tpu.vector_store %arg4[%c0_137, %c0_138, %c0_139], %173 {strides = array<i32>} : memref<2x256x64xbf16, #tpu.memory_space<vmem>>, vector<1x256x64xbf16>,
    %174 = arith.truncf %169 : vector<256x64xf32> to vector<256x64xbf16>
    %c1_140 = arith.constant 1 : index
    %c0_141 = arith.constant 0 : index
    %c0_142 = arith.constant 0 : index
    %175 = vector.load %arg4[%c1_140, %c0_141, %c0_142] : memref<2x256x64xbf16, #tpu.memory_space<vmem>>, vector<1x256x64xbf16>
    %176 = vector.shape_cast %175 : vector<1x256x64xbf16> to vector<256x64xbf16>
    %177 = vector.shape_cast %174 : vector<256x64xbf16> to vector<1x256x64xbf16>
    tpu.vector_store %arg4[%c1_140, %c0_141, %c0_142], %177 {strides = array<i32>} : memref<2x256x64xbf16, #tpu.memory_space<vmem>>, vector<1x256x64xbf16>,
    return
  }
}

</mosaic_0001>

<llo_original>
// kernel: tpu_custom_call.1
$region0: #{tpu_custom_call.1}
  #allocation0 [shape = 'u32[]', space=smem, size = 0x4, offset = 0x4, fixed_abs, tag = 'smem constant byte address 0x4 - core index']
  #allocation1 [shape = 'u32[72,128]{1,0:T(1,128)}', space=vmem, size = 0x9000, scoped, tag = 'internal scratch']
  #allocation2 [shape = 'f32[2,263,16]{2,1,0:T(8,128)}', space=vmem, size = 0x42000, scoped, tag = 'scratch operand']
  %s0 = inlined_call_operand.vmem [shape: f32[2,256,16], index: 0, kind: input, shape index: {}]
  %s1 = inlined_call_operand.vmem [shape: bf16[8,16,64], index: 1, kind: input, shape index: {}]
  %s2 = inlined_call_operand.vmem [shape: f32[1,64], index: 2, kind: input, shape index: {}]
  %s3 = inlined_call_operand.vmem [shape: f32[1,64], index: 3, kind: input, shape index: {}]
  %s4 = inlined_call_operand.vmem [shape: bf16[2,256,64], index: 4, kind: output, shape index: {}]
  %s5 = sld [smem:[#allocation0]]
  $region26: #{tpu_custom_call.1} parent=0
    _
  %s7 = ssub.s32 1, %s5
  %s8 = scalar_select 0, %s7, %s5
  // Predicated region
  $region2: #{tpu_custom_call.1} parent=0 // pred_check
    _
  $region3: #{tpu_custom_call.1} parent=0 // pred_check_branch
    %10 = sbr.rel (0) target = $region5
  $region4: #{tpu_custom_call.1} parent=0 // pred_region
    _
  $region5: #{tpu_custom_call.1} parent=0 // pred_fallthru
    _
  // Predicated region
  $region6: #{tpu_custom_call.1} parent=0 // pred_check
    _
  $region7: #{tpu_custom_call.1} parent=0 // pred_check_branch
    %12 = sbr.rel (0) target = $region9
  $region8: #{tpu_custom_call.1} parent=0 // pred_region
    _
  $region9: #{tpu_custom_call.1} parent=0 // pred_fallthru
    _
  // Predicated region
  $region10: #{tpu_custom_call.1} parent=0 // pred_check
    _
  $region11: #{tpu_custom_call.1} parent=0 // pred_check_branch
    %14 = sbr.rel (0) target = $region13
  $region12: #{tpu_custom_call.1} parent=0 // pred_region
    _
  $region13: #{tpu_custom_call.1} parent=0 // pred_fallthru
    _
  // Predicated region
  $region14: #{tpu_custom_call.1} parent=0 // pred_check
    _
  $region15: #{tpu_custom_call.1} parent=0 // pred_check_branch
    %16 = sbr.rel (0) target = $region17
  $region16: #{tpu_custom_call.1} parent=0 // pred_region
    _
  $region17: #{tpu_custom_call.1} parent=0 // pred_fallthru
    _
  %v18 = vld [vmem:[%s0] sm:$0xff]
  %v19 = vld [vmem:[%s0 + $0x8] sm:$0xff]
  %v20 = vld [vmem:[%s0 + $0x10] sm:$0xff]
  %v21 = vld [vmem:[%s0 + $0x18] sm:$0xff]
  %v22 = vld [vmem:[%s0 + $0x20] sm:$0xff]
  %v23 = vld [vmem:[%s0 + $0x28] sm:$0xff]
  %v24 = vld [vmem:[%s0 + $0x30] sm:$0xff]
  %v25 = vld [vmem:[%s0 + $0x38] sm:$0xff]
  %v26 = vld [vmem:[%s0 + $0x40] sm:$0xff]
  %v27 = vld [vmem:[%s0 + $0x48] sm:$0xff]
  %v28 = vld [vmem:[%s0 + $0x50] sm:$0xff]
  %v29 = vld [vmem:[%s0 + $0x58] sm:$0xff]
  %v30 = vld [vmem:[%s0 + $0x60] sm:$0xff]
  %v31 = vld [vmem:[%s0 + $0x68] sm:$0xff]
  %v32 = vld [vmem:[%s0 + $0x70] sm:$0xff]
  %v33 = vld [vmem:[%s0 + $0x78] sm:$0xff]
  %v34 = vld [vmem:[%s0 + $0x80] sm:$0xff]
  %v35 = vld [vmem:[%s0 + $0x88] sm:$0xff]
  %v36 = vld [vmem:[%s0 + $0x90] sm:$0xff]
  %v37 = vld [vmem:[%s0 + $0x98] sm:$0xff]
  %v38 = vld [vmem:[%s0 + $0xa0] sm:$0xff]
  %v39 = vld [vmem:[%s0 + $0xa8] sm:$0xff]
  %v40 = vld [vmem:[%s0 + $0xb0] sm:$0xff]
  %v41 = vld [vmem:[%s0 + $0xb8] sm:$0xff]
  %v42 = vld [vmem:[%s0 + $0xc0] sm:$0xff]
  %v43 = vld [vmem:[%s0 + $0xc8] sm:$0xff]
  %v44 = vld [vmem:[%s0 + $0xd0] sm:$0xff]
  %v45 = vld [vmem:[%s0 + $0xd8] sm:$0xff]
  %v46 = vld [vmem:[%s0 + $0xe0] sm:$0xff]
  %v47 = vld [vmem:[%s0 + $0xe8] sm:$0xff]
  %v48 = vld [vmem:[%s0 + $0xf0] sm:$0xff]
  %v49 = vld [vmem:[%s0 + $0xf8] sm:$0xff]
  %s50 = scalar_lea.vmem %s0, 256
  %v51 = vld [vmem:[%s50] sm:$0xff]
  %v52 = vld [vmem:[%s50 + $0x8] sm:$0xff]
  %v53 = vld [vmem:[%s50 + $0x10] sm:$0xff]
  %v54 = vld [vmem:[%s50 + $0x18] sm:$0xff]
  %v55 = vld [vmem:[%s50 + $0x20] sm:$0xff]
  %v56 = vld [vmem:[%s50 + $0x28] sm:$0xff]
  %v57 = vld [vmem:[%s50 + $0x30] sm:$0xff]
  %v58 = vld [vmem:[%s50 + $0x38] sm:$0xff]
  %v59 = vld [vmem:[%s50 + $0x40] sm:$0xff]
  %v60 = vld [vmem:[%s50 + $0x48] sm:$0xff]
  %v61 = vld [vmem:[%s50 + $0x50] sm:$0xff]
  %v62 = vld [vmem:[%s50 + $0x58] sm:$0xff]
  %v63 = vld [vmem:[%s50 + $0x60] sm:$0xff]
  %v64 = vld [vmem:[%s50 + $0x68] sm:$0xff]
  %v65 = vld [vmem:[%s50 + $0x70] sm:$0xff]
  %v66 = vld [vmem:[%s50 + $0x78] sm:$0xff]
  %v67 = vld [vmem:[%s50 + $0x80] sm:$0xff]
  %v68 = vld [vmem:[%s50 + $0x88] sm:$0xff]
  %v69 = vld [vmem:[%s50 + $0x90] sm:$0xff]
  %v70 = vld [vmem:[%s50 + $0x98] sm:$0xff]
  %v71 = vld [vmem:[%s50 + $0xa0] sm:$0xff]
  %v72 = vld [vmem:[%s50 + $0xa8] sm:$0xff]
  %v73 = vld [vmem:[%s50 + $0xb0] sm:$0xff]
  %v74 = vld [vmem:[%s50 + $0xb8] sm:$0xff]
  %v75 = vld [vmem:[%s50 + $0xc0] sm:$0xff]
  %v76 = vld [vmem:[%s50 + $0xc8] sm:$0xff]
  %v77 = vld [vmem:[%s50 + $0xd0] sm:$0xff]
  %v78 = vld [vmem:[%s50 + $0xd8] sm:$0xff]
  %v79 = vld [vmem:[%s50 + $0xe0] sm:$0xff]
  %v80 = vld [vmem:[%s50 + $0xe8] sm:$0xff]
  %v81 = vld [vmem:[%s50 + $0xf0] sm:$0xff]
  %v82 = vld [vmem:[%s50 + $0xf8] sm:$0xff]
  %vm83 = vcmask 130048
  %84 = vst.msk [vmem:[#allocation2] sm:$0xff] %vm83, 0.0
  %85 = vst.msk [vmem:[#allocation2 + $0x8] sm:$0xff] %vm83, 0.0
  %86 = vst.msk [vmem:[#allocation2 + $0x10] sm:$0xff] %vm83, 0.0
  %87 = vst.msk [vmem:[#allocation2 + $0x18] sm:$0xff] %vm83, 0.0
  %88 = vst.msk [vmem:[#allocation2 + $0x20] sm:$0xff] %vm83, 0.0
  %89 = vst.msk [vmem:[#allocation2 + $0x28] sm:$0xff] %vm83, 0.0
  %90 = vst.msk [vmem:[#allocation2 + $0x30] sm:$0xff] %vm83, 0.0
  %91 = vst.msk [vmem:[#allocation2 + $0x38] sm:$0xff] %vm83, 0.0
  %92 = vst.msk [vmem:[#allocation2 + $0x40] sm:$0xff] %vm83, 0.0
  %93 = vst.msk [vmem:[#allocation2 + $0x48] sm:$0xff] %vm83, 0.0
  %94 = vst.msk [vmem:[#allocation2 + $0x50] sm:$0xff] %vm83, 0.0
  %95 = vst.msk [vmem:[#allocation2 + $0x58] sm:$0xff] %vm83, 0.0
  %96 = vst.msk [vmem:[#allocation2 + $0x60] sm:$0xff] %vm83, 0.0
  %97 = vst.msk [vmem:[#allocation2 + $0x68] sm:$0xff] %vm83, 0.0
  %98 = vst.msk [vmem:[#allocation2 + $0x70] sm:$0xff] %vm83, 0.0
  %99 = vst.msk [vmem:[#allocation2 + $0x78] sm:$0xff] %vm83, 0.0
  %100 = vst.msk [vmem:[#allocation2 + $0x80] sm:$0xff] %vm83, 0.0
  %101 = vst.msk [vmem:[#allocation2 + $0x88] sm:$0xff] %vm83, 0.0
  %102 = vst.msk [vmem:[#allocation2 + $0x90] sm:$0xff] %vm83, 0.0
  %103 = vst.msk [vmem:[#allocation2 + $0x98] sm:$0xff] %vm83, 0.0
  %104 = vst.msk [vmem:[#allocation2 + $0xa0] sm:$0xff] %vm83, 0.0
  %105 = vst.msk [vmem:[#allocation2 + $0xa8] sm:$0xff] %vm83, 0.0
  %106 = vst.msk [vmem:[#allocation2 + $0xb0] sm:$0xff] %vm83, 0.0
  %107 = vst.msk [vmem:[#allocation2 + $0xb8] sm:$0xff] %vm83, 0.0
  %108 = vst.msk [vmem:[#allocation2 + $0xc0] sm:$0xff] %vm83, 0.0
  %109 = vst.msk [vmem:[#allocation2 + $0xc8] sm:$0xff] %vm83, 0.0
  %110 = vst.msk [vmem:[#allocation2 + $0xd0] sm:$0xff] %vm83, 0.0
  %111 = vst.msk [vmem:[#allocation2 + $0xd8] sm:$0xff] %vm83, 0.0
  %112 = vst.msk [vmem:[#allocation2 + $0xe0] sm:$0xff] %vm83, 0.0
  %113 = vst.msk [vmem:[#allocation2 + $0xe8] sm:$0xff] %vm83, 0.0
  %114 = vst.msk [vmem:[#allocation2 + $0xf0] sm:$0xff] %vm83, 0.0
  %115 = vst.msk [vmem:[#allocation2 + $0xf8] sm:$0xff] %vm83, 0.0
  %vm116 = vcmask 129024
  %117 = vst.msk [vmem:[#allocation2 + $0x100] sm:$0x7f] %vm116, 0.0
  %118 = vst.msk [vmem:[#allocation2 + $0x108] sm:$0xff] %vm83, 0.0
  %119 = vst.msk [vmem:[#allocation2 + $0x110] sm:$0xff] %vm83, 0.0
  %120 = vst.msk [vmem:[#allocation2 + $0x118] sm:$0xff] %vm83, 0.0
  %121 = vst.msk [vmem:[#allocation2 + $0x120] sm:$0xff] %vm83, 0.0
  %122 = vst.msk [vmem:[#allocation2 + $0x128] sm:$0xff] %vm83, 0.0
  %123 = vst.msk [vmem:[#allocation2 + $0x130] sm:$0xff] %vm83, 0.0
  %124 = vst.msk [vmem:[#allocation2 + $0x138] sm:$0xff] %vm83, 0.0
  %125 = vst.msk [vmem:[#allocation2 + $0x140] sm:$0xff] %vm83, 0.0
  %126 = vst.msk [vmem:[#allocation2 + $0x148] sm:$0xff] %vm83, 0.0
  %127 = vst.msk [vmem:[#allocation2 + $0x150] sm:$0xff] %vm83, 0.0
  %128 = vst.msk [vmem:[#allocation2 + $0x158] sm:$0xff] %vm83, 0.0
  %129 = vst.msk [vmem:[#allocation2 + $0x160] sm:$0xff] %vm83, 0.0
  %130 = vst.msk [vmem:[#allocation2 + $0x168] sm:$0xff] %vm83, 0.0
  %131 = vst.msk [vmem:[#allocation2 + $0x170] sm:$0xff] %vm83, 0.0
  %132 = vst.msk [vmem:[#allocation2 + $0x178] sm:$0xff] %vm83, 0.0
  %133 = vst.msk [vmem:[#allocation2 + $0x180] sm:$0xff] %vm83, 0.0
  %134 = vst.msk [vmem:[#allocation2 + $0x188] sm:$0xff] %vm83, 0.0
  %135 = vst.msk [vmem:[#allocation2 + $0x190] sm:$0xff] %vm83, 0.0
  %136 = vst.msk [vmem:[#allocation2 + $0x198] sm:$0xff] %vm83, 0.0
  %137 = vst.msk [vmem:[#allocation2 + $0x1a0] sm:$0xff] %vm83, 0.0
  %138 = vst.msk [vmem:[#allocation2 + $0x1a8] sm:$0xff] %vm83, 0.0
  %139 = vst.msk [vmem:[#allocation2 + $0x1b0] sm:$0xff] %vm83, 0.0
  %140 = vst.msk [vmem:[#allocation2 + $0x1b8] sm:$0xff] %vm83, 0.0
  %141 = vst.msk [vmem:[#allocation2 + $0x1c0] sm:$0xff] %vm83, 0.0
  %142 = vst.msk [vmem:[#allocation2 + $0x1c8] sm:$0xff] %vm83, 0.0
  %143 = vst.msk [vmem:[#allocation2 + $0x1d0] sm:$0xff] %vm83, 0.0
  %144 = vst.msk [vmem:[#allocation2 + $0x1d8] sm:$0xff] %vm83, 0.0
  %145 = vst.msk [vmem:[#allocation2 + $0x1e0] sm:$0xff] %vm83, 0.0
  %146 = vst.msk [vmem:[#allocation2 + $0x1e8] sm:$0xff] %vm83, 0.0
  %147 = vst.msk [vmem:[#allocation2 + $0x1f0] sm:$0xff] %vm83, 0.0
  %148 = vst.msk [vmem:[#allocation2 + $0x1f8] sm:$0xff] %vm83, 0.0
  %149 = vst.msk [vmem:[#allocation2 + $0x200] sm:$0xff] %vm83, 0.0
  %150 = vst.msk [vmem:[#allocation2 + $0x208] sm:$0x7f] %vm116, 0.0
  %151 = vst.msk [vmem:[#allocation2 + $0x4] sm:$0xff] %vm83, %v18
  %152 = vst.msk [vmem:[#allocation2 + $0xc] sm:$0xff] %vm83, %v19
  %153 = vst.msk [vmem:[#allocation2 + $0x14] sm:$0xff] %vm83, %v20
  %154 = vst.msk [vmem:[#allocation2 + $0x1c] sm:$0xff] %vm83, %v21
  %155 = vst.msk [vmem:[#allocation2 + $0x24] sm:$0xff] %vm83, %v22
  %156 = vst.msk [vmem:[#allocation2 + $0x2c] sm:$0xff] %vm83, %v23
  %157 = vst.msk [vmem:[#allocation2 + $0x34] sm:$0xff] %vm83, %v24
  %158 = vst.msk [vmem:[#allocation2 + $0x3c] sm:$0xff] %vm83, %v25
  %159 = vst.msk [vmem:[#allocation2 + $0x44] sm:$0xff] %vm83, %v26
  %160 = vst.msk [vmem:[#allocation2 + $0x4c] sm:$0xff] %vm83, %v27
  %161 = vst.msk [vmem:[#allocation2 + $0x54] sm:$0xff] %vm83, %v28
  %162 = vst.msk [vmem:[#allocation2 + $0x5c] sm:$0xff] %vm83, %v29
  %163 = vst.msk [vmem:[#allocation2 + $0x64] sm:$0xff] %vm83, %v30
  %164 = vst.msk [vmem:[#allocation2 + $0x6c] sm:$0xff] %vm83, %v31
  %165 = vst.msk [vmem:[#allocation2 + $0x74] sm:$0xff] %vm83, %v32
  %166 = vst.msk [vmem:[#allocation2 + $0x7c] sm:$0xff] %vm83, %v33
  %167 = vst.msk [vmem:[#allocation2 + $0x84] sm:$0xff] %vm83, %v34
  %168 = vst.msk [vmem:[#allocation2 + $0x8c] sm:$0xff] %vm83, %v35
  %169 = vst.msk [vmem:[#allocation2 + $0x94] sm:$0xff] %vm83, %v36
  %170 = vst.msk [vmem:[#allocation2 + $0x9c] sm:$0xff] %vm83, %v37
  %171 = vst.msk [vmem:[#allocation2 + $0xa4] sm:$0xff] %vm83, %v38
  %172 = vst.msk [vmem:[#allocation2 + $0xac] sm:$0xff] %vm83, %v39
  %173 = vst.msk [vmem:[#allocation2 + $0xb4] sm:$0xff] %vm83, %v40
  %174 = vst.msk [vmem:[#allocation2 + $0xbc] sm:$0xff] %vm83, %v41
  %175 = vst.msk [vmem:[#allocation2 + $0xc4] sm:$0xff] %vm83, %v42
  %176 = vst.msk [vmem:[#allocation2 + $0xcc] sm:$0xff] %vm83, %v43
  %177 = vst.msk [vmem:[#allocation2 + $0xd4] sm:$0xff] %vm83, %v44
  %178 = vst.msk [vmem:[#allocation2 + $0xdc] sm:$0xff] %vm83, %v45
  %179 = vst.msk [vmem:[#allocation2 + $0xe4] sm:$0xff] %vm83, %v46
  %180 = vst.msk [vmem:[#allocation2 + $0xec] sm:$0xff] %vm83, %v47
  %181 = vst.msk [vmem:[#allocation2 + $0xf4] sm:$0xff] %vm83, %v48
  %182 = vst.msk [vmem:[#allocation2 + $0xfc] sm:$0xff] %vm83, %v49
  %s183 = scalar_lea.vmem [#allocation2], 264
  %184 = vst.msk [vmem:[%s183 + $0x4] sm:$0xff] %vm83, %v51
  %185 = vst.msk [vmem:[%s183 + $0xc] sm:$0xff] %vm83, %v52
  %186 = vst.msk [vmem:[%s183 + $0x14] sm:$0xff] %vm83, %v53
  %187 = vst.msk [vmem:[%s183 + $0x1c] sm:$0xff] %vm83, %v54
  %188 = vst.msk [vmem:[%s183 + $0x24] sm:$0xff] %vm83, %v55
  %189 = vst.msk [vmem:[%s183 + $0x2c] sm:$0xff] %vm83, %v56
  %190 = vst.msk [vmem:[%s183 + $0x34] sm:$0xff] %vm83, %v57
  %191 = vst.msk [vmem:[%s183 + $0x3c] sm:$0xff] %vm83, %v58
  %192 = vst.msk [vmem:[%s183 + $0x44] sm:$0xff] %vm83, %v59
  %193 = vst.msk [vmem:[%s183 + $0x4c] sm:$0xff] %vm83, %v60
  %194 = vst.msk [vmem:[%s183 + $0x54] sm:$0xff] %vm83, %v61
  %195 = vst.msk [vmem:[%s183 + $0x5c] sm:$0xff] %vm83, %v62
  %196 = vst.msk [vmem:[%s183 + $0x64] sm:$0xff] %vm83, %v63
  %197 = vst.msk [vmem:[%s183 + $0x6c] sm:$0xff] %vm83, %v64
  %198 = vst.msk [vmem:[%s183 + $0x74] sm:$0xff] %vm83, %v65
  %199 = vst.msk [vmem:[%s183 + $0x7c] sm:$0xff] %vm83, %v66
  %200 = vst.msk [vmem:[%s183 + $0x84] sm:$0xff] %vm83, %v67
  %201 = vst.msk [vmem:[%s183 + $0x8c] sm:$0xff] %vm83, %v68
  %202 = vst.msk [vmem:[%s183 + $0x94] sm:$0xff] %vm83, %v69
  %203 = vst.msk [vmem:[%s183 + $0x9c] sm:$0xff] %vm83, %v70
  %204 = vst.msk [vmem:[%s183 + $0xa4] sm:$0xff] %vm83, %v71
  %205 = vst.msk [vmem:[%s183 + $0xac] sm:$0xff] %vm83, %v72
  %206 = vst.msk [vmem:[%s183 + $0xb4] sm:$0xff] %vm83, %v73
  %207 = vst.msk [vmem:[%s183 + $0xbc] sm:$0xff] %vm83, %v74
  %208 = vst.msk [vmem:[%s183 + $0xc4] sm:$0xff] %vm83, %v75
  %209 = vst.msk [vmem:[%s183 + $0xcc] sm:$0xff] %vm83, %v76
  %210 = vst.msk [vmem:[%s183 + $0xd4] sm:$0xff] %vm83, %v77
  %211 = vst.msk [vmem:[%s183 + $0xdc] sm:$0xff] %vm83, %v78
  %212 = vst.msk [vmem:[%s183 + $0xe4] sm:$0xff] %vm83, %v79
  %213 = vst.msk [vmem:[%s183 + $0xec] sm:$0xff] %vm83, %v80
  %214 = vst.msk [vmem:[%s183 + $0xf4] sm:$0xff] %vm83, %v81
  %215 = vst.msk [vmem:[%s183 + $0xfc] sm:$0xff] %vm83, %v82
  %v216 = vld [vmem:[#allocation2] sm:$0xff]
  %v217 = vld [vmem:[#allocation2 + $0x8] sm:$0xff]
  %v218 = vld [vmem:[#allocation2 + $0x10] sm:$0xff]
  %v219 = vld [vmem:[#allocation2 + $0x18] sm:$0xff]
  %v220 = vld [vmem:[#allocation2 + $0x20] sm:$0xff]
  %v221 = vld [vmem:[#allocation2 + $0x28] sm:$0xff]
  %v222 = vld [vmem:[#allocation2 + $0x30] sm:$0xff]
  %v223 = vld [vmem:[#allocation2 + $0x38] sm:$0xff]
  %v224 = vld [vmem:[#allocation2 + $0x40] sm:$0xff]
  %v225 = vld [vmem:[#allocation2 + $0x48] sm:$0xff]
  %v226 = vld [vmem:[#allocation2 + $0x50] sm:$0xff]
  %v227 = vld [vmem:[#allocation2 + $0x58] sm:$0xff]
  %v228 = vld [vmem:[#allocation2 + $0x60] sm:$0xff]
  %v229 = vld [vmem:[#allocation2 + $0x68] sm:$0xff]
  %v230 = vld [vmem:[#allocation2 + $0x70] sm:$0xff]
  %v231 = vld [vmem:[#allocation2 + $0x78] sm:$0xff]
  %v232 = vld [vmem:[#allocation2 + $0x80] sm:$0xff]
  %v233 = vld [vmem:[#allocation2 + $0x88] sm:$0xff]
  %v234 = vld [vmem:[#allocation2 + $0x90] sm:$0xff]
  %v235 = vld [vmem:[#allocation2 + $0x98] sm:$0xff]
  %v236 = vld [vmem:[#allocation2 + $0xa0] sm:$0xff]
  %v237 = vld [vmem:[#allocation2 + $0xa8] sm:$0xff]
  %v238 = vld [vmem:[#allocation2 + $0xb0] sm:$0xff]
  %v239 = vld [vmem:[#allocation2 + $0xb8] sm:$0xff]
  %v240 = vld [vmem:[#allocation2 + $0xc0] sm:$0xff]
  %v241 = vld [vmem:[#allocation2 + $0xc8] sm:$0xff]
  %v242 = vld [vmem:[#allocation2 + $0xd0] sm:$0xff]
  %v243 = vld [vmem:[#allocation2 + $0xd8] sm:$0xff]
  %v244 = vld [vmem:[#allocation2 + $0xe0] sm:$0xff]
  %v245 = vld [vmem:[#allocation2 + $0xe8] sm:$0xff]
  %v246 = vld [vmem:[#allocation2 + $0xf0] sm:$0xff]
  %v247 = vld [vmem:[#allocation2 + $0xf8] sm:$0xff]
  %v248 = vpack.c.bf16 %v217, %v216
  %v249 = vpack.c.bf16 %v219, %v218
  %v250 = vpack.c.bf16 %v221, %v220
  %v251 = vpack.c.bf16 %v223, %v222
  %v252 = vpack.c.bf16 %v225, %v224
  %v253 = vpack.c.bf16 %v227, %v226
  %v254 = vpack.c.bf16 %v229, %v228
  %v255 = vpack.c.bf16 %v231, %v230
  %v256 = vpack.c.bf16 %v233, %v232
  %v257 = vpack.c.bf16 %v235, %v234
  %v258 = vpack.c.bf16 %v237, %v236
  %v259 = vpack.c.bf16 %v239, %v238
  %v260 = vpack.c.bf16 %v241, %v240
  %v261 = vpack.c.bf16 %v243, %v242
  %v262 = vpack.c.bf16 %v245, %v244
  %v263 = vpack.c.bf16 %v247, %v246
  %v264 = vld [vmem:[%s1] sm:$0xf]
  %v265 = vld [vmem:[%s1 + $0x4] sm:$0xf]
  %v266 = vld [vmem:[#allocation2 + $0x1] sm:$0xff]
  %v267 = vld [vmem:[#allocation2 + $0x9] sm:$0xff]
  %v268 = vld [vmem:[#allocation2 + $0x11] sm:$0xff]
  %v269 = vld [vmem:[#allocation2 + $0x19] sm:$0xff]
  %v270 = vld [vmem:[#allocation2 + $0x21] sm:$0xff]
  %v271 = vld [vmem:[#allocation2 + $0x29] sm:$0xff]
  %v272 = vld [vmem:[#allocation2 + $0x31] sm:$0xff]
  %v273 = vld [vmem:[#allocation2 + $0x39] sm:$0xff]
  %v274 = vld [vmem:[#allocation2 + $0x41] sm:$0xff]
  %v275 = vld [vmem:[#allocation2 + $0x49] sm:$0xff]
  %v276 = vld [vmem:[#allocation2 + $0x51] sm:$0xff]
  %v277 = vld [vmem:[#allocation2 + $0x59] sm:$0xff]
  %v278 = vld [vmem:[#allocation2 + $0x61] sm:$0xff]
  %v279 = vld [vmem:[#allocation2 + $0x69] sm:$0xff]
  %v280 = vld [vmem:[#allocation2 + $0x71] sm:$0xff]
  %v281 = vld [vmem:[#allocation2 + $0x79] sm:$0xff]
  %v282 = vld [vmem:[#allocation2 + $0x81] sm:$0xff]
  %v283 = vld [vmem:[#allocation2 + $0x89] sm:$0xff]
  %v284 = vld [vmem:[#allocation2 + $0x91] sm:$0xff]
  %v285 = vld [vmem:[#allocation2 + $0x99] sm:$0xff]
  %v286 = vld [vmem:[#allocation2 + $0xa1] sm:$0xff]
  %v287 = vld [vmem:[#allocation2 + $0xa9] sm:$0xff]
  %v288 = vld [vmem:[#allocation2 + $0xb1] sm:$0xff]
  %v289 = vld [vmem:[#allocation2 + $0xb9] sm:$0xff]
  %v290 = vld [vmem:[#allocation2 + $0xc1] sm:$0xff]
  %v291 = vld [vmem:[#allocation2 + $0xc9] sm:$0xff]
  %v292 = vld [vmem:[#allocation2 + $0xd1] sm:$0xff]
  %v293 = vld [vmem:[#allocation2 + $0xd9] sm:$0xff]
  %v294 = vld [vmem:[#allocation2 + $0xe1] sm:$0xff]
  %v295 = vld [vmem:[#allocation2 + $0xe9] sm:$0xff]
  %v296 = vld [vmem:[#allocation2 + $0xf1] sm:$0xff]
  %v297 = vld [vmem:[#allocation2 + $0xf9] sm:$0xff]
  %v298 = vpack.c.bf16 %v267, %v266
  %v299 = vpack.c.bf16 %v269, %v268
  %v300 = vpack.c.bf16 %v271, %v270
  %v301 = vpack.c.bf16 %v273, %v272
  %v302 = vpack.c.bf16 %v275, %v274
  %v303 = vpack.c.bf16 %v277, %v276
  %v304 = vpack.c.bf16 %v279, %v278
  %v305 = vpack.c.bf16 %v281, %v280
  %v306 = vpack.c.bf16 %v283, %v282
  %v307 = vpack.c.bf16 %v285, %v284
  %v308 = vpack.c.bf16 %v287, %v286
  %v309 = vpack.c.bf16 %v289, %v288
  %v310 = vpack.c.bf16 %v291, %v290
  %v311 = vpack.c.bf16 %v293, %v292
  %v312 = vpack.c.bf16 %v295, %v294
  %v313 = vpack.c.bf16 %v297, %v296
  %s314 = scalar_lea.vmem %s1, 8
  %v315 = vld [vmem:[%s314] sm:$0xf]
  %v316 = vld [vmem:[%s314 + $0x4] sm:$0xf]
  %v319 = vunpack.c.l.b16 %v315
  %v320 = vunpack.c.l.b16 %v316
  %v321 = vpack.c.b16 %v320, %v319
  %v324 = vsel %vm83, %v298, 0
  %v327 = vsel %vm83, %v299, 0
  %v330 = vsel %vm83, %v300, 0
  %v333 = vsel %vm83, %v301, 0
  %v336 = vsel %vm83, %v302, 0
  %v339 = vsel %vm83, %v303, 0
  %v342 = vsel %vm83, %v304, 0
  %v345 = vsel %vm83, %v305, 0
  %v348 = vsel %vm83, %v306, 0
  %v351 = vsel %vm83, %v307, 0
  %v354 = vsel %vm83, %v308, 0
  %v357 = vsel %vm83, %v309, 0
  %v360 = vsel %vm83, %v310, 0
  %v363 = vsel %vm83, %v311, 0
  %v366 = vsel %vm83, %v312, 0
  %v369 = vsel %vm83, %v313, 0
  %371 = vmatpush.bf16.msra.mxu0 0
  %372 = vmatpush.bf16.msra.mxu0 0
  %373 = vmatpush.bf16.msra.mxu0 0
  %374 = vmatpush.bf16.msra.mxu0 0
  %375 = vmatpush.bf16.msra.mxu0 0
  %376 = vmatpush.bf16.msra.mxu0 0
  %377 = vmatpush.bf16.msra.mxu0 0
  %378 = vmatpush.bf16.msra.mxu0 %v321
  %379 = vmatmul.bf16.gmra.mxu0 %v324
  %v380 = vpop.f32.mrf.mxu0
  %v381 = vadd.f32 0.0, %v380
  %v382 = vpop.f32.mrf.mxu0
  %v383 = vadd.f32 0.0, %v382
  %384 = vmatmul.bf16.gmra.mxu0 %v327
  %v385 = vpop.f32.mrf.mxu0
  %v386 = vadd.f32 0.0, %v385
  %v387 = vpop.f32.mrf.mxu0
  %v388 = vadd.f32 0.0, %v387
  %389 = vmatmul.bf16.gmra.mxu0 %v330
  %v390 = vpop.f32.mrf.mxu0
  %v391 = vadd.f32 0.0, %v390
  %v392 = vpop.f32.mrf.mxu0
  %v393 = vadd.f32 0.0, %v392
  %394 = vmatmul.bf16.gmra.mxu0 %v333
  %v395 = vpop.f32.mrf.mxu0
  %v396 = vadd.f32 0.0, %v395
  %v397 = vpop.f32.mrf.mxu0
  %v398 = vadd.f32 0.0, %v397
  %399 = vmatmul.bf16.gmra.mxu0 %v336
  %v400 = vpop.f32.mrf.mxu0
  %v401 = vadd.f32 0.0, %v400
  %v402 = vpop.f32.mrf.mxu0
  %v403 = vadd.f32 0.0, %v402
  %404 = vmatmul.bf16.gmra.mxu0 %v339
  %v405 = vpop.f32.mrf.mxu0
  %v406 = vadd.f32 0.0, %v405
  %v407 = vpop.f32.mrf.mxu0
  %v408 = vadd.f32 0.0, %v407
  %409 = vmatmul.bf16.gmra.mxu0 %v342
  %v410 = vpop.f32.mrf.mxu0
  %v411 = vadd.f32 0.0, %v410
  %v412 = vpop.f32.mrf.mxu0
  %v413 = vadd.f32 0.0, %v412
  %414 = vmatmul.bf16.gmra.mxu0 %v345
  %v415 = vpop.f32.mrf.mxu0
  %v416 = vadd.f32 0.0, %v415
  %v417 = vpop.f32.mrf.mxu0
  %v418 = vadd.f32 0.0, %v417
  %419 = vmatmul.bf16.gmra.mxu0 %v348
  %v420 = vpop.f32.mrf.mxu0
  %v421 = vadd.f32 0.0, %v420
  %v422 = vpop.f32.mrf.mxu0
  %v423 = vadd.f32 0.0, %v422
  %424 = vmatmul.bf16.gmra.mxu0 %v351
  %v425 = vpop.f32.mrf.mxu0
  %v426 = vadd.f32 0.0, %v425
  %v427 = vpop.f32.mrf.mxu0
  %v428 = vadd.f32 0.0, %v427
  %429 = vmatmul.bf16.gmra.mxu0 %v354
  %v430 = vpop.f32.mrf.mxu0
  %v431 = vadd.f32 0.0, %v430
  %v432 = vpop.f32.mrf.mxu0
  %v433 = vadd.f32 0.0, %v432
  %434 = vmatmul.bf16.gmra.mxu0 %v357
  %v435 = vpop.f32.mrf.mxu0
  %v436 = vadd.f32 0.0, %v435
  %v437 = vpop.f32.mrf.mxu0
  %v438 = vadd.f32 0.0, %v437
  %439 = vmatmul.bf16.gmra.mxu0 %v360
  %v440 = vpop.f32.mrf.mxu0
  %v441 = vadd.f32 0.0, %v440
  %v442 = vpop.f32.mrf.mxu0
  %v443 = vadd.f32 0.0, %v442
  %444 = vmatmul.bf16.gmra.mxu0 %v363
  %v445 = vpop.f32.mrf.mxu0
  %v446 = vadd.f32 0.0, %v445
  %v447 = vpop.f32.mrf.mxu0
  %v448 = vadd.f32 0.0, %v447
  %449 = vmatmul.bf16.gmra.mxu0 %v366
  %v450 = vpop.f32.mrf.mxu0
  %v451 = vadd.f32 0.0, %v450
  %v452 = vpop.f32.mrf.mxu0
  %v453 = vadd.f32 0.0, %v452
  %454 = vmatmul.bf16.gmra.mxu0 %v369
  %v455 = vpop.f32.mrf.mxu0
  %v456 = vadd.f32 0.0, %v455
  %v457 = vpop.f32.mrf.mxu0
  %v458 = vadd.f32 0.0, %v457
  %459 = vdwg.mxu0
  %v462 = vunpack.c.l.b16 %v264
  %v463 = vunpack.c.l.b16 %v265
  %v464 = vpack.c.b16 %v463, %v462
  %v467 = vsel %vm83, %v248, 0
  %v470 = vsel %vm83, %v249, 0
  %v473 = vsel %vm83, %v250, 0
  %v476 = vsel %vm83, %v251, 0
  %v479 = vsel %vm83, %v252, 0
  %v482 = vsel %vm83, %v253, 0
  %v485 = vsel %vm83, %v254, 0
  %v488 = vsel %vm83, %v255, 0
  %v491 = vsel %vm83, %v256, 0
  %v494 = vsel %vm83, %v257, 0
  %v497 = vsel %vm83, %v258, 0
  %v500 = vsel %vm83, %v259, 0
  %v503 = vsel %vm83, %v260, 0
  %v506 = vsel %vm83, %v261, 0
  %v509 = vsel %vm83, %v262, 0
  %v512 = vsel %vm83, %v263, 0
  %514 = vmatpush.bf16.msra.mxu0 0
  %515 = vmatpush.bf16.msra.mxu0 0
  %516 = vmatpush.bf16.msra.mxu0 0
  %517 = vmatpush.bf16.msra.mxu0 0
  %518 = vmatpush.bf16.msra.mxu0 0
  %519 = vmatpush.bf16.msra.mxu0 0
  %520 = vmatpush.bf16.msra.mxu0 0
  %521 = vmatpush.bf16.msra.mxu0 %v464
  %522 = vmatmul.bf16.gmra.mxu0 %v467
  %v523 = vpop.f32.mrf.mxu0
  %v524 = vadd.f32 %v381, %v523
  %v525 = vpop.f32.mrf.mxu0
  %v526 = vadd.f32 %v383, %v525
  %527 = vmatmul.bf16.gmra.mxu0 %v470
  %v528 = vpop.f32.mrf.mxu0
  %v529 = vadd.f32 %v386, %v528
  %v530 = vpop.f32.mrf.mxu0
  %v531 = vadd.f32 %v388, %v530
  %532 = vmatmul.bf16.gmra.mxu0 %v473
  %v533 = vpop.f32.mrf.mxu0
  %v534 = vadd.f32 %v391, %v533
  %v535 = vpop.f32.mrf.mxu0
  %v536 = vadd.f32 %v393, %v535
  %537 = vmatmul.bf16.gmra.mxu0 %v476
  %v538 = vpop.f32.mrf.mxu0
  %v539 = vadd.f32 %v396, %v538
  %v540 = vpop.f32.mrf.mxu0
  %v541 = vadd.f32 %v398, %v540
  %542 = vmatmul.bf16.gmra.mxu0 %v479
  %v543 = vpop.f32.mrf.mxu0
  %v544 = vadd.f32 %v401, %v543
  %v545 = vpop.f32.mrf.mxu0
  %v546 = vadd.f32 %v403, %v545
  %547 = vmatmul.bf16.gmra.mxu0 %v482
  %v548 = vpop.f32.mrf.mxu0
  %v549 = vadd.f32 %v406, %v548
  %v550 = vpop.f32.mrf.mxu0
  %v551 = vadd.f32 %v408, %v550
  %552 = vmatmul.bf16.gmra.mxu0 %v485
  %v553 = vpop.f32.mrf.mxu0
  %v554 = vadd.f32 %v411, %v553
  %v555 = vpop.f32.mrf.mxu0
  %v556 = vadd.f32 %v413, %v555
  %557 = vmatmul.bf16.gmra.mxu0 %v488
  %v558 = vpop.f32.mrf.mxu0
  %v559 = vadd.f32 %v416, %v558
  %v560 = vpop.f32.mrf.mxu0
  %v561 = vadd.f32 %v418, %v560
  %562 = vmatmul.bf16.gmra.mxu0 %v491
  %v563 = vpop.f32.mrf.mxu0
  %v564 = vadd.f32 %v421, %v563
  %v565 = vpop.f32.mrf.mxu0
  %v566 = vadd.f32 %v423, %v565
  %567 = vmatmul.bf16.gmra.mxu0 %v494
  %v568 = vpop.f32.mrf.mxu0
  %v569 = vadd.f32 %v426, %v568
  %v570 = vpop.f32.mrf.mxu0
  %v571 = vadd.f32 %v428, %v570
  %572 = vmatmul.bf16.gmra.mxu0 %v497
  %v573 = vpop.f32.mrf.mxu0
  %v574 = vadd.f32 %v431, %v573
  %v575 = vpop.f32.mrf.mxu0
  %v576 = vadd.f32 %v433, %v575
  %577 = vmatmul.bf16.gmra.mxu0 %v500
  %v578 = vpop.f32.mrf.mxu0
  %v579 = vadd.f32 %v436, %v578
  %v580 = vpop.f32.mrf.mxu0
  %v581 = vadd.f32 %v438, %v580
  %582 = vmatmul.bf16.gmra.mxu0 %v503
  %v583 = vpop.f32.mrf.mxu0
  %v584 = vadd.f32 %v441, %v583
  %v585 = vpop.f32.mrf.mxu0
  %v586 = vadd.f32 %v443, %v585
  %587 = vmatmul.bf16.gmra.mxu0 %v506
  %v588 = vpop.f32.mrf.mxu0
  %v589 = vadd.f32 %v446, %v588
  %v590 = vpop.f32.mrf.mxu0
  %v591 = vadd.f32 %v448, %v590
  %592 = vmatmul.bf16.gmra.mxu0 %v509
  %v593 = vpop.f32.mrf.mxu0
  %v594 = vadd.f32 %v451, %v593
  %v595 = vpop.f32.mrf.mxu0
  %v596 = vadd.f32 %v453, %v595
  %597 = vmatmul.bf16.gmra.mxu0 %v512
  %v598 = vpop.f32.mrf.mxu0
  %v599 = vadd.f32 %v456, %v598
  %v600 = vpop.f32.mrf.mxu0
  %v601 = vadd.f32 %v458, %v600
  %602 = vdwg.mxu0
  %v603 = vld [vmem:[#allocation2 + $0x2] sm:$0xff]
  %v604 = vld [vmem:[#allocation2 + $0xa] sm:$0xff]
  %v605 = vld [vmem:[#allocation2 + $0x12] sm:$0xff]
  %v606 = vld [vmem:[#allocation2 + $0x1a] sm:$0xff]
  %v607 = vld [vmem:[#allocation2 + $0x22] sm:$0xff]
  %v608 = vld [vmem:[#allocation2 + $0x2a] sm:$0xff]
  %v609 = vld [vmem:[#allocation2 + $0x32] sm:$0xff]
  %v610 = vld [vmem:[#allocation2 + $0x3a] sm:$0xff]
  %v611 = vld [vmem:[#allocation2 + $0x42] sm:$0xff]
  %v612 = vld [vmem:[#allocation2 + $0x4a] sm:$0xff]
  %v613 = vld [vmem:[#allocation2 + $0x52] sm:$0xff]
  %v614 = vld [vmem:[#allocation2 + $0x5a] sm:$0xff]
  %v615 = vld [vmem:[#allocation2 + $0x62] sm:$0xff]
  %v616 = vld [vmem:[#allocation2 + $0x6a] sm:$0xff]
  %v617 = vld [vmem:[#allocation2 + $0x72] sm:$0xff]
  %v618 = vld [vmem:[#allocation2 + $0x7a] sm:$0xff]
  %v619 = vld [vmem:[#allocation2 + $0x82] sm:$0xff]
  %v620 = vld [vmem:[#allocation2 + $0x8a] sm:$0xff]
  %v621 = vld [vmem:[#allocation2 + $0x92] sm:$0xff]
  %v622 = vld [vmem:[#allocation2 + $0x9a] sm:$0xff]
  %v623 = vld [vmem:[#allocation2 + $0xa2] sm:$0xff]
  %v624 = vld [vmem:[#allocation2 + $0xaa] sm:$0xff]
  %v625 = vld [vmem:[#allocation2 + $0xb2] sm:$0xff]
  %v626 = vld [vmem:[#allocation2 + $0xba] sm:$0xff]
  %v627 = vld [vmem:[#allocation2 + $0xc2] sm:$0xff]
  %v628 = vld [vmem:[#allocation2 + $0xca] sm:$0xff]
  %v629 = vld [vmem:[#allocation2 + $0xd2] sm:$0xff]
  %v630 = vld [vmem:[#allocation2 + $0xda] sm:$0xff]
  %v631 = vld [vmem:[#allocation2 + $0xe2] sm:$0xff]
  %v632 = vld [vmem:[#allocation2 + $0xea] sm:$0xff]
  %v633 = vld [vmem:[#allocation2 + $0xf2] sm:$0xff]
  %v634 = vld [vmem:[#allocation2 + $0xfa] sm:$0xff]
  %v635 = vpack.c.bf16 %v604, %v603
  %v636 = vpack.c.bf16 %v606, %v605
  %v637 = vpack.c.bf16 %v608, %v607
  %v638 = vpack.c.bf16 %v610, %v609
  %v639 = vpack.c.bf16 %v612, %v611
  %v640 = vpack.c.bf16 %v614, %v613
  %v641 = vpack.c.bf16 %v616, %v615
  %v642 = vpack.c.bf16 %v618, %v617
  %v643 = vpack.c.bf16 %v620, %v619
  %v644 = vpack.c.bf16 %v622, %v621
  %v645 = vpack.c.bf16 %v624, %v623
  %v646 = vpack.c.bf16 %v626, %v625
  %v647 = vpack.c.bf16 %v628, %v627
  %v648 = vpack.c.bf16 %v630, %v629
  %v649 = vpack.c.bf16 %v632, %v631
  %v650 = vpack.c.bf16 %v634, %v633
  %s651 = scalar_lea.vmem %s1, 16
  %v652 = vld [vmem:[%s651] sm:$0xf]
  %v653 = vld [vmem:[%s651 + $0x4] sm:$0xf]
  %v656 = vunpack.c.l.b16 %v652
  %v657 = vunpack.c.l.b16 %v653
  %v658 = vpack.c.b16 %v657, %v656
  %v661 = vsel %vm83, %v635, 0
  %v664 = vsel %vm83, %v636, 0
  %v667 = vsel %vm83, %v637, 0
  %v670 = vsel %vm83, %v638, 0
  %v673 = vsel %vm83, %v639, 0
  %v676 = vsel %vm83, %v640, 0
  %v679 = vsel %vm83, %v641, 0
  %v682 = vsel %vm83, %v642, 0
  %v685 = vsel %vm83, %v643, 0
  %v688 = vsel %vm83, %v644, 0
  %v691 = vsel %vm83, %v645, 0
  %v694 = vsel %vm83, %v646, 0
  %v697 = vsel %vm83, %v647, 0
  %v700 = vsel %vm83, %v648, 0
  %v703 = vsel %vm83, %v649, 0
  %v706 = vsel %vm83, %v650, 0
  %708 = vmatpush.bf16.msra.mxu0 0
  %709 = vmatpush.bf16.msra.mxu0 0
  %710 = vmatpush.bf16.msra.mxu0 0
  %711 = vmatpush.bf16.msra.mxu0 0
  %712 = vmatpush.bf16.msra.mxu0 0
  %713 = vmatpush.bf16.msra.mxu0 0
  %714 = vmatpush.bf16.msra.mxu0 0
  %715 = vmatpush.bf16.msra.mxu0 %v658
  %716 = vmatmul.bf16.gmra.mxu0 %v661
  %v717 = vpop.f32.mrf.mxu0
  %v718 = vadd.f32 0.0, %v717
  %v719 = vpop.f32.mrf.mxu0
  %v720 = vadd.f32 0.0, %v719
  %721 = vmatmul.bf16.gmra.mxu0 %v664
  %v722 = vpop.f32.mrf.mxu0
  %v723 = vadd.f32 0.0, %v722
  %v724 = vpop.f32.mrf.mxu0
  %v725 = vadd.f32 0.0, %v724
  %726 = vmatmul.bf16.gmra.mxu0 %v667
  %v727 = vpop.f32.mrf.mxu0
  %v728 = vadd.f32 0.0, %v727
  %v729 = vpop.f32.mrf.mxu0
  %v730 = vadd.f32 0.0, %v729
  %731 = vmatmul.bf16.gmra.mxu0 %v670
  %v732 = vpop.f32.mrf.mxu0
  %v733 = vadd.f32 0.0, %v732
  %v734 = vpop.f32.mrf.mxu0
  %v735 = vadd.f32 0.0, %v734
  %736 = vmatmul.bf16.gmra.mxu0 %v673
  %v737 = vpop.f32.mrf.mxu0
  %v738 = vadd.f32 0.0, %v737
  %v739 = vpop.f32.mrf.mxu0
  %v740 = vadd.f32 0.0, %v739
  %741 = vmatmul.bf16.gmra.mxu0 %v676
  %v742 = vpop.f32.mrf.mxu0
  %v743 = vadd.f32 0.0, %v742
  %v744 = vpop.f32.mrf.mxu0
  %v745 = vadd.f32 0.0, %v744
  %746 = vmatmul.bf16.gmra.mxu0 %v679
  %v747 = vpop.f32.mrf.mxu0
  %v748 = vadd.f32 0.0, %v747
  %v749 = vpop.f32.mrf.mxu0
  %v750 = vadd.f32 0.0, %v749
  %751 = vmatmul.bf16.gmra.mxu0 %v682
  %v752 = vpop.f32.mrf.mxu0
  %v753 = vadd.f32 0.0, %v752
  %v754 = vpop.f32.mrf.mxu0
  %v755 = vadd.f32 0.0, %v754
  %756 = vmatmul.bf16.gmra.mxu0 %v685
  %v757 = vpop.f32.mrf.mxu0
  %v758 = vadd.f32 0.0, %v757
  %v759 = vpop.f32.mrf.mxu0
  %v760 = vadd.f32 0.0, %v759
  %761 = vmatmul.bf16.gmra.mxu0 %v688
  %v762 = vpop.f32.mrf.mxu0
  %v763 = vadd.f32 0.0, %v762
  %v764 = vpop.f32.mrf.mxu0
  %v765 = vadd.f32 0.0, %v764
  %766 = vmatmul.bf16.gmra.mxu0 %v691
  %v767 = vpop.f32.mrf.mxu0
  %v768 = vadd.f32 0.0, %v767
  %v769 = vpop.f32.mrf.mxu0
  %v770 = vadd.f32 0.0, %v769
  %771 = vmatmul.bf16.gmra.mxu0 %v694
  %v772 = vpop.f32.mrf.mxu0
  %v773 = vadd.f32 0.0, %v772
  %v774 = vpop.f32.mrf.mxu0
  %v775 = vadd.f32 0.0, %v774
  %776 = vmatmul.bf16.gmra.mxu0 %v697
  %v777 = vpop.f32.mrf.mxu0
  %v778 = vadd.f32 0.0, %v777
  %v779 = vpop.f32.mrf.mxu0
  %v780 = vadd.f32 0.0, %v779
  %781 = vmatmul.bf16.gmra.mxu0 %v700
  %v782 = vpop.f32.mrf.mxu0
  %v783 = vadd.f32 0.0, %v782
  %v784 = vpop.f32.mrf.mxu0
  %v785 = vadd.f32 0.0, %v784
  %786 = vmatmul.bf16.gmra.mxu0 %v703
  %v787 = vpop.f32.mrf.mxu0
  %v788 = vadd.f32 0.0, %v787
  %v789 = vpop.f32.mrf.mxu0
  %v790 = vadd.f32 0.0, %v789
  %791 = vmatmul.bf16.gmra.mxu0 %v706
  %v792 = vpop.f32.mrf.mxu0
  %v793 = vadd.f32 0.0, %v792
  %v794 = vpop.f32.mrf.mxu0
  %v795 = vadd.f32 0.0, %v794
  %796 = vdwg.mxu0
  %v797 = vadd.f32 %v524, %v718
  %v798 = vadd.f32 %v526, %v720
  %v799 = vadd.f32 %v529, %v723
  %v800 = vadd.f32 %v531, %v725
  %v801 = vadd.f32 %v534, %v728
  %v802 = vadd.f32 %v536, %v730
  %v803 = vadd.f32 %v539, %v733
  %v804 = vadd.f32 %v541, %v735
  %v805 = vadd.f32 %v544, %v738
  %v806 = vadd.f32 %v546, %v740
  %v807 = vadd.f32 %v549, %v743
  %v808 = vadd.f32 %v551, %v745
  %v809 = vadd.f32 %v554, %v748
  %v810 = vadd.f32 %v556, %v750
  %v811 = vadd.f32 %v559, %v753
  %v812 = vadd.f32 %v561, %v755
  %v813 = vadd.f32 %v564, %v758
  %v814 = vadd.f32 %v566, %v760
  %v815 = vadd.f32 %v569, %v763
  %v816 = vadd.f32 %v571, %v765
  %v817 = vadd.f32 %v574, %v768
  %v818 = vadd.f32 %v576, %v770
  %v819 = vadd.f32 %v579, %v773
  %v820 = vadd.f32 %v581, %v775
  %v821 = vadd.f32 %v584, %v778
  %v822 = vadd.f32 %v586, %v780
  %v823 = vadd.f32 %v589, %v783
  %v824 = vadd.f32 %v591, %v785
  %v825 = vadd.f32 %v594, %v788
  %v826 = vadd.f32 %v596, %v790
  %v827 = vadd.f32 %v599, %v793
  %v828 = vadd.f32 %v601, %v795
  %v829 = vld [vmem:[#allocation2 + $0x3] sm:$0xff]
  %v830 = vld [vmem:[#allocation2 + $0xb] sm:$0xff]
  %v831 = vld [vmem:[#allocation2 + $0x13] sm:$0xff]
  %v832 = vld [vmem:[#allocation2 + $0x1b] sm:$0xff]
  %v833 = vld [vmem:[#allocation2 + $0x23] sm:$0xff]
  %v834 = vld [vmem:[#allocation2 + $0x2b] sm:$0xff]
  %v835 = vld [vmem:[#allocation2 + $0x33] sm:$0xff]
  %v836 = vld [vmem:[#allocation2 + $0x3b] sm:$0xff]
  %v837 = vld [vmem:[#allocation2 + $0x43] sm:$0xff]
  %v838 = vld [vmem:[#allocation2 + $0x4b] sm:$0xff]
  %v839 = vld [vmem:[#allocation2 + $0x53] sm:$0xff]
  %v840 = vld [vmem:[#allocation2 + $0x5b] sm:$0xff]
  %v841 = vld [vmem:[#allocation2 + $0x63] sm:$0xff]
  %v842 = vld [vmem:[#allocation2 + $0x6b] sm:$0xff]
  %v843 = vld [vmem:[#allocation2 + $0x73] sm:$0xff]
  %v844 = vld [vmem:[#allocation2 + $0x7b] sm:$0xff]
  %v845 = vld [vmem:[#allocation2 + $0x83] sm:$0xff]
  %v846 = vld [vmem:[#allocation2 + $0x8b] sm:$0xff]
  %v847 = vld [vmem:[#allocation2 + $0x93] sm:$0xff]
  %v848 = vld [vmem:[#allocation2 + $0x9b] sm:$0xff]
  %v849 = vld [vmem:[#allocation2 + $0xa3] sm:$0xff]
  %v850 = vld [vmem:[#allocation2 + $0xab] sm:$0xff]
  %v851 = vld [vmem:[#allocation2 + $0xb3] sm:$0xff]
  %v852 = vld [vmem:[#allocation2 + $0xbb] sm:$0xff]
  %v853 = vld [vmem:[#allocation2 + $0xc3] sm:$0xff]
  %v854 = vld [vmem:[#allocation2 + $0xcb] sm:$0xff]
  %v855 = vld [vmem:[#allocation2 + $0xd3] sm:$0xff]
  %v856 = vld [vmem:[#allocation2 + $0xdb] sm:$0xff]
  %v857 = vld [vmem:[#allocation2 + $0xe3] sm:$0xff]
  %v858 = vld [vmem:[#allocation2 + $0xeb] sm:$0xff]
  %v859 = vld [vmem:[#allocation2 + $0xf3] sm:$0xff]
  %v860 = vld [vmem:[#allocation2 + $0xfb] sm:$0xff]
  %v861 = vpack.c.bf16 %v830, %v829
  %v862 = vpack.c.bf16 %v832, %v831
  %v863 = vpack.c.bf16 %v834, %v833
  %v864 = vpack.c.bf16 %v836, %v835
  %v865 = vpack.c.bf16 %v838, %v837
  %v866 = vpack.c.bf16 %v840, %v839
  %v867 = vpack.c.bf16 %v842, %v841
  %v868 = vpack.c.bf16 %v844, %v843
  %v869 = vpack.c.bf16 %v846, %v845
  %v870 = vpack.c.bf16 %v848, %v847
  %v871 = vpack.c.bf16 %v850, %v849
  %v872 = vpack.c.bf16 %v852, %v851
  %v873 = vpack.c.bf16 %v854, %v853
  %v874 = vpack.c.bf16 %v856, %v855
  %v875 = vpack.c.bf16 %v858, %v857
  %v876 = vpack.c.bf16 %v860, %v859
  %s877 = scalar_lea.vmem %s1, 24
  %v878 = vld [vmem:[%s877] sm:$0xf]
  %v879 = vld [vmem:[%s877 + $0x4] sm:$0xf]
  %v882 = vunpack.c.l.b16 %v878
  %v883 = vunpack.c.l.b16 %v879
  %v884 = vpack.c.b16 %v883, %v882
  %v887 = vsel %vm83, %v861, 0
  %v890 = vsel %vm83, %v862, 0
  %v893 = vsel %vm83, %v863, 0
  %v896 = vsel %vm83, %v864, 0
  %v899 = vsel %vm83, %v865, 0
  %v902 = vsel %vm83, %v866, 0
  %v905 = vsel %vm83, %v867, 0
  %v908 = vsel %vm83, %v868, 0
  %v911 = vsel %vm83, %v869, 0
  %v914 = vsel %vm83, %v870, 0
  %v917 = vsel %vm83, %v871, 0
  %v920 = vsel %vm83, %v872, 0
  %v923 = vsel %vm83, %v873, 0
  %v926 = vsel %vm83, %v874, 0
  %v929 = vsel %vm83, %v875, 0
  %v932 = vsel %vm83, %v876, 0
  %934 = vmatpush.bf16.msra.mxu0 0
  %935 = vmatpush.bf16.msra.mxu0 0
  %936 = vmatpush.bf16.msra.mxu0 0
  %937 = vmatpush.bf16.msra.mxu0 0
  %938 = vmatpush.bf16.msra.mxu0 0
  %939 = vmatpush.bf16.msra.mxu0 0
  %940 = vmatpush.bf16.msra.mxu0 0
  %941 = vmatpush.bf16.msra.mxu0 %v884
  %942 = vmatmul.bf16.gmra.mxu0 %v887
  %v943 = vpop.f32.mrf.mxu0
  %v944 = vadd.f32 0.0, %v943
  %v945 = vpop.f32.mrf.mxu0
  %v946 = vadd.f32 0.0, %v945
  %947 = vmatmul.bf16.gmra.mxu0 %v890
  %v948 = vpop.f32.mrf.mxu0
  %v949 = vadd.f32 0.0, %v948
  %v950 = vpop.f32.mrf.mxu0
  %v951 = vadd.f32 0.0, %v950
  %952 = vmatmul.bf16.gmra.mxu0 %v893
  %v953 = vpop.f32.mrf.mxu0
  %v954 = vadd.f32 0.0, %v953
  %v955 = vpop.f32.mrf.mxu0
  %v956 = vadd.f32 0.0, %v955
  %957 = vmatmul.bf16.gmra.mxu0 %v896
  %v958 = vpop.f32.mrf.mxu0
  %v959 = vadd.f32 0.0, %v958
  %v960 = vpop.f32.mrf.mxu0
  %v961 = vadd.f32 0.0, %v960
  %962 = vmatmul.bf16.gmra.mxu0 %v899
  %v963 = vpop.f32.mrf.mxu0
  %v964 = vadd.f32 0.0, %v963
  %v965 = vpop.f32.mrf.mxu0
  %v966 = vadd.f32 0.0, %v965
  %967 = vmatmul.bf16.gmra.mxu0 %v902
  %v968 = vpop.f32.mrf.mxu0
  %v969 = vadd.f32 0.0, %v968
  %v970 = vpop.f32.mrf.mxu0
  %v971 = vadd.f32 0.0, %v970
  %972 = vmatmul.bf16.gmra.mxu0 %v905
  %v973 = vpop.f32.mrf.mxu0
  %v974 = vadd.f32 0.0, %v973
  %v975 = vpop.f32.mrf.mxu0
  %v976 = vadd.f32 0.0, %v975
  %977 = vmatmul.bf16.gmra.mxu0 %v908
  %v978 = vpop.f32.mrf.mxu0
  %v979 = vadd.f32 0.0, %v978
  %v980 = vpop.f32.mrf.mxu0
  %v981 = vadd.f32 0.0, %v980
  %982 = vmatmul.bf16.gmra.mxu0 %v911
  %v983 = vpop.f32.mrf.mxu0
  %v984 = vadd.f32 0.0, %v983
  %v985 = vpop.f32.mrf.mxu0
  %v986 = vadd.f32 0.0, %v985
  %987 = vmatmul.bf16.gmra.mxu0 %v914
  %v988 = vpop.f32.mrf.mxu0
  %v989 = vadd.f32 0.0, %v988
  %v990 = vpop.f32.mrf.mxu0
  %v991 = vadd.f32 0.0, %v990
  %992 = vmatmul.bf16.gmra.mxu0 %v917
  %v993 = vpop.f32.mrf.mxu0
  %v994 = vadd.f32 0.0, %v993
  %v995 = vpop.f32.mrf.mxu0
  %v996 = vadd.f32 0.0, %v995
  %997 = vmatmul.bf16.gmra.mxu0 %v920
  %v998 = vpop.f32.mrf.mxu0
  %v999 = vadd.f32 0.0, %v998
  %v1000 = vpop.f32.mrf.mxu0
  %v1001 = vadd.f32 0.0, %v1000
  %1002 = vmatmul.bf16.gmra.mxu0 %v923
  %v1003 = vpop.f32.mrf.mxu0
  %v1004 = vadd.f32 0.0, %v1003
  %v1005 = vpop.f32.mrf.mxu0
  %v1006 = vadd.f32 0.0, %v1005
  %1007 = vmatmul.bf16.gmra.mxu0 %v926
  %v1008 = vpop.f32.mrf.mxu0
  %v1009 = vadd.f32 0.0, %v1008
  %v1010 = vpop.f32.mrf.mxu0
  %v1011 = vadd.f32 0.0, %v1010
  %1012 = vmatmul.bf16.gmra.mxu0 %v929
  %v1013 = vpop.f32.mrf.mxu0
  %v1014 = vadd.f32 0.0, %v1013
  %v1015 = vpop.f32.mrf.mxu0
  %v1016 = vadd.f32 0.0, %v1015
  %1017 = vmatmul.bf16.gmra.mxu0 %v932
  %v1018 = vpop.f32.mrf.mxu0
  %v1019 = vadd.f32 0.0, %v1018
  %v1020 = vpop.f32.mrf.mxu0
  %v1021 = vadd.f32 0.0, %v1020
  %1022 = vdwg.mxu0
  %v1023 = vadd.f32 %v797, %v944
  %v1024 = vadd.f32 %v798, %v946
  %v1025 = vadd.f32 %v799, %v949
  %v1026 = vadd.f32 %v800, %v951
  %v1027 = vadd.f32 %v801, %v954
  %v1028 = vadd.f32 %v802, %v956
  %v1029 = vadd.f32 %v803, %v959
  %v1030 = vadd.f32 %v804, %v961
  %v1031 = vadd.f32 %v805, %v964
  %v1032 = vadd.f32 %v806, %v966
  %v1033 = vadd.f32 %v807, %v969
  %v1034 = vadd.f32 %v808, %v971
  %v1035 = vadd.f32 %v809, %v974
  %v1036 = vadd.f32 %v810, %v976
  %v1037 = vadd.f32 %v811, %v979
  %v1038 = vadd.f32 %v812, %v981
  %v1039 = vadd.f32 %v813, %v984
  %v1040 = vadd.f32 %v814, %v986
  %v1041 = vadd.f32 %v815, %v989
  %v1042 = vadd.f32 %v816, %v991
  %v1043 = vadd.f32 %v817, %v994
  %v1044 = vadd.f32 %v818, %v996
  %v1045 = vadd.f32 %v819, %v999
  %v1046 = vadd.f32 %v820, %v1001
  %v1047 = vadd.f32 %v821, %v1004
  %v1048 = vadd.f32 %v822, %v1006
  %v1049 = vadd.f32 %v823, %v1009
  %v1050 = vadd.f32 %v824, %v1011
  %v1051 = vadd.f32 %v825, %v1014
  %v1052 = vadd.f32 %v826, %v1016
  %v1053 = vadd.f32 %v827, %v1019
  %v1054 = vadd.f32 %v828, %v1021
  %v1055 = vld [vmem:[#allocation2 + $0x4] sm:$0xff]
  %v1056 = vld [vmem:[#allocation2 + $0xc] sm:$0xff]
  %v1057 = vld [vmem:[#allocation2 + $0x14] sm:$0xff]
  %v1058 = vld [vmem:[#allocation2 + $0x1c] sm:$0xff]
  %v1059 = vld [vmem:[#allocation2 + $0x24] sm:$0xff]
  %v1060 = vld [vmem:[#allocation2 + $0x2c] sm:$0xff]
  %v1061 = vld [vmem:[#allocation2 + $0x34] sm:$0xff]
  %v1062 = vld [vmem:[#allocation2 + $0x3c] sm:$0xff]
  %v1063 = vld [vmem:[#allocation2 + $0x44] sm:$0xff]
  %v1064 = vld [vmem:[#allocation2 + $0x4c] sm:$0xff]
  %v1065 = vld [vmem:[#allocation2 + $0x54] sm:$0xff]
  %v1066 = vld [vmem:[#allocation2 + $0x5c] sm:$0xff]
  %v1067 = vld [vmem:[#allocation2 + $0x64] sm:$0xff]
  %v1068 = vld [vmem:[#allocation2 + $0x6c] sm:$0xff]
  %v1069 = vld [vmem:[#allocation2 + $0x74] sm:$0xff]
  %v1070 = vld [vmem:[#allocation2 + $0x7c] sm:$0xff]
  %v1071 = vld [vmem:[#allocation2 + $0x84] sm:$0xff]
  %v1072 = vld [vmem:[#allocation2 + $0x8c] sm:$0xff]
  %v1073 = vld [vmem:[#allocation2 + $0x94] sm:$0xff]
  %v1074 = vld [vmem:[#allocation2 + $0x9c] sm:$0xff]
  %v1075 = vld [vmem:[#allocation2 + $0xa4] sm:$0xff]
  %v1076 = vld [vmem:[#allocation2 + $0xac] sm:$0xff]
  %v1077 = vld [vmem:[#allocation2 + $0xb4] sm:$0xff]
  %v1078 = vld [vmem:[#allocation2 + $0xbc] sm:$0xff]
  %v1079 = vld [vmem:[#allocation2 + $0xc4] sm:$0xff]
  %v1080 = vld [vmem:[#allocation2 + $0xcc] sm:$0xff]
  %v1081 = vld [vmem:[#allocation2 + $0xd4] sm:$0xff]
  %v1082 = vld [vmem:[#allocation2 + $0xdc] sm:$0xff]
  %v1083 = vld [vmem:[#allocation2 + $0xe4] sm:$0xff]
  %v1084 = vld [vmem:[#allocation2 + $0xec] sm:$0xff]
  %v1085 = vld [vmem:[#allocation2 + $0xf4] sm:$0xff]
  %v1086 = vld [vmem:[#allocation2 + $0xfc] sm:$0xff]
  %v1087 = vpack.c.bf16 %v1056, %v1055
  %v1088 = vpack.c.bf16 %v1058, %v1057
  %v1089 = vpack.c.bf16 %v1060, %v1059
  %v1090 = vpack.c.bf16 %v1062, %v1061
  %v1091 = vpack.c.bf16 %v1064, %v1063
  %v1092 = vpack.c.bf16 %v1066, %v1065
  %v1093 = vpack.c.bf16 %v1068, %v1067
  %v1094 = vpack.c.bf16 %v1070, %v1069
  %v1095 = vpack.c.bf16 %v1072, %v1071
  %v1096 = vpack.c.bf16 %v1074, %v1073
  %v1097 = vpack.c.bf16 %v1076, %v1075
  %v1098 = vpack.c.bf16 %v1078, %v1077
  %v1099 = vpack.c.bf16 %v1080, %v1079
  %v1100 = vpack.c.bf16 %v1082, %v1081
  %v1101 = vpack.c.bf16 %v1084, %v1083
  %v1102 = vpack.c.bf16 %v1086, %v1085
  %s1103 = scalar_lea.vmem %s1, 32
  %v1104 = vld [vmem:[%s1103] sm:$0xf]
  %v1105 = vld [vmem:[%s1103 + $0x4] sm:$0xf]
  %v1108 = vunpack.c.l.b16 %v1104
  %v1109 = vunpack.c.l.b16 %v1105
  %v1110 = vpack.c.b16 %v1109, %v1108
  %v1113 = vsel %vm83, %v1087, 0
  %v1116 = vsel %vm83, %v1088, 0
  %v1119 = vsel %vm83, %v1089, 0
  %v1122 = vsel %vm83, %v1090, 0
  %v1125 = vsel %vm83, %v1091, 0
  %v1128 = vsel %vm83, %v1092, 0
  %v1131 = vsel %vm83, %v1093, 0
  %v1134 = vsel %vm83, %v1094, 0
  %v1137 = vsel %vm83, %v1095, 0
  %v1140 = vsel %vm83, %v1096, 0
  %v1143 = vsel %vm83, %v1097, 0
  %v1146 = vsel %vm83, %v1098, 0
  %v1149 = vsel %vm83, %v1099, 0
  %v1152 = vsel %vm83, %v1100, 0
  %v1155 = vsel %vm83, %v1101, 0
  %v1158 = vsel %vm83, %v1102, 0
  %1160 = vmatpush.bf16.msra.mxu0 0
  %1161 = vmatpush.bf16.msra.mxu0 0
  %1162 = vmatpush.bf16.msra.mxu0 0
  %1163 = vmatpush.bf16.msra.mxu0 0
  %1164 = vmatpush.bf16.msra.mxu0 0
  %1165 = vmatpush.bf16.msra.mxu0 0
  %1166 = vmatpush.bf16.msra.mxu0 0
  %1167 = vmatpush.bf16.msra.mxu0 %v1110
  %1168 = vmatmul.bf16.gmra.mxu0 %v1113
  %v1169 = vpop.f32.mrf.mxu0
  %v1170 = vadd.f32 0.0, %v1169
  %v1171 = vpop.f32.mrf.mxu0
  %v1172 = vadd.f32 0.0, %v1171
  %1173 = vmatmul.bf16.gmra.mxu0 %v1116
  %v1174 = vpop.f32.mrf.mxu0
  %v1175 = vadd.f32 0.0, %v1174
  %v1176 = vpop.f32.mrf.mxu0
  %v1177 = vadd.f32 0.0, %v1176
  %1178 = vmatmul.bf16.gmra.mxu0 %v1119
  %v1179 = vpop.f32.mrf.mxu0
  %v1180 = vadd.f32 0.0, %v1179
  %v1181 = vpop.f32.mrf.mxu0
  %v1182 = vadd.f32 0.0, %v1181
  %1183 = vmatmul.bf16.gmra.mxu0 %v1122
  %v1184 = vpop.f32.mrf.mxu0
  %v1185 = vadd.f32 0.0, %v1184
  %v1186 = vpop.f32.mrf.mxu0
  %v1187 = vadd.f32 0.0, %v1186
  %1188 = vmatmul.bf16.gmra.mxu0 %v1125
  %v1189 = vpop.f32.mrf.mxu0
  %v1190 = vadd.f32 0.0, %v1189
  %v1191 = vpop.f32.mrf.mxu0
  %v1192 = vadd.f32 0.0, %v1191
  %1193 = vmatmul.bf16.gmra.mxu0 %v1128
  %v1194 = vpop.f32.mrf.mxu0
  %v1195 = vadd.f32 0.0, %v1194
  %v1196 = vpop.f32.mrf.mxu0
  %v1197 = vadd.f32 0.0, %v1196
  %1198 = vmatmul.bf16.gmra.mxu0 %v1131
  %v1199 = vpop.f32.mrf.mxu0
  %v1200 = vadd.f32 0.0, %v1199
  %v1201 = vpop.f32.mrf.mxu0
  %v1202 = vadd.f32 0.0, %v1201
  %1203 = vmatmul.bf16.gmra.mxu0 %v1134
  %v1204 = vpop.f32.mrf.mxu0
  %v1205 = vadd.f32 0.0, %v1204
  %v1206 = vpop.f32.mrf.mxu0
  %v1207 = vadd.f32 0.0, %v1206
  %1208 = vmatmul.bf16.gmra.mxu0 %v1137
  %v1209 = vpop.f32.mrf.mxu0
  %v1210 = vadd.f32 0.0, %v1209
  %v1211 = vpop.f32.mrf.mxu0
  %v1212 = vadd.f32 0.0, %v1211
  %1213 = vmatmul.bf16.gmra.mxu0 %v1140
  %v1214 = vpop.f32.mrf.mxu0
  %v1215 = vadd.f32 0.0, %v1214
  %v1216 = vpop.f32.mrf.mxu0
  %v1217 = vadd.f32 0.0, %v1216
  %1218 = vmatmul.bf16.gmra.mxu0 %v1143
  %v1219 = vpop.f32.mrf.mxu0
  %v1220 = vadd.f32 0.0, %v1219
  %v1221 = vpop.f32.mrf.mxu0
  %v1222 = vadd.f32 0.0, %v1221
  %1223 = vmatmul.bf16.gmra.mxu0 %v1146
  %v1224 = vpop.f32.mrf.mxu0
  %v1225 = vadd.f32 0.0, %v1224
  %v1226 = vpop.f32.mrf.mxu0
  %v1227 = vadd.f32 0.0, %v1226
  %1228 = vmatmul.bf16.gmra.mxu0 %v1149
  %v1229 = vpop.f32.mrf.mxu0
  %v1230 = vadd.f32 0.0, %v1229
  %v1231 = vpop.f32.mrf.mxu0
  %v1232 = vadd.f32 0.0, %v1231
  %1233 = vmatmul.bf16.gmra.mxu0 %v1152
  %v1234 = vpop.f32.mrf.mxu0
  %v1235 = vadd.f32 0.0, %v1234
  %v1236 = vpop.f32.mrf.mxu0
  %v1237 = vadd.f32 0.0, %v1236
  %1238 = vmatmul.bf16.gmra.mxu0 %v1155
  %v1239 = vpop.f32.mrf.mxu0
  %v1240 = vadd.f32 0.0, %v1239
  %v1241 = vpop.f32.mrf.mxu0
  %v1242 = vadd.f32 0.0, %v1241
  %1243 = vmatmul.bf16.gmra.mxu0 %v1158
  %v1244 = vpop.f32.mrf.mxu0
  %v1245 = vadd.f32 0.0, %v1244
  %v1246 = vpop.f32.mrf.mxu0
  %v1247 = vadd.f32 0.0, %v1246
  %1248 = vdwg.mxu0
  %v1249 = vadd.f32 %v1023, %v1170
  %v1250 = vadd.f32 %v1024, %v1172
  %v1251 = vadd.f32 %v1025, %v1175
  %v1252 = vadd.f32 %v1026, %v1177
  %v1253 = vadd.f32 %v1027, %v1180
  %v1254 = vadd.f32 %v1028, %v1182
  %v1255 = vadd.f32 %v1029, %v1185
  %v1256 = vadd.f32 %v1030, %v1187
  %v1257 = vadd.f32 %v1031, %v1190
  %v1258 = vadd.f32 %v1032, %v1192
  %v1259 = vadd.f32 %v1033, %v1195
  %v1260 = vadd.f32 %v1034, %v1197
  %v1261 = vadd.f32 %v1035, %v1200
  %v1262 = vadd.f32 %v1036, %v1202
  %v1263 = vadd.f32 %v1037, %v1205
  %v1264 = vadd.f32 %v1038, %v1207
  %v1265 = vadd.f32 %v1039, %v1210
  %v1266 = vadd.f32 %v1040, %v1212
  %v1267 = vadd.f32 %v1041, %v1215
  %v1268 = vadd.f32 %v1042, %v1217
  %v1269 = vadd.f32 %v1043, %v1220
  %v1270 = vadd.f32 %v1044, %v1222
  %v1271 = vadd.f32 %v1045, %v1225
  %v1272 = vadd.f32 %v1046, %v1227
  %v1273 = vadd.f32 %v1047, %v1230
  %v1274 = vadd.f32 %v1048, %v1232
  %v1275 = vadd.f32 %v1049, %v1235
  %v1276 = vadd.f32 %v1050, %v1237
  %v1277 = vadd.f32 %v1051, %v1240
  %v1278 = vadd.f32 %v1052, %v1242
  %v1279 = vadd.f32 %v1053, %v1245
  %v1280 = vadd.f32 %v1054, %v1247
  %v1281 = vld [vmem:[#allocation2 + $0x5] sm:$0xff]
  %v1282 = vld [vmem:[#allocation2 + $0xd] sm:$0xff]
  %v1283 = vld [vmem:[#allocation2 + $0x15] sm:$0xff]
  %v1284 = vld [vmem:[#allocation2 + $0x1d] sm:$0xff]
  %v1285 = vld [vmem:[#allocation2 + $0x25] sm:$0xff]
  %v1286 = vld [vmem:[#allocation2 + $0x2d] sm:$0xff]
  %v1287 = vld [vmem:[#allocation2 + $0x35] sm:$0xff]
  %v1288 = vld [vmem:[#allocation2 + $0x3d] sm:$0xff]
  %v1289 = vld [vmem:[#allocation2 + $0x45] sm:$0xff]
  %v1290 = vld [vmem:[#allocation2 + $0x4d] sm:$0xff]
  %v1291 = vld [vmem:[#allocation2 + $0x55] sm:$0xff]
  %v1292 = vld [vmem:[#allocation2 + $0x5d] sm:$0xff]
  %v1293 = vld [vmem:[#allocation2 + $0x65] sm:$0xff]
  %v1294 = vld [vmem:[#allocation2 + $0x6d] sm:$0xff]
  %v1295 = vld [vmem:[#allocation2 + $0x75] sm:$0xff]
  %v1296 = vld [vmem:[#allocation2 + $0x7d] sm:$0xff]
  %v1297 = vld [vmem:[#allocation2 + $0x85] sm:$0xff]
  %v1298 = vld [vmem:[#allocation2 + $0x8d] sm:$0xff]
  %v1299 = vld [vmem:[#allocation2 + $0x95] sm:$0xff]
  %v1300 = vld [vmem:[#allocation2 + $0x9d] sm:$0xff]
  %v1301 = vld [vmem:[#allocation2 + $0xa5] sm:$0xff]
  %v1302 = vld [vmem:[#allocation2 + $0xad] sm:$0xff]
  %v1303 = vld [vmem:[#allocation2 + $0xb5] sm:$0xff]
  %v1304 = vld [vmem:[#allocation2 + $0xbd] sm:$0xff]
  %v1305 = vld [vmem:[#allocation2 + $0xc5] sm:$0xff]
  %v1306 = vld [vmem:[#allocation2 + $0xcd] sm:$0xff]
  %v1307 = vld [vmem:[#allocation2 + $0xd5] sm:$0xff]
  %v1308 = vld [vmem:[#allocation2 + $0xdd] sm:$0xff]
  %v1309 = vld [vmem:[#allocation2 + $0xe5] sm:$0xff]
  %v1310 = vld [vmem:[#allocation2 + $0xed] sm:$0xff]
  %v1311 = vld [vmem:[#allocation2 + $0xf5] sm:$0xff]
  %v1312 = vld [vmem:[#allocation2 + $0xfd] sm:$0xff]
  %v1313 = vpack.c.bf16 %v1282, %v1281
  %v1314 = vpack.c.bf16 %v1284, %v1283
  %v1315 = vpack.c.bf16 %v1286, %v1285
  %v1316 = vpack.c.bf16 %v1288, %v1287
  %v1317 = vpack.c.bf16 %v1290, %v1289
  %v1318 = vpack.c.bf16 %v1292, %v1291
  %v1319 = vpack.c.bf16 %v1294, %v1293
  %v1320 = vpack.c.bf16 %v1296, %v1295
  %v1321 = vpack.c.bf16 %v1298, %v1297
  %v1322 = vpack.c.bf16 %v1300, %v1299
  %v1323 = vpack.c.bf16 %v1302, %v1301
  %v1324 = vpack.c.bf16 %v1304, %v1303
  %v1325 = vpack.c.bf16 %v1306, %v1305
  %v1326 = vpack.c.bf16 %v1308, %v1307
  %v1327 = vpack.c.bf16 %v1310, %v1309
  %v1328 = vpack.c.bf16 %v1312, %v1311
  %s1329 = scalar_lea.vmem %s1, 40
  %v1330 = vld [vmem:[%s1329] sm:$0xf]
  %v1331 = vld [vmem:[%s1329 + $0x4] sm:$0xf]
  %v1334 = vunpack.c.l.b16 %v1330
  %v1335 = vunpack.c.l.b16 %v1331
  %v1336 = vpack.c.b16 %v1335, %v1334
  %v1339 = vsel %vm83, %v1313, 0
  %v1342 = vsel %vm83, %v1314, 0
  %v1345 = vsel %vm83, %v1315, 0
  %v1348 = vsel %vm83, %v1316, 0
  %v1351 = vsel %vm83, %v1317, 0
  %v1354 = vsel %vm83, %v1318, 0
  %v1357 = vsel %vm83, %v1319, 0
  %v1360 = vsel %vm83, %v1320, 0
  %v1363 = vsel %vm83, %v1321, 0
  %v1366 = vsel %vm83, %v1322, 0
  %v1369 = vsel %vm83, %v1323, 0
  %v1372 = vsel %vm83, %v1324, 0
  %v1375 = vsel %vm83, %v1325, 0
  %v1378 = vsel %vm83, %v1326, 0
  %v1381 = vsel %vm83, %v1327, 0
  %v1384 = vsel %vm83, %v1328, 0
  %1386 = vmatpush.bf16.msra.mxu0 0
  %1387 = vmatpush.bf16.msra.mxu0 0
  %1388 = vmatpush.bf16.msra.mxu0 0
  %1389 = vmatpush.bf16.msra.mxu0 0
  %1390 = vmatpush.bf16.msra.mxu0 0
  %1391 = vmatpush.bf16.msra.mxu0 0
  %1392 = vmatpush.bf16.msra.mxu0 0
  %1393 = vmatpush.bf16.msra.mxu0 %v1336
  %1394 = vmatmul.bf16.gmra.mxu0 %v1339
  %v1395 = vpop.f32.mrf.mxu0
  %v1396 = vadd.f32 0.0, %v1395
  %v1397 = vpop.f32.mrf.mxu0
  %v1398 = vadd.f32 0.0, %v1397
  %1399 = vmatmul.bf16.gmra.mxu0 %v1342
  %v1400 = vpop.f32.mrf.mxu0
  %v1401 = vadd.f32 0.0, %v1400
  %v1402 = vpop.f32.mrf.mxu0
  %v1403 = vadd.f32 0.0, %v1402
  %1404 = vmatmul.bf16.gmra.mxu0 %v1345
  %v1405 = vpop.f32.mrf.mxu0
  %v1406 = vadd.f32 0.0, %v1405
  %v1407 = vpop.f32.mrf.mxu0
  %v1408 = vadd.f32 0.0, %v1407
  %1409 = vmatmul.bf16.gmra.mxu0 %v1348
  %v1410 = vpop.f32.mrf.mxu0
  %v1411 = vadd.f32 0.0, %v1410
  %v1412 = vpop.f32.mrf.mxu0
  %v1413 = vadd.f32 0.0, %v1412
  %1414 = vmatmul.bf16.gmra.mxu0 %v1351
  %v1415 = vpop.f32.mrf.mxu0
  %v1416 = vadd.f32 0.0, %v1415
  %v1417 = vpop.f32.mrf.mxu0
  %v1418 = vadd.f32 0.0, %v1417
  %1419 = vmatmul.bf16.gmra.mxu0 %v1354
  %v1420 = vpop.f32.mrf.mxu0
  %v1421 = vadd.f32 0.0, %v1420
  %v1422 = vpop.f32.mrf.mxu0
  %v1423 = vadd.f32 0.0, %v1422
  %1424 = vmatmul.bf16.gmra.mxu0 %v1357
  %v1425 = vpop.f32.mrf.mxu0
  %v1426 = vadd.f32 0.0, %v1425
  %v1427 = vpop.f32.mrf.mxu0
  %v1428 = vadd.f32 0.0, %v1427
  %1429 = vmatmul.bf16.gmra.mxu0 %v1360
  %v1430 = vpop.f32.mrf.mxu0
  %v1431 = vadd.f32 0.0, %v1430
  %v1432 = vpop.f32.mrf.mxu0
  %v1433 = vadd.f32 0.0, %v1432
  %1434 = vmatmul.bf16.gmra.mxu0 %v1363
  %v1435 = vpop.f32.mrf.mxu0
  %v1436 = vadd.f32 0.0, %v1435
  %v1437 = vpop.f32.mrf.mxu0
  %v1438 = vadd.f32 0.0, %v1437
  %1439 = vmatmul.bf16.gmra.mxu0 %v1366
  %v1440 = vpop.f32.mrf.mxu0
  %v1441 = vadd.f32 0.0, %v1440
  %v1442 = vpop.f32.mrf.mxu0
  %v1443 = vadd.f32 0.0, %v1442
  %1444 = vmatmul.bf16.gmra.mxu0 %v1369
  %v1445 = vpop.f32.mrf.mxu0
  %v1446 = vadd.f32 0.0, %v1445
  %v1447 = vpop.f32.mrf.mxu0
  %v1448 = vadd.f32 0.0, %v1447
  %1449 = vmatmul.bf16.gmra.mxu0 %v1372
  %v1450 = vpop.f32.mrf.mxu0
  %v1451 = vadd.f32 0.0, %v1450
  %v1452 = vpop.f32.mrf.mxu0
  %v1453 = vadd.f32 0.0, %v1452
  %1454 = vmatmul.bf16.gmra.mxu0 %v1375
  %v1455 = vpop.f32.mrf.mxu0
  %v1456 = vadd.f32 0.0, %v1455
  %v1457 = vpop.f32.mrf.mxu0
  %v1458 = vadd.f32 0.0, %v1457
  %1459 = vmatmul.bf16.gmra.mxu0 %v1378
  %v1460 = vpop.f32.mrf.mxu0
  %v1461 = vadd.f32 0.0, %v1460
  %v1462 = vpop.f32.mrf.mxu0
  %v1463 = vadd.f32 0.0, %v1462
  %1464 = vmatmul.bf16.gmra.mxu0 %v1381
  %v1465 = vpop.f32.mrf.mxu0
  %v1466 = vadd.f32 0.0, %v1465
  %v1467 = vpop.f32.mrf.mxu0
  %v1468 = vadd.f32 0.0, %v1467
  %1469 = vmatmul.bf16.gmra.mxu0 %v1384
  %v1470 = vpop.f32.mrf.mxu0
  %v1471 = vadd.f32 0.0, %v1470
  %v1472 = vpop.f32.mrf.mxu0
  %v1473 = vadd.f32 0.0, %v1472
  %1474 = vdwg.mxu0
  %v1475 = vadd.f32 %v1249, %v1396
  %v1476 = vadd.f32 %v1250, %v1398
  %v1477 = vadd.f32 %v1251, %v1401
  %v1478 = vadd.f32 %v1252, %v1403
  %v1479 = vadd.f32 %v1253, %v1406
  %v1480 = vadd.f32 %v1254, %v1408
  %v1481 = vadd.f32 %v1255, %v1411
  %v1482 = vadd.f32 %v1256, %v1413
  %v1483 = vadd.f32 %v1257, %v1416
  %v1484 = vadd.f32 %v1258, %v1418
  %v1485 = vadd.f32 %v1259, %v1421
  %v1486 = vadd.f32 %v1260, %v1423
  %v1487 = vadd.f32 %v1261, %v1426
  %v1488 = vadd.f32 %v1262, %v1428
  %v1489 = vadd.f32 %v1263, %v1431
  %v1490 = vadd.f32 %v1264, %v1433
  %v1491 = vadd.f32 %v1265, %v1436
  %v1492 = vadd.f32 %v1266, %v1438
  %v1493 = vadd.f32 %v1267, %v1441
  %v1494 = vadd.f32 %v1268, %v1443
  %v1495 = vadd.f32 %v1269, %v1446
  %v1496 = vadd.f32 %v1270, %v1448
  %v1497 = vadd.f32 %v1271, %v1451
  %v1498 = vadd.f32 %v1272, %v1453
  %v1499 = vadd.f32 %v1273, %v1456
  %v1500 = vadd.f32 %v1274, %v1458
  %v1501 = vadd.f32 %v1275, %v1461
  %v1502 = vadd.f32 %v1276, %v1463
  %v1503 = vadd.f32 %v1277, %v1466
  %v1504 = vadd.f32 %v1278, %v1468
  %v1505 = vadd.f32 %v1279, %v1471
  %v1506 = vadd.f32 %v1280, %v1473
  %v1507 = vld [vmem:[#allocation2 + $0x6] sm:$0xff]
  %v1508 = vld [vmem:[#allocation2 + $0xe] sm:$0xff]
  %v1509 = vld [vmem:[#allocation2 + $0x16] sm:$0xff]
  %v1510 = vld [vmem:[#allocation2 + $0x1e] sm:$0xff]
  %v1511 = vld [vmem:[#allocation2 + $0x26] sm:$0xff]
  %v1512 = vld [vmem:[#allocation2 + $0x2e] sm:$0xff]
  %v1513 = vld [vmem:[#allocation2 + $0x36] sm:$0xff]
  %v1514 = vld [vmem:[#allocation2 + $0x3e] sm:$0xff]
  %v1515 = vld [vmem:[#allocation2 + $0x46] sm:$0xff]
  %v1516 = vld [vmem:[#allocation2 + $0x4e] sm:$0xff]
  %v1517 = vld [vmem:[#allocation2 + $0x56] sm:$0xff]
  %v1518 = vld [vmem:[#allocation2 + $0x5e] sm:$0xff]
  %v1519 = vld [vmem:[#allocation2 + $0x66] sm:$0xff]
  %v1520 = vld [vmem:[#allocation2 + $0x6e] sm:$0xff]
  %v1521 = vld [vmem:[#allocation2 + $0x76] sm:$0xff]
  %v1522 = vld [vmem:[#allocation2 + $0x7e] sm:$0xff]
  %v1523 = vld [vmem:[#allocation2 + $0x86] sm:$0xff]
  %v1524 = vld [vmem:[#allocation2 + $0x8e] sm:$0xff]
  %v1525 = vld [vmem:[#allocation2 + $0x96] sm:$0xff]
  %v1526 = vld [vmem:[#allocation2 + $0x9e] sm:$0xff]
  %v1527 = vld [vmem:[#allocation2 + $0xa6] sm:$0xff]
  %v1528 = vld [vmem:[#allocation2 + $0xae] sm:$0xff]
  %v1529 = vld [vmem:[#allocation2 + $0xb6] sm:$0xff]
  %v1530 = vld [vmem:[#allocation2 + $0xbe] sm:$0xff]
  %v1531 = vld [vmem:[#allocation2 + $0xc6] sm:$0xff]
  %v1532 = vld [vmem:[#allocation2 + $0xce] sm:$0xff]
  %v1533 = vld [vmem:[#allocation2 + $0xd6] sm:$0xff]
  %v1534 = vld [vmem:[#allocation2 + $0xde] sm:$0xff]
  %v1535 = vld [vmem:[#allocation2 + $0xe6] sm:$0xff]
  %v1536 = vld [vmem:[#allocation2 + $0xee] sm:$0xff]
  %v1537 = vld [vmem:[#allocation2 + $0xf6] sm:$0xff]
  %v1538 = vld [vmem:[#allocation2 + $0xfe] sm:$0xff]
  %v1539 = vpack.c.bf16 %v1508, %v1507
  %v1540 = vpack.c.bf16 %v1510, %v1509
  %v1541 = vpack.c.bf16 %v1512, %v1511
  %v1542 = vpack.c.bf16 %v1514, %v1513
  %v1543 = vpack.c.bf16 %v1516, %v1515
  %v1544 = vpack.c.bf16 %v1518, %v1517
  %v1545 = vpack.c.bf16 %v1520, %v1519
  %v1546 = vpack.c.bf16 %v1522, %v1521
  %v1547 = vpack.c.bf16 %v1524, %v1523
  %v1548 = vpack.c.bf16 %v1526, %v1525
  %v1549 = vpack.c.bf16 %v1528, %v1527
  %v1550 = vpack.c.bf16 %v1530, %v1529
  %v1551 = vpack.c.bf16 %v1532, %v1531
  %v1552 = vpack.c.bf16 %v1534, %v1533
  %v1553 = vpack.c.bf16 %v1536, %v1535
  %v1554 = vpack.c.bf16 %v1538, %v1537
  %s1555 = scalar_lea.vmem %s1, 48
  %v1556 = vld [vmem:[%s1555] sm:$0xf]
  %v1557 = vld [vmem:[%s1555 + $0x4] sm:$0xf]
  %v1560 = vunpack.c.l.b16 %v1556
  %v1561 = vunpack.c.l.b16 %v1557
  %v1562 = vpack.c.b16 %v1561, %v1560
  %v1565 = vsel %vm83, %v1539, 0
  %v1568 = vsel %vm83, %v1540, 0
  %v1571 = vsel %vm83, %v1541, 0
  %v1574 = vsel %vm83, %v1542, 0
  %v1577 = vsel %vm83, %v1543, 0
  %v1580 = vsel %vm83, %v1544, 0
  %v1583 = vsel %vm83, %v1545, 0
  %v1586 = vsel %vm83, %v1546, 0
  %v1589 = vsel %vm83, %v1547, 0
  %v1592 = vsel %vm83, %v1548, 0
  %v1595 = vsel %vm83, %v1549, 0
  %v1598 = vsel %vm83, %v1550, 0
  %v1601 = vsel %vm83, %v1551, 0
  %v1604 = vsel %vm83, %v1552, 0
  %v1607 = vsel %vm83, %v1553, 0
  %v1610 = vsel %vm83, %v1554, 0
  %1612 = vmatpush.bf16.msra.mxu0 0
  %1613 = vmatpush.bf16.msra.mxu0 0
  %1614 = vmatpush.bf16.msra.mxu0 0
  %1615 = vmatpush.bf16.msra.mxu0 0
  %1616 = vmatpush.bf16.msra.mxu0 0
  %1617 = vmatpush.bf16.msra.mxu0 0
  %1618 = vmatpush.bf16.msra.mxu0 0
  %1619 = vmatpush.bf16.msra.mxu0 %v1562
  %1620 = vmatmul.bf16.gmra.mxu0 %v1565
  %v1621 = vpop.f32.mrf.mxu0
  %v1622 = vadd.f32 0.0, %v1621
  %v1623 = vpop.f32.mrf.mxu0
  %v1624 = vadd.f32 0.0, %v1623
  %1625 = vmatmul.bf16.gmra.mxu0 %v1568
  %v1626 = vpop.f32.mrf.mxu0
  %v1627 = vadd.f32 0.0, %v1626
  %v1628 = vpop.f32.mrf.mxu0
  %v1629 = vadd.f32 0.0, %v1628
  %1630 = vmatmul.bf16.gmra.mxu0 %v1571
  %v1631 = vpop.f32.mrf.mxu0
  %v1632 = vadd.f32 0.0, %v1631
  %v1633 = vpop.f32.mrf.mxu0
  %v1634 = vadd.f32 0.0, %v1633
  %1635 = vmatmul.bf16.gmra.mxu0 %v1574
  %v1636 = vpop.f32.mrf.mxu0
  %v1637 = vadd.f32 0.0, %v1636
  %v1638 = vpop.f32.mrf.mxu0
  %v1639 = vadd.f32 0.0, %v1638
  %1640 = vmatmul.bf16.gmra.mxu0 %v1577
  %v1641 = vpop.f32.mrf.mxu0
  %v1642 = vadd.f32 0.0, %v1641
  %v1643 = vpop.f32.mrf.mxu0
  %v1644 = vadd.f32 0.0, %v1643
  %1645 = vmatmul.bf16.gmra.mxu0 %v1580
  %v1646 = vpop.f32.mrf.mxu0
  %v1647 = vadd.f32 0.0, %v1646
  %v1648 = vpop.f32.mrf.mxu0
  %v1649 = vadd.f32 0.0, %v1648
  %1650 = vmatmul.bf16.gmra.mxu0 %v1583
  %v1651 = vpop.f32.mrf.mxu0
  %v1652 = vadd.f32 0.0, %v1651
  %v1653 = vpop.f32.mrf.mxu0
  %v1654 = vadd.f32 0.0, %v1653
  %1655 = vmatmul.bf16.gmra.mxu0 %v1586
  %v1656 = vpop.f32.mrf.mxu0
  %v1657 = vadd.f32 0.0, %v1656
  %v1658 = vpop.f32.mrf.mxu0
  %v1659 = vadd.f32 0.0, %v1658
  %1660 = vmatmul.bf16.gmra.mxu0 %v1589
  %v1661 = vpop.f32.mrf.mxu0
  %v1662 = vadd.f32 0.0, %v1661
  %v1663 = vpop.f32.mrf.mxu0
  %v1664 = vadd.f32 0.0, %v1663
  %1665 = vmatmul.bf16.gmra.mxu0 %v1592
  %v1666 = vpop.f32.mrf.mxu0
  %v1667 = vadd.f32 0.0, %v1666
  %v1668 = vpop.f32.mrf.mxu0
  %v1669 = vadd.f32 0.0, %v1668
  %1670 = vmatmul.bf16.gmra.mxu0 %v1595
  %v1671 = vpop.f32.mrf.mxu0
  %v1672 = vadd.f32 0.0, %v1671
  %v1673 = vpop.f32.mrf.mxu0
  %v1674 = vadd.f32 0.0, %v1673
  %1675 = vmatmul.bf16.gmra.mxu0 %v1598
  %v1676 = vpop.f32.mrf.mxu0
  %v1677 = vadd.f32 0.0, %v1676
  %v1678 = vpop.f32.mrf.mxu0
  %v1679 = vadd.f32 0.0, %v1678
  %1680 = vmatmul.bf16.gmra.mxu0 %v1601
  %v1681 = vpop.f32.mrf.mxu0
  %v1682 = vadd.f32 0.0, %v1681
  %v1683 = vpop.f32.mrf.mxu0
  %v1684 = vadd.f32 0.0, %v1683
  %1685 = vmatmul.bf16.gmra.mxu0 %v1604
  %v1686 = vpop.f32.mrf.mxu0
  %v1687 = vadd.f32 0.0, %v1686
  %v1688 = vpop.f32.mrf.mxu0
  %v1689 = vadd.f32 0.0, %v1688
  %1690 = vmatmul.bf16.gmra.mxu0 %v1607
  %v1691 = vpop.f32.mrf.mxu0
  %v1692 = vadd.f32 0.0, %v1691
  %v1693 = vpop.f32.mrf.mxu0
  %v1694 = vadd.f32 0.0, %v1693
  %1695 = vmatmul.bf16.gmra.mxu0 %v1610
  %v1696 = vpop.f32.mrf.mxu0
  %v1697 = vadd.f32 0.0, %v1696
  %v1698 = vpop.f32.mrf.mxu0
  %v1699 = vadd.f32 0.0, %v1698
  %1700 = vdwg.mxu0
  %v1701 = vadd.f32 %v1475, %v1622
  %v1702 = vadd.f32 %v1476, %v1624
  %v1703 = vadd.f32 %v1477, %v1627
  %v1704 = vadd.f32 %v1478, %v1629
  %v1705 = vadd.f32 %v1479, %v1632
  %v1706 = vadd.f32 %v1480, %v1634
  %v1707 = vadd.f32 %v1481, %v1637
  %v1708 = vadd.f32 %v1482, %v1639
  %v1709 = vadd.f32 %v1483, %v1642
  %v1710 = vadd.f32 %v1484, %v1644
  %v1711 = vadd.f32 %v1485, %v1647
  %v1712 = vadd.f32 %v1486, %v1649
  %v1713 = vadd.f32 %v1487, %v1652
  %v1714 = vadd.f32 %v1488, %v1654
  %v1715 = vadd.f32 %v1489, %v1657
  %v1716 = vadd.f32 %v1490, %v1659
  %v1717 = vadd.f32 %v1491, %v1662
  %v1718 = vadd.f32 %v1492, %v1664
  %v1719 = vadd.f32 %v1493, %v1667
  %v1720 = vadd.f32 %v1494, %v1669
  %v1721 = vadd.f32 %v1495, %v1672
  %v1722 = vadd.f32 %v1496, %v1674
  %v1723 = vadd.f32 %v1497, %v1677
  %v1724 = vadd.f32 %v1498, %v1679
  %v1725 = vadd.f32 %v1499, %v1682
  %v1726 = vadd.f32 %v1500, %v1684
  %v1727 = vadd.f32 %v1501, %v1687
  %v1728 = vadd.f32 %v1502, %v1689
  %v1729 = vadd.f32 %v1503, %v1692
  %v1730 = vadd.f32 %v1504, %v1694
  %v1731 = vadd.f32 %v1505, %v1697
  %v1732 = vadd.f32 %v1506, %v1699
  %v1733 = vld [vmem:[#allocation2 + $0x7] sm:$0xff]
  %v1734 = vld [vmem:[#allocation2 + $0xf] sm:$0xff]
  %v1735 = vld [vmem:[#allocation2 + $0x17] sm:$0xff]
  %v1736 = vld [vmem:[#allocation2 + $0x1f] sm:$0xff]
  %v1737 = vld [vmem:[#allocation2 + $0x27] sm:$0xff]
  %v1738 = vld [vmem:[#allocation2 + $0x2f] sm:$0xff]
  %v1739 = vld [vmem:[#allocation2 + $0x37] sm:$0xff]
  %v1740 = vld [vmem:[#allocation2 + $0x3f] sm:$0xff]
  %v1741 = vld [vmem:[#allocation2 + $0x47] sm:$0xff]
  %v1742 = vld [vmem:[#allocation2 + $0x4f] sm:$0xff]
  %v1743 = vld [vmem:[#allocation2 + $0x57] sm:$0xff]
  %v1744 = vld [vmem:[#allocation2 + $0x5f] sm:$0xff]
  %v1745 = vld [vmem:[#allocation2 + $0x67] sm:$0xff]
  %v1746 = vld [vmem:[#allocation2 + $0x6f] sm:$0xff]
  %v1747 = vld [vmem:[#allocation2 + $0x77] sm:$0xff]
  %v1748 = vld [vmem:[#allocation2 + $0x7f] sm:$0xff]
  %v1749 = vld [vmem:[#allocation2 + $0x87] sm:$0xff]
  %v1750 = vld [vmem:[#allocation2 + $0x8f] sm:$0xff]
  %v1751 = vld [vmem:[#allocation2 + $0x97] sm:$0xff]
  %v1752 = vld [vmem:[#allocation2 + $0x9f] sm:$0xff]
  %v1753 = vld [vmem:[#allocation2 + $0xa7] sm:$0xff]
  %v1754 = vld [vmem:[#allocation2 + $0xaf] sm:$0xff]
  %v1755 = vld [vmem:[#allocation2 + $0xb7] sm:$0xff]
  %v1756 = vld [vmem:[#allocation2 + $0xbf] sm:$0xff]
  %v1757 = vld [vmem:[#allocation2 + $0xc7] sm:$0xff]
  %v1758 = vld [vmem:[#allocation2 + $0xcf] sm:$0xff]
  %v1759 = vld [vmem:[#allocation2 + $0xd7] sm:$0xff]
  %v1760 = vld [vmem:[#allocation2 + $0xdf] sm:$0xff]
  %v1761 = vld [vmem:[#allocation2 + $0xe7] sm:$0xff]
  %v1762 = vld [vmem:[#allocation2 + $0xef] sm:$0xff]
  %v1763 = vld [vmem:[#allocation2 + $0xf7] sm:$0xff]
  %v1764 = vld [vmem:[#allocation2 + $0xff] sm:$0xff]
  %v1765 = vpack.c.bf16 %v1734, %v1733
  %v1766 = vpack.c.bf16 %v1736, %v1735
  %v1767 = vpack.c.bf16 %v1738, %v1737
  %v1768 = vpack.c.bf16 %v1740, %v1739
  %v1769 = vpack.c.bf16 %v1742, %v1741
  %v1770 = vpack.c.bf16 %v1744, %v1743
  %v1771 = vpack.c.bf16 %v1746, %v1745
  %v1772 = vpack.c.bf16 %v1748, %v1747
  %v1773 = vpack.c.bf16 %v1750, %v1749
  %v1774 = vpack.c.bf16 %v1752, %v1751
  %v1775 = vpack.c.bf16 %v1754, %v1753
  %v1776 = vpack.c.bf16 %v1756, %v1755
  %v1777 = vpack.c.bf16 %v1758, %v1757
  %v1778 = vpack.c.bf16 %v1760, %v1759
  %v1779 = vpack.c.bf16 %v1762, %v1761
  %v1780 = vpack.c.bf16 %v1764, %v1763
  %s1781 = scalar_lea.vmem %s1, 56
  %v1782 = vld [vmem:[%s1781] sm:$0xf]
  %v1783 = vld [vmem:[%s1781 + $0x4] sm:$0xf]
  %v1786 = vunpack.c.l.b16 %v1782
  %v1787 = vunpack.c.l.b16 %v1783
  %v1788 = vpack.c.b16 %v1787, %v1786
  %v1791 = vsel %vm83, %v1765, 0
  %v1794 = vsel %vm83, %v1766, 0
  %v1797 = vsel %vm83, %v1767, 0
  %v1800 = vsel %vm83, %v1768, 0
  %v1803 = vsel %vm83, %v1769, 0
  %v1806 = vsel %vm83, %v1770, 0
  %v1809 = vsel %vm83, %v1771, 0
  %v1812 = vsel %vm83, %v1772, 0
  %v1815 = vsel %vm83, %v1773, 0
  %v1818 = vsel %vm83, %v1774, 0
  %v1821 = vsel %vm83, %v1775, 0
  %v1824 = vsel %vm83, %v1776, 0
  %v1827 = vsel %vm83, %v1777, 0
  %v1830 = vsel %vm83, %v1778, 0
  %v1833 = vsel %vm83, %v1779, 0
  %v1836 = vsel %vm83, %v1780, 0
  %1838 = vmatpush.bf16.msra.mxu0 0
  %1839 = vmatpush.bf16.msra.mxu0 0
  %1840 = vmatpush.bf16.msra.mxu0 0
  %1841 = vmatpush.bf16.msra.mxu0 0
  %1842 = vmatpush.bf16.msra.mxu0 0
  %1843 = vmatpush.bf16.msra.mxu0 0
  %1844 = vmatpush.bf16.msra.mxu0 0
  %1845 = vmatpush.bf16.msra.mxu0 %v1788
  %1846 = vmatmul.bf16.gmra.mxu0 %v1791
  %v1847 = vpop.f32.mrf.mxu0
  %v1848 = vadd.f32 0.0, %v1847
  %v1849 = vpop.f32.mrf.mxu0
  %v1850 = vadd.f32 0.0, %v1849
  %1851 = vmatmul.bf16.gmra.mxu0 %v1794
  %v1852 = vpop.f32.mrf.mxu0
  %v1853 = vadd.f32 0.0, %v1852
  %v1854 = vpop.f32.mrf.mxu0
  %v1855 = vadd.f32 0.0, %v1854
  %1856 = vmatmul.bf16.gmra.mxu0 %v1797
  %v1857 = vpop.f32.mrf.mxu0
  %v1858 = vadd.f32 0.0, %v1857
  %v1859 = vpop.f32.mrf.mxu0
  %v1860 = vadd.f32 0.0, %v1859
  %1861 = vmatmul.bf16.gmra.mxu0 %v1800
  %v1862 = vpop.f32.mrf.mxu0
  %v1863 = vadd.f32 0.0, %v1862
  %v1864 = vpop.f32.mrf.mxu0
  %v1865 = vadd.f32 0.0, %v1864
  %1866 = vmatmul.bf16.gmra.mxu0 %v1803
  %v1867 = vpop.f32.mrf.mxu0
  %v1868 = vadd.f32 0.0, %v1867
  %v1869 = vpop.f32.mrf.mxu0
  %v1870 = vadd.f32 0.0, %v1869
  %1871 = vmatmul.bf16.gmra.mxu0 %v1806
  %v1872 = vpop.f32.mrf.mxu0
  %v1873 = vadd.f32 0.0, %v1872
  %v1874 = vpop.f32.mrf.mxu0
  %v1875 = vadd.f32 0.0, %v1874
  %1876 = vmatmul.bf16.gmra.mxu0 %v1809
  %v1877 = vpop.f32.mrf.mxu0
  %v1878 = vadd.f32 0.0, %v1877
  %v1879 = vpop.f32.mrf.mxu0
  %v1880 = vadd.f32 0.0, %v1879
  %1881 = vmatmul.bf16.gmra.mxu0 %v1812
  %v1882 = vpop.f32.mrf.mxu0
  %v1883 = vadd.f32 0.0, %v1882
  %v1884 = vpop.f32.mrf.mxu0
  %v1885 = vadd.f32 0.0, %v1884
  %1886 = vmatmul.bf16.gmra.mxu0 %v1815
  %v1887 = vpop.f32.mrf.mxu0
  %v1888 = vadd.f32 0.0, %v1887
  %v1889 = vpop.f32.mrf.mxu0
  %v1890 = vadd.f32 0.0, %v1889
  %1891 = vmatmul.bf16.gmra.mxu0 %v1818
  %v1892 = vpop.f32.mrf.mxu0
  %v1893 = vadd.f32 0.0, %v1892
  %v1894 = vpop.f32.mrf.mxu0
  %v1895 = vadd.f32 0.0, %v1894
  %1896 = vmatmul.bf16.gmra.mxu0 %v1821
  %v1897 = vpop.f32.mrf.mxu0
  %v1898 = vadd.f32 0.0, %v1897
  %v1899 = vpop.f32.mrf.mxu0
  %v1900 = vadd.f32 0.0, %v1899
  %1901 = vmatmul.bf16.gmra.mxu0 %v1824
  %v1902 = vpop.f32.mrf.mxu0
  %v1903 = vadd.f32 0.0, %v1902
  %v1904 = vpop.f32.mrf.mxu0
  %v1905 = vadd.f32 0.0, %v1904
  %1906 = vmatmul.bf16.gmra.mxu0 %v1827
  %v1907 = vpop.f32.mrf.mxu0
  %v1908 = vadd.f32 0.0, %v1907
  %v1909 = vpop.f32.mrf.mxu0
  %v1910 = vadd.f32 0.0, %v1909
  %1911 = vmatmul.bf16.gmra.mxu0 %v1830
  %v1912 = vpop.f32.mrf.mxu0
  %v1913 = vadd.f32 0.0, %v1912
  %v1914 = vpop.f32.mrf.mxu0
  %v1915 = vadd.f32 0.0, %v1914
  %1916 = vmatmul.bf16.gmra.mxu0 %v1833
  %v1917 = vpop.f32.mrf.mxu0
  %v1918 = vadd.f32 0.0, %v1917
  %v1919 = vpop.f32.mrf.mxu0
  %v1920 = vadd.f32 0.0, %v1919
  %1921 = vmatmul.bf16.gmra.mxu0 %v1836
  %v1922 = vpop.f32.mrf.mxu0
  %v1923 = vadd.f32 0.0, %v1922
  %v1924 = vpop.f32.mrf.mxu0
  %v1925 = vadd.f32 0.0, %v1924
  %1926 = vdwg.mxu0
  %v1927 = vadd.f32 %v1701, %v1848
  %v1928 = vadd.f32 %v1702, %v1850
  %v1929 = vadd.f32 %v1703, %v1853
  %v1930 = vadd.f32 %v1704, %v1855
  %v1931 = vadd.f32 %v1705, %v1858
  %v1932 = vadd.f32 %v1706, %v1860
  %v1933 = vadd.f32 %v1707, %v1863
  %v1934 = vadd.f32 %v1708, %v1865
  %v1935 = vadd.f32 %v1709, %v1868
  %v1936 = vadd.f32 %v1710, %v1870
  %v1937 = vadd.f32 %v1711, %v1873
  %v1938 = vadd.f32 %v1712, %v1875
  %v1939 = vadd.f32 %v1713, %v1878
  %v1940 = vadd.f32 %v1714, %v1880
  %v1941 = vadd.f32 %v1715, %v1883
  %v1942 = vadd.f32 %v1716, %v1885
  %v1943 = vadd.f32 %v1717, %v1888
  %v1944 = vadd.f32 %v1718, %v1890
  %v1945 = vadd.f32 %v1719, %v1893
  %v1946 = vadd.f32 %v1720, %v1895
  %v1947 = vadd.f32 %v1721, %v1898
  %v1948 = vadd.f32 %v1722, %v1900
  %v1949 = vadd.f32 %v1723, %v1903
  %v1950 = vadd.f32 %v1724, %v1905
  %v1951 = vadd.f32 %v1725, %v1908
  %v1952 = vadd.f32 %v1726, %v1910
  %v1953 = vadd.f32 %v1727, %v1913
  %v1954 = vadd.f32 %v1728, %v1915
  %v1955 = vadd.f32 %v1729, %v1918
  %v1956 = vadd.f32 %v1730, %v1920
  %v1957 = vadd.f32 %v1731, %v1923
  %v1958 = vadd.f32 %v1732, %v1925
  %v1959 = vld [vmem:[%s183] sm:$0xff]
  %v1960 = vld [vmem:[%s183 + $0x8] sm:$0xff]
  %v1961 = vld [vmem:[%s183 + $0x10] sm:$0xff]
  %v1962 = vld [vmem:[%s183 + $0x18] sm:$0xff]
  %v1963 = vld [vmem:[%s183 + $0x20] sm:$0xff]
  %v1964 = vld [vmem:[%s183 + $0x28] sm:$0xff]
  %v1965 = vld [vmem:[%s183 + $0x30] sm:$0xff]
  %v1966 = vld [vmem:[%s183 + $0x38] sm:$0xff]
  %v1967 = vld [vmem:[%s183 + $0x40] sm:$0xff]
  %v1968 = vld [vmem:[%s183 + $0x48] sm:$0xff]
  %v1969 = vld [vmem:[%s183 + $0x50] sm:$0xff]
  %v1970 = vld [vmem:[%s183 + $0x58] sm:$0xff]
  %v1971 = vld [vmem:[%s183 + $0x60] sm:$0xff]
  %v1972 = vld [vmem:[%s183 + $0x68] sm:$0xff]
  %v1973 = vld [vmem:[%s183 + $0x70] sm:$0xff]
  %v1974 = vld [vmem:[%s183 + $0x78] sm:$0xff]
  %v1975 = vld [vmem:[%s183 + $0x80] sm:$0xff]
  %v1976 = vld [vmem:[%s183 + $0x88] sm:$0xff]
  %v1977 = vld [vmem:[%s183 + $0x90] sm:$0xff]
  %v1978 = vld [vmem:[%s183 + $0x98] sm:$0xff]
  %v1979 = vld [vmem:[%s183 + $0xa0] sm:$0xff]
  %v1980 = vld [vmem:[%s183 + $0xa8] sm:$0xff]
  %v1981 = vld [vmem:[%s183 + $0xb0] sm:$0xff]
  %v1982 = vld [vmem:[%s183 + $0xb8] sm:$0xff]
  %v1983 = vld [vmem:[%s183 + $0xc0] sm:$0xff]
  %v1984 = vld [vmem:[%s183 + $0xc8] sm:$0xff]
  %v1985 = vld [vmem:[%s183 + $0xd0] sm:$0xff]
  %v1986 = vld [vmem:[%s183 + $0xd8] sm:$0xff]
  %v1987 = vld [vmem:[%s183 + $0xe0] sm:$0xff]
  %v1988 = vld [vmem:[%s183 + $0xe8] sm:$0xff]
  %v1989 = vld [vmem:[%s183 + $0xf0] sm:$0xff]
  %v1990 = vld [vmem:[%s183 + $0xf8] sm:$0xff]
  %v1991 = vpack.c.bf16 %v1960, %v1959
  %v1992 = vpack.c.bf16 %v1962, %v1961
  %v1993 = vpack.c.bf16 %v1964, %v1963
  %v1994 = vpack.c.bf16 %v1966, %v1965
  %v1995 = vpack.c.bf16 %v1968, %v1967
  %v1996 = vpack.c.bf16 %v1970, %v1969
  %v1997 = vpack.c.bf16 %v1972, %v1971
  %v1998 = vpack.c.bf16 %v1974, %v1973
  %v1999 = vpack.c.bf16 %v1976, %v1975
  %v2000 = vpack.c.bf16 %v1978, %v1977
  %v2001 = vpack.c.bf16 %v1980, %v1979
  %v2002 = vpack.c.bf16 %v1982, %v1981
  %v2003 = vpack.c.bf16 %v1984, %v1983
  %v2004 = vpack.c.bf16 %v1986, %v1985
  %v2005 = vpack.c.bf16 %v1988, %v1987
  %v2006 = vpack.c.bf16 %v1990, %v1989
  %v2007 = vld [vmem:[%s183 + $0x1] sm:$0xff]
  %v2008 = vld [vmem:[%s183 + $0x9] sm:$0xff]
  %v2009 = vld [vmem:[%s183 + $0x11] sm:$0xff]
  %v2010 = vld [vmem:[%s183 + $0x19] sm:$0xff]
  %v2011 = vld [vmem:[%s183 + $0x21] sm:$0xff]
  %v2012 = vld [vmem:[%s183 + $0x29] sm:$0xff]
  %v2013 = vld [vmem:[%s183 + $0x31] sm:$0xff]
  %v2014 = vld [vmem:[%s183 + $0x39] sm:$0xff]
  %v2015 = vld [vmem:[%s183 + $0x41] sm:$0xff]
  %v2016 = vld [vmem:[%s183 + $0x49] sm:$0xff]
  %v2017 = vld [vmem:[%s183 + $0x51] sm:$0xff]
  %v2018 = vld [vmem:[%s183 + $0x59] sm:$0xff]
  %v2019 = vld [vmem:[%s183 + $0x61] sm:$0xff]
  %v2020 = vld [vmem:[%s183 + $0x69] sm:$0xff]
  %v2021 = vld [vmem:[%s183 + $0x71] sm:$0xff]
  %v2022 = vld [vmem:[%s183 + $0x79] sm:$0xff]
  %v2023 = vld [vmem:[%s183 + $0x81] sm:$0xff]
  %v2024 = vld [vmem:[%s183 + $0x89] sm:$0xff]
  %v2025 = vld [vmem:[%s183 + $0x91] sm:$0xff]
  %v2026 = vld [vmem:[%s183 + $0x99] sm:$0xff]
  %v2027 = vld [vmem:[%s183 + $0xa1] sm:$0xff]
  %v2028 = vld [vmem:[%s183 + $0xa9] sm:$0xff]
  %v2029 = vld [vmem:[%s183 + $0xb1] sm:$0xff]
  %v2030 = vld [vmem:[%s183 + $0xb9] sm:$0xff]
  %v2031 = vld [vmem:[%s183 + $0xc1] sm:$0xff]
  %v2032 = vld [vmem:[%s183 + $0xc9] sm:$0xff]
  %v2033 = vld [vmem:[%s183 + $0xd1] sm:$0xff]
  %v2034 = vld [vmem:[%s183 + $0xd9] sm:$0xff]
  %v2035 = vld [vmem:[%s183 + $0xe1] sm:$0xff]
  %v2036 = vld [vmem:[%s183 + $0xe9] sm:$0xff]
  %v2037 = vld [vmem:[%s183 + $0xf1] sm:$0xff]
  %v2038 = vld [vmem:[%s183 + $0xf9] sm:$0xff]
  %v2039 = vpack.c.bf16 %v2008, %v2007
  %v2040 = vpack.c.bf16 %v2010, %v2009
  %v2041 = vpack.c.bf16 %v2012, %v2011
  %v2042 = vpack.c.bf16 %v2014, %v2013
  %v2043 = vpack.c.bf16 %v2016, %v2015
  %v2044 = vpack.c.bf16 %v2018, %v2017
  %v2045 = vpack.c.bf16 %v2020, %v2019
  %v2046 = vpack.c.bf16 %v2022, %v2021
  %v2047 = vpack.c.bf16 %v2024, %v2023
  %v2048 = vpack.c.bf16 %v2026, %v2025
  %v2049 = vpack.c.bf16 %v2028, %v2027
  %v2050 = vpack.c.bf16 %v2030, %v2029
  %v2051 = vpack.c.bf16 %v2032, %v2031
  %v2052 = vpack.c.bf16 %v2034, %v2033
  %v2053 = vpack.c.bf16 %v2036, %v2035
  %v2054 = vpack.c.bf16 %v2038, %v2037
  %v2056 = vsel %vm83, %v2039, 0
  %v2059 = vsel %vm83, %v2040, 0
  %v2062 = vsel %vm83, %v2041, 0
  %v2065 = vsel %vm83, %v2042, 0
  %v2068 = vsel %vm83, %v2043, 0
  %v2071 = vsel %vm83, %v2044, 0
  %v2074 = vsel %vm83, %v2045, 0
  %v2077 = vsel %vm83, %v2046, 0
  %v2080 = vsel %vm83, %v2047, 0
  %v2083 = vsel %vm83, %v2048, 0
  %v2086 = vsel %vm83, %v2049, 0
  %v2089 = vsel %vm83, %v2050, 0
  %v2092 = vsel %vm83, %v2051, 0
  %v2095 = vsel %vm83, %v2052, 0
  %v2098 = vsel %vm83, %v2053, 0
  %v2101 = vsel %vm83, %v2054, 0
  %2103 = vmatpush.bf16.msra.mxu0 0
  %2104 = vmatpush.bf16.msra.mxu0 0
  %2105 = vmatpush.bf16.msra.mxu0 0
  %2106 = vmatpush.bf16.msra.mxu0 0
  %2107 = vmatpush.bf16.msra.mxu0 0
  %2108 = vmatpush.bf16.msra.mxu0 0
  %2109 = vmatpush.bf16.msra.mxu0 0
  %2110 = vmatpush.bf16.msra.mxu0 %v321
  %2111 = vmatmul.bf16.gmra.mxu0 %v2056
  %v2112 = vpop.f32.mrf.mxu0
  %v2113 = vadd.f32 0.0, %v2112
  %v2114 = vpop.f32.mrf.mxu0
  %v2115 = vadd.f32 0.0, %v2114
  %2116 = vmatmul.bf16.gmra.mxu0 %v2059
  %v2117 = vpop.f32.mrf.mxu0
  %v2118 = vadd.f32 0.0, %v2117
  %v2119 = vpop.f32.mrf.mxu0
  %v2120 = vadd.f32 0.0, %v2119
  %2121 = vmatmul.bf16.gmra.mxu0 %v2062
  %v2122 = vpop.f32.mrf.mxu0
  %v2123 = vadd.f32 0.0, %v2122
  %v2124 = vpop.f32.mrf.mxu0
  %v2125 = vadd.f32 0.0, %v2124
  %2126 = vmatmul.bf16.gmra.mxu0 %v2065
  %v2127 = vpop.f32.mrf.mxu0
  %v2128 = vadd.f32 0.0, %v2127
  %v2129 = vpop.f32.mrf.mxu0
  %v2130 = vadd.f32 0.0, %v2129
  %2131 = vmatmul.bf16.gmra.mxu0 %v2068
  %v2132 = vpop.f32.mrf.mxu0
  %v2133 = vadd.f32 0.0, %v2132
  %v2134 = vpop.f32.mrf.mxu0
  %v2135 = vadd.f32 0.0, %v2134
  %2136 = vmatmul.bf16.gmra.mxu0 %v2071
  %v2137 = vpop.f32.mrf.mxu0
  %v2138 = vadd.f32 0.0, %v2137
  %v2139 = vpop.f32.mrf.mxu0
  %v2140 = vadd.f32 0.0, %v2139
  %2141 = vmatmul.bf16.gmra.mxu0 %v2074
  %v2142 = vpop.f32.mrf.mxu0
  %v2143 = vadd.f32 0.0, %v2142
  %v2144 = vpop.f32.mrf.mxu0
  %v2145 = vadd.f32 0.0, %v2144
  %2146 = vmatmul.bf16.gmra.mxu0 %v2077
  %v2147 = vpop.f32.mrf.mxu0
  %v2148 = vadd.f32 0.0, %v2147
  %v2149 = vpop.f32.mrf.mxu0
  %v2150 = vadd.f32 0.0, %v2149
  %2151 = vmatmul.bf16.gmra.mxu0 %v2080
  %v2152 = vpop.f32.mrf.mxu0
  %v2153 = vadd.f32 0.0, %v2152
  %v2154 = vpop.f32.mrf.mxu0
  %v2155 = vadd.f32 0.0, %v2154
  %2156 = vmatmul.bf16.gmra.mxu0 %v2083
  %v2157 = vpop.f32.mrf.mxu0
  %v2158 = vadd.f32 0.0, %v2157
  %v2159 = vpop.f32.mrf.mxu0
  %v2160 = vadd.f32 0.0, %v2159
  %2161 = vmatmul.bf16.gmra.mxu0 %v2086
  %v2162 = vpop.f32.mrf.mxu0
  %v2163 = vadd.f32 0.0, %v2162
  %v2164 = vpop.f32.mrf.mxu0
  %v2165 = vadd.f32 0.0, %v2164
  %2166 = vmatmul.bf16.gmra.mxu0 %v2089
  %v2167 = vpop.f32.mrf.mxu0
  %v2168 = vadd.f32 0.0, %v2167
  %v2169 = vpop.f32.mrf.mxu0
  %v2170 = vadd.f32 0.0, %v2169
  %2171 = vmatmul.bf16.gmra.mxu0 %v2092
  %v2172 = vpop.f32.mrf.mxu0
  %v2173 = vadd.f32 0.0, %v2172
  %v2174 = vpop.f32.mrf.mxu0
  %v2175 = vadd.f32 0.0, %v2174
  %2176 = vmatmul.bf16.gmra.mxu0 %v2095
  %v2177 = vpop.f32.mrf.mxu0
  %v2178 = vadd.f32 0.0, %v2177
  %v2179 = vpop.f32.mrf.mxu0
  %v2180 = vadd.f32 0.0, %v2179
  %2181 = vmatmul.bf16.gmra.mxu0 %v2098
  %v2182 = vpop.f32.mrf.mxu0
  %v2183 = vadd.f32 0.0, %v2182
  %v2184 = vpop.f32.mrf.mxu0
  %v2185 = vadd.f32 0.0, %v2184
  %2186 = vmatmul.bf16.gmra.mxu0 %v2101
  %v2187 = vpop.f32.mrf.mxu0
  %v2188 = vadd.f32 0.0, %v2187
  %v2189 = vpop.f32.mrf.mxu0
  %v2190 = vadd.f32 0.0, %v2189
  %2191 = vdwg.mxu0
  %v2193 = vsel %vm83, %v1991, 0
  %v2196 = vsel %vm83, %v1992, 0
  %v2199 = vsel %vm83, %v1993, 0
  %v2202 = vsel %vm83, %v1994, 0
  %v2205 = vsel %vm83, %v1995, 0
  %v2208 = vsel %vm83, %v1996, 0
  %v2211 = vsel %vm83, %v1997, 0
  %v2214 = vsel %vm83, %v1998, 0
  %v2217 = vsel %vm83, %v1999, 0
  %v2220 = vsel %vm83, %v2000, 0
  %v2223 = vsel %vm83, %v2001, 0
  %v2226 = vsel %vm83, %v2002, 0
  %v2229 = vsel %vm83, %v2003, 0
  %v2232 = vsel %vm83, %v2004, 0
  %v2235 = vsel %vm83, %v2005, 0
  %v2238 = vsel %vm83, %v2006, 0
  %2240 = vmatpush.bf16.msra.mxu0 0
  %2241 = vmatpush.bf16.msra.mxu0 0
  %2242 = vmatpush.bf16.msra.mxu0 0
  %2243 = vmatpush.bf16.msra.mxu0 0
  %2244 = vmatpush.bf16.msra.mxu0 0
  %2245 = vmatpush.bf16.msra.mxu0 0
  %2246 = vmatpush.bf16.msra.mxu0 0
  %2247 = vmatpush.bf16.msra.mxu0 %v464
  %2248 = vmatmul.bf16.gmra.mxu0 %v2193
  %v2249 = vpop.f32.mrf.mxu0
  %v2250 = vadd.f32 %v2113, %v2249
  %v2251 = vpop.f32.mrf.mxu0
  %v2252 = vadd.f32 %v2115, %v2251
  %2253 = vmatmul.bf16.gmra.mxu0 %v2196
  %v2254 = vpop.f32.mrf.mxu0
  %v2255 = vadd.f32 %v2118, %v2254
  %v2256 = vpop.f32.mrf.mxu0
  %v2257 = vadd.f32 %v2120, %v2256
  %2258 = vmatmul.bf16.gmra.mxu0 %v2199
  %v2259 = vpop.f32.mrf.mxu0
  %v2260 = vadd.f32 %v2123, %v2259
  %v2261 = vpop.f32.mrf.mxu0
  %v2262 = vadd.f32 %v2125, %v2261
  %2263 = vmatmul.bf16.gmra.mxu0 %v2202
  %v2264 = vpop.f32.mrf.mxu0
  %v2265 = vadd.f32 %v2128, %v2264
  %v2266 = vpop.f32.mrf.mxu0
  %v2267 = vadd.f32 %v2130, %v2266
  %2268 = vmatmul.bf16.gmra.mxu0 %v2205
  %v2269 = vpop.f32.mrf.mxu0
  %v2270 = vadd.f32 %v2133, %v2269
  %v2271 = vpop.f32.mrf.mxu0
  %v2272 = vadd.f32 %v2135, %v2271
  %2273 = vmatmul.bf16.gmra.mxu0 %v2208
  %v2274 = vpop.f32.mrf.mxu0
  %v2275 = vadd.f32 %v2138, %v2274
  %v2276 = vpop.f32.mrf.mxu0
  %v2277 = vadd.f32 %v2140, %v2276
  %2278 = vmatmul.bf16.gmra.mxu0 %v2211
  %v2279 = vpop.f32.mrf.mxu0
  %v2280 = vadd.f32 %v2143, %v2279
  %v2281 = vpop.f32.mrf.mxu0
  %v2282 = vadd.f32 %v2145, %v2281
  %2283 = vmatmul.bf16.gmra.mxu0 %v2214
  %v2284 = vpop.f32.mrf.mxu0
  %v2285 = vadd.f32 %v2148, %v2284
  %v2286 = vpop.f32.mrf.mxu0
  %v2287 = vadd.f32 %v2150, %v2286
  %2288 = vmatmul.bf16.gmra.mxu0 %v2217
  %v2289 = vpop.f32.mrf.mxu0
  %v2290 = vadd.f32 %v2153, %v2289
  %v2291 = vpop.f32.mrf.mxu0
  %v2292 = vadd.f32 %v2155, %v2291
  %2293 = vmatmul.bf16.gmra.mxu0 %v2220
  %v2294 = vpop.f32.mrf.mxu0
  %v2295 = vadd.f32 %v2158, %v2294
  %v2296 = vpop.f32.mrf.mxu0
  %v2297 = vadd.f32 %v2160, %v2296
  %2298 = vmatmul.bf16.gmra.mxu0 %v2223
  %v2299 = vpop.f32.mrf.mxu0
  %v2300 = vadd.f32 %v2163, %v2299
  %v2301 = vpop.f32.mrf.mxu0
  %v2302 = vadd.f32 %v2165, %v2301
  %2303 = vmatmul.bf16.gmra.mxu0 %v2226
  %v2304 = vpop.f32.mrf.mxu0
  %v2305 = vadd.f32 %v2168, %v2304
  %v2306 = vpop.f32.mrf.mxu0
  %v2307 = vadd.f32 %v2170, %v2306
  %2308 = vmatmul.bf16.gmra.mxu0 %v2229
  %v2309 = vpop.f32.mrf.mxu0
  %v2310 = vadd.f32 %v2173, %v2309
  %v2311 = vpop.f32.mrf.mxu0
  %v2312 = vadd.f32 %v2175, %v2311
  %2313 = vmatmul.bf16.gmra.mxu0 %v2232
  %v2314 = vpop.f32.mrf.mxu0
  %v2315 = vadd.f32 %v2178, %v2314
  %v2316 = vpop.f32.mrf.mxu0
  %v2317 = vadd.f32 %v2180, %v2316
  %2318 = vmatmul.bf16.gmra.mxu0 %v2235
  %v2319 = vpop.f32.mrf.mxu0
  %v2320 = vadd.f32 %v2183, %v2319
  %v2321 = vpop.f32.mrf.mxu0
  %v2322 = vadd.f32 %v2185, %v2321
  %2323 = vmatmul.bf16.gmra.mxu0 %v2238
  %v2324 = vpop.f32.mrf.mxu0
  %v2325 = vadd.f32 %v2188, %v2324
  %v2326 = vpop.f32.mrf.mxu0
  %v2327 = vadd.f32 %v2190, %v2326
  %2328 = vdwg.mxu0
  %v2329 = vld [vmem:[%s183 + $0x2] sm:$0xff]
  %v2330 = vld [vmem:[%s183 + $0xa] sm:$0xff]
  %v2331 = vld [vmem:[%s183 + $0x12] sm:$0xff]
  %v2332 = vld [vmem:[%s183 + $0x1a] sm:$0xff]
  %v2333 = vld [vmem:[%s183 + $0x22] sm:$0xff]
  %v2334 = vld [vmem:[%s183 + $0x2a] sm:$0xff]
  %v2335 = vld [vmem:[%s183 + $0x32] sm:$0xff]
  %v2336 = vld [vmem:[%s183 + $0x3a] sm:$0xff]
  %v2337 = vld [vmem:[%s183 + $0x42] sm:$0xff]
  %v2338 = vld [vmem:[%s183 + $0x4a] sm:$0xff]
  %v2339 = vld [vmem:[%s183 + $0x52] sm:$0xff]
  %v2340 = vld [vmem:[%s183 + $0x5a] sm:$0xff]
  %v2341 = vld [vmem:[%s183 + $0x62] sm:$0xff]
  %v2342 = vld [vmem:[%s183 + $0x6a] sm:$0xff]
  %v2343 = vld [vmem:[%s183 + $0x72] sm:$0xff]
  %v2344 = vld [vmem:[%s183 + $0x7a] sm:$0xff]
  %v2345 = vld [vmem:[%s183 + $0x82] sm:$0xff]
  %v2346 = vld [vmem:[%s183 + $0x8a] sm:$0xff]
  %v2347 = vld [vmem:[%s183 + $0x92] sm:$0xff]
  %v2348 = vld [vmem:[%s183 + $0x9a] sm:$0xff]
  %v2349 = vld [vmem:[%s183 + $0xa2] sm:$0xff]
  %v2350 = vld [vmem:[%s183 + $0xaa] sm:$0xff]
  %v2351 = vld [vmem:[%s183 + $0xb2] sm:$0xff]
  %v2352 = vld [vmem:[%s183 + $0xba] sm:$0xff]
  %v2353 = vld [vmem:[%s183 + $0xc2] sm:$0xff]
  %v2354 = vld [vmem:[%s183 + $0xca] sm:$0xff]
  %v2355 = vld [vmem:[%s183 + $0xd2] sm:$0xff]
  %v2356 = vld [vmem:[%s183 + $0xda] sm:$0xff]
  %v2357 = vld [vmem:[%s183 + $0xe2] sm:$0xff]
  %v2358 = vld [vmem:[%s183 + $0xea] sm:$0xff]
  %v2359 = vld [vmem:[%s183 + $0xf2] sm:$0xff]
  %v2360 = vld [vmem:[%s183 + $0xfa] sm:$0xff]
  %v2361 = vpack.c.bf16 %v2330, %v2329
  %v2362 = vpack.c.bf16 %v2332, %v2331
  %v2363 = vpack.c.bf16 %v2334, %v2333
  %v2364 = vpack.c.bf16 %v2336, %v2335
  %v2365 = vpack.c.bf16 %v2338, %v2337
  %v2366 = vpack.c.bf16 %v2340, %v2339
  %v2367 = vpack.c.bf16 %v2342, %v2341
  %v2368 = vpack.c.bf16 %v2344, %v2343
  %v2369 = vpack.c.bf16 %v2346, %v2345
  %v2370 = vpack.c.bf16 %v2348, %v2347
  %v2371 = vpack.c.bf16 %v2350, %v2349
  %v2372 = vpack.c.bf16 %v2352, %v2351
  %v2373 = vpack.c.bf16 %v2354, %v2353
  %v2374 = vpack.c.bf16 %v2356, %v2355
  %v2375 = vpack.c.bf16 %v2358, %v2357
  %v2376 = vpack.c.bf16 %v2360, %v2359
  %v2378 = vsel %vm83, %v2361, 0
  %v2381 = vsel %vm83, %v2362, 0
  %v2384 = vsel %vm83, %v2363, 0
  %v2387 = vsel %vm83, %v2364, 0
  %v2390 = vsel %vm83, %v2365, 0
  %v2393 = vsel %vm83, %v2366, 0
  %v2396 = vsel %vm83, %v2367, 0
  %v2399 = vsel %vm83, %v2368, 0
  %v2402 = vsel %vm83, %v2369, 0
  %v2405 = vsel %vm83, %v2370, 0
  %v2408 = vsel %vm83, %v2371, 0
  %v2411 = vsel %vm83, %v2372, 0
  %v2414 = vsel %vm83, %v2373, 0
  %v2417 = vsel %vm83, %v2374, 0
  %v2420 = vsel %vm83, %v2375, 0
  %v2423 = vsel %vm83, %v2376, 0
  %2425 = vmatpush.bf16.msra.mxu0 0
  %2426 = vmatpush.bf16.msra.mxu0 0
  %2427 = vmatpush.bf16.msra.mxu0 0
  %2428 = vmatpush.bf16.msra.mxu0 0
  %2429 = vmatpush.bf16.msra.mxu0 0
  %2430 = vmatpush.bf16.msra.mxu0 0
  %2431 = vmatpush.bf16.msra.mxu0 0
  %2432 = vmatpush.bf16.msra.mxu0 %v658
  %2433 = vmatmul.bf16.gmra.mxu0 %v2378
  %v2434 = vpop.f32.mrf.mxu0
  %v2435 = vadd.f32 0.0, %v2434
  %v2436 = vpop.f32.mrf.mxu0
  %v2437 = vadd.f32 0.0, %v2436
  %2438 = vmatmul.bf16.gmra.mxu0 %v2381
  %v2439 = vpop.f32.mrf.mxu0
  %v2440 = vadd.f32 0.0, %v2439
  %v2441 = vpop.f32.mrf.mxu0
  %v2442 = vadd.f32 0.0, %v2441
  %2443 = vmatmul.bf16.gmra.mxu0 %v2384
  %v2444 = vpop.f32.mrf.mxu0
  %v2445 = vadd.f32 0.0, %v2444
  %v2446 = vpop.f32.mrf.mxu0
  %v2447 = vadd.f32 0.0, %v2446
  %2448 = vmatmul.bf16.gmra.mxu0 %v2387
  %v2449 = vpop.f32.mrf.mxu0
  %v2450 = vadd.f32 0.0, %v2449
  %v2451 = vpop.f32.mrf.mxu0
  %v2452 = vadd.f32 0.0, %v2451
  %2453 = vmatmul.bf16.gmra.mxu0 %v2390
  %v2454 = vpop.f32.mrf.mxu0
  %v2455 = vadd.f32 0.0, %v2454
  %v2456 = vpop.f32.mrf.mxu0
  %v2457 = vadd.f32 0.0, %v2456
  %2458 = vmatmul.bf16.gmra.mxu0 %v2393
  %v2459 = vpop.f32.mrf.mxu0
  %v2460 = vadd.f32 0.0, %v2459
  %v2461 = vpop.f32.mrf.mxu0
  %v2462 = vadd.f32 0.0, %v2461
  %2463 = vmatmul.bf16.gmra.mxu0 %v2396
  %v2464 = vpop.f32.mrf.mxu0
  %v2465 = vadd.f32 0.0, %v2464
  %v2466 = vpop.f32.mrf.mxu0
  %v2467 = vadd.f32 0.0, %v2466
  %2468 = vmatmul.bf16.gmra.mxu0 %v2399
  %v2469 = vpop.f32.mrf.mxu0
  %v2470 = vadd.f32 0.0, %v2469
  %v2471 = vpop.f32.mrf.mxu0
  %v2472 = vadd.f32 0.0, %v2471
  %2473 = vmatmul.bf16.gmra.mxu0 %v2402
  %v2474 = vpop.f32.mrf.mxu0
  %v2475 = vadd.f32 0.0, %v2474
  %v2476 = vpop.f32.mrf.mxu0
  %v2477 = vadd.f32 0.0, %v2476
  %2478 = vmatmul.bf16.gmra.mxu0 %v2405
  %v2479 = vpop.f32.mrf.mxu0
  %v2480 = vadd.f32 0.0, %v2479
  %v2481 = vpop.f32.mrf.mxu0
  %v2482 = vadd.f32 0.0, %v2481
  %2483 = vmatmul.bf16.gmra.mxu0 %v2408
  %v2484 = vpop.f32.mrf.mxu0
  %v2485 = vadd.f32 0.0, %v2484
  %v2486 = vpop.f32.mrf.mxu0
  %v2487 = vadd.f32 0.0, %v2486
  %2488 = vmatmul.bf16.gmra.mxu0 %v2411
  %v2489 = vpop.f32.mrf.mxu0
  %v2490 = vadd.f32 0.0, %v2489
  %v2491 = vpop.f32.mrf.mxu0
  %v2492 = vadd.f32 0.0, %v2491
  %2493 = vmatmul.bf16.gmra.mxu0 %v2414
  %v2494 = vpop.f32.mrf.mxu0
  %v2495 = vadd.f32 0.0, %v2494
  %v2496 = vpop.f32.mrf.mxu0
  %v2497 = vadd.f32 0.0, %v2496
  %2498 = vmatmul.bf16.gmra.mxu0 %v2417
  %v2499 = vpop.f32.mrf.mxu0
  %v2500 = vadd.f32 0.0, %v2499
  %v2501 = vpop.f32.mrf.mxu0
  %v2502 = vadd.f32 0.0, %v2501
  %2503 = vmatmul.bf16.gmra.mxu0 %v2420
  %v2504 = vpop.f32.mrf.mxu0
  %v2505 = vadd.f32 0.0, %v2504
  %v2506 = vpop.f32.mrf.mxu0
  %v2507 = vadd.f32 0.0, %v2506
  %2508 = vmatmul.bf16.gmra.mxu0 %v2423
  %v2509 = vpop.f32.mrf.mxu0
  %v2510 = vadd.f32 0.0, %v2509
  %v2511 = vpop.f32.mrf.mxu0
  %v2512 = vadd.f32 0.0, %v2511
  %2513 = vdwg.mxu0
  %v2514 = vadd.f32 %v2250, %v2435
  %v2515 = vadd.f32 %v2252, %v2437
  %v2516 = vadd.f32 %v2255, %v2440
  %v2517 = vadd.f32 %v2257, %v2442
  %v2518 = vadd.f32 %v2260, %v2445
  %v2519 = vadd.f32 %v2262, %v2447
  %v2520 = vadd.f32 %v2265, %v2450
  %v2521 = vadd.f32 %v2267, %v2452
  %v2522 = vadd.f32 %v2270, %v2455
  %v2523 = vadd.f32 %v2272, %v2457
  %v2524 = vadd.f32 %v2275, %v2460
  %v2525 = vadd.f32 %v2277, %v2462
  %v2526 = vadd.f32 %v2280, %v2465
  %v2527 = vadd.f32 %v2282, %v2467
  %v2528 = vadd.f32 %v2285, %v2470
  %v2529 = vadd.f32 %v2287, %v2472
  %v2530 = vadd.f32 %v2290, %v2475
  %v2531 = vadd.f32 %v2292, %v2477
  %v2532 = vadd.f32 %v2295, %v2480
  %v2533 = vadd.f32 %v2297, %v2482
  %v2534 = vadd.f32 %v2300, %v2485
  %v2535 = vadd.f32 %v2302, %v2487
  %v2536 = vadd.f32 %v2305, %v2490
  %v2537 = vadd.f32 %v2307, %v2492
  %v2538 = vadd.f32 %v2310, %v2495
  %v2539 = vadd.f32 %v2312, %v2497
  %v2540 = vadd.f32 %v2315, %v2500
  %v2541 = vadd.f32 %v2317, %v2502
  %v2542 = vadd.f32 %v2320, %v2505
  %v2543 = vadd.f32 %v2322, %v2507
  %v2544 = vadd.f32 %v2325, %v2510
  %v2545 = vadd.f32 %v2327, %v2512
  %v2546 = vld [vmem:[%s183 + $0x3] sm:$0xff]
  %v2547 = vld [vmem:[%s183 + $0xb] sm:$0xff]
  %v2548 = vld [vmem:[%s183 + $0x13] sm:$0xff]
  %v2549 = vld [vmem:[%s183 + $0x1b] sm:$0xff]
  %v2550 = vld [vmem:[%s183 + $0x23] sm:$0xff]
  %v2551 = vld [vmem:[%s183 + $0x2b] sm:$0xff]
  %v2552 = vld [vmem:[%s183 + $0x33] sm:$0xff]
  %v2553 = vld [vmem:[%s183 + $0x3b] sm:$0xff]
  %v2554 = vld [vmem:[%s183 + $0x43] sm:$0xff]
  %v2555 = vld [vmem:[%s183 + $0x4b] sm:$0xff]
  %v2556 = vld [vmem:[%s183 + $0x53] sm:$0xff]
  %v2557 = vld [vmem:[%s183 + $0x5b] sm:$0xff]
  %v2558 = vld [vmem:[%s183 + $0x63] sm:$0xff]
  %v2559 = vld [vmem:[%s183 + $0x6b] sm:$0xff]
  %v2560 = vld [vmem:[%s183 + $0x73] sm:$0xff]
  %v2561 = vld [vmem:[%s183 + $0x7b] sm:$0xff]
  %v2562 = vld [vmem:[%s183 + $0x83] sm:$0xff]
  %v2563 = vld [vmem:[%s183 + $0x8b] sm:$0xff]
  %v2564 = vld [vmem:[%s183 + $0x93] sm:$0xff]
  %v2565 = vld [vmem:[%s183 + $0x9b] sm:$0xff]
  %v2566 = vld [vmem:[%s183 + $0xa3] sm:$0xff]
  %v2567 = vld [vmem:[%s183 + $0xab] sm:$0xff]
  %v2568 = vld [vmem:[%s183 + $0xb3] sm:$0xff]
  %v2569 = vld [vmem:[%s183 + $0xbb] sm:$0xff]
  %v2570 = vld [vmem:[%s183 + $0xc3] sm:$0xff]
  %v2571 = vld [vmem:[%s183 + $0xcb] sm:$0xff]
  %v2572 = vld [vmem:[%s183 + $0xd3] sm:$0xff]
  %v2573 = vld [vmem:[%s183 + $0xdb] sm:$0xff]
  %v2574 = vld [vmem:[%s183 + $0xe3] sm:$0xff]
  %v2575 = vld [vmem:[%s183 + $0xeb] sm:$0xff]
  %v2576 = vld [vmem:[%s183 + $0xf3] sm:$0xff]
  %v2577 = vld [vmem:[%s183 + $0xfb] sm:$0xff]
  %v2578 = vpack.c.bf16 %v2547, %v2546
  %v2579 = vpack.c.bf16 %v2549, %v2548
  %v2580 = vpack.c.bf16 %v2551, %v2550
  %v2581 = vpack.c.bf16 %v2553, %v2552
  %v2582 = vpack.c.bf16 %v2555, %v2554
  %v2583 = vpack.c.bf16 %v2557, %v2556
  %v2584 = vpack.c.bf16 %v2559, %v2558
  %v2585 = vpack.c.bf16 %v2561, %v2560
  %v2586 = vpack.c.bf16 %v2563, %v2562
  %v2587 = vpack.c.bf16 %v2565, %v2564
  %v2588 = vpack.c.bf16 %v2567, %v2566
  %v2589 = vpack.c.bf16 %v2569, %v2568
  %v2590 = vpack.c.bf16 %v2571, %v2570
  %v2591 = vpack.c.bf16 %v2573, %v2572
  %v2592 = vpack.c.bf16 %v2575, %v2574
  %v2593 = vpack.c.bf16 %v2577, %v2576
  %v2595 = vsel %vm83, %v2578, 0
  %v2598 = vsel %vm83, %v2579, 0
  %v2601 = vsel %vm83, %v2580, 0
  %v2604 = vsel %vm83, %v2581, 0
  %v2607 = vsel %vm83, %v2582, 0
  %v2610 = vsel %vm83, %v2583, 0
  %v2613 = vsel %vm83, %v2584, 0
  %v2616 = vsel %vm83, %v2585, 0
  %v2619 = vsel %vm83, %v2586, 0
  %v2622 = vsel %vm83, %v2587, 0
  %v2625 = vsel %vm83, %v2588, 0
  %v2628 = vsel %vm83, %v2589, 0
  %v2631 = vsel %vm83, %v2590, 0
  %v2634 = vsel %vm83, %v2591, 0
  %v2637 = vsel %vm83, %v2592, 0
  %v2640 = vsel %vm83, %v2593, 0
  %2642 = vmatpush.bf16.msra.mxu0 0
  %2643 = vmatpush.bf16.msra.mxu0 0
  %2644 = vmatpush.bf16.msra.mxu0 0
  %2645 = vmatpush.bf16.msra.mxu0 0
  %2646 = vmatpush.bf16.msra.mxu0 0
  %2647 = vmatpush.bf16.msra.mxu0 0
  %2648 = vmatpush.bf16.msra.mxu0 0
  %2649 = vmatpush.bf16.msra.mxu0 %v884
  %2650 = vmatmul.bf16.gmra.mxu0 %v2595
  %v2651 = vpop.f32.mrf.mxu0
  %v2652 = vadd.f32 0.0, %v2651
  %v2653 = vpop.f32.mrf.mxu0
  %v2654 = vadd.f32 0.0, %v2653
  %2655 = vmatmul.bf16.gmra.mxu0 %v2598
  %v2656 = vpop.f32.mrf.mxu0
  %v2657 = vadd.f32 0.0, %v2656
  %v2658 = vpop.f32.mrf.mxu0
  %v2659 = vadd.f32 0.0, %v2658
  %2660 = vmatmul.bf16.gmra.mxu0 %v2601
  %v2661 = vpop.f32.mrf.mxu0
  %v2662 = vadd.f32 0.0, %v2661
  %v2663 = vpop.f32.mrf.mxu0
  %v2664 = vadd.f32 0.0, %v2663
  %2665 = vmatmul.bf16.gmra.mxu0 %v2604
  %v2666 = vpop.f32.mrf.mxu0
  %v2667 = vadd.f32 0.0, %v2666
  %v2668 = vpop.f32.mrf.mxu0
  %v2669 = vadd.f32 0.0, %v2668
  %2670 = vmatmul.bf16.gmra.mxu0 %v2607
  %v2671 = vpop.f32.mrf.mxu0
  %v2672 = vadd.f32 0.0, %v2671
  %v2673 = vpop.f32.mrf.mxu0
  %v2674 = vadd.f32 0.0, %v2673
  %2675 = vmatmul.bf16.gmra.mxu0 %v2610
  %v2676 = vpop.f32.mrf.mxu0
  %v2677 = vadd.f32 0.0, %v2676
  %v2678 = vpop.f32.mrf.mxu0
  %v2679 = vadd.f32 0.0, %v2678
  %2680 = vmatmul.bf16.gmra.mxu0 %v2613
  %v2681 = vpop.f32.mrf.mxu0
  %v2682 = vadd.f32 0.0, %v2681
  %v2683 = vpop.f32.mrf.mxu0
  %v2684 = vadd.f32 0.0, %v2683
  %2685 = vmatmul.bf16.gmra.mxu0 %v2616
  %v2686 = vpop.f32.mrf.mxu0
  %v2687 = vadd.f32 0.0, %v2686
  %v2688 = vpop.f32.mrf.mxu0
  %v2689 = vadd.f32 0.0, %v2688
  %2690 = vmatmul.bf16.gmra.mxu0 %v2619
  %v2691 = vpop.f32.mrf.mxu0
  %v2692 = vadd.f32 0.0, %v2691
  %v2693 = vpop.f32.mrf.mxu0
  %v2694 = vadd.f32 0.0, %v2693
  %2695 = vmatmul.bf16.gmra.mxu0 %v2622
  %v2696 = vpop.f32.mrf.mxu0
  %v2697 = vadd.f32 0.0, %v2696
  %v2698 = vpop.f32.mrf.mxu0
  %v2699 = vadd.f32 0.0, %v2698
  %2700 = vmatmul.bf16.gmra.mxu0 %v2625
  %v2701 = vpop.f32.mrf.mxu0
  %v2702 = vadd.f32 0.0, %v2701
  %v2703 = vpop.f32.mrf.mxu0
  %v2704 = vadd.f32 0.0, %v2703
  %2705 = vmatmul.bf16.gmra.mxu0 %v2628
  %v2706 = vpop.f32.mrf.mxu0
  %v2707 = vadd.f32 0.0, %v2706
  %v2708 = vpop.f32.mrf.mxu0
  %v2709 = vadd.f32 0.0, %v2708
  %2710 = vmatmul.bf16.gmra.mxu0 %v2631
  %v2711 = vpop.f32.mrf.mxu0
  %v2712 = vadd.f32 0.0, %v2711
  %v2713 = vpop.f32.mrf.mxu0
  %v2714 = vadd.f32 0.0, %v2713
  %2715 = vmatmul.bf16.gmra.mxu0 %v2634
  %v2716 = vpop.f32.mrf.mxu0
  %v2717 = vadd.f32 0.0, %v2716
  %v2718 = vpop.f32.mrf.mxu0
  %v2719 = vadd.f32 0.0, %v2718
  %2720 = vmatmul.bf16.gmra.mxu0 %v2637
  %v2721 = vpop.f32.mrf.mxu0
  %v2722 = vadd.f32 0.0, %v2721
  %v2723 = vpop.f32.mrf.mxu0
  %v2724 = vadd.f32 0.0, %v2723
  %2725 = vmatmul.bf16.gmra.mxu0 %v2640
  %v2726 = vpop.f32.mrf.mxu0
  %v2727 = vadd.f32 0.0, %v2726
  %v2728 = vpop.f32.mrf.mxu0
  %v2729 = vadd.f32 0.0, %v2728
  %2730 = vdwg.mxu0
  %v2731 = vadd.f32 %v2514, %v2652
  %v2732 = vadd.f32 %v2515, %v2654
  %v2733 = vadd.f32 %v2516, %v2657
  %v2734 = vadd.f32 %v2517, %v2659
  %v2735 = vadd.f32 %v2518, %v2662
  %v2736 = vadd.f32 %v2519, %v2664
  %v2737 = vadd.f32 %v2520, %v2667
  %v2738 = vadd.f32 %v2521, %v2669
  %v2739 = vadd.f32 %v2522, %v2672
  %v2740 = vadd.f32 %v2523, %v2674
  %v2741 = vadd.f32 %v2524, %v2677
  %v2742 = vadd.f32 %v2525, %v2679
  %v2743 = vadd.f32 %v2526, %v2682
  %v2744 = vadd.f32 %v2527, %v2684
  %v2745 = vadd.f32 %v2528, %v2687
  %v2746 = vadd.f32 %v2529, %v2689
  %v2747 = vadd.f32 %v2530, %v2692
  %v2748 = vadd.f32 %v2531, %v2694
  %v2749 = vadd.f32 %v2532, %v2697
  %v2750 = vadd.f32 %v2533, %v2699
  %v2751 = vadd.f32 %v2534, %v2702
  %v2752 = vadd.f32 %v2535, %v2704
  %v2753 = vadd.f32 %v2536, %v2707
  %v2754 = vadd.f32 %v2537, %v2709
  %v2755 = vadd.f32 %v2538, %v2712
  %v2756 = vadd.f32 %v2539, %v2714
  %v2757 = vadd.f32 %v2540, %v2717
  %v2758 = vadd.f32 %v2541, %v2719
  %v2759 = vadd.f32 %v2542, %v2722
  %v2760 = vadd.f32 %v2543, %v2724
  %v2761 = vadd.f32 %v2544, %v2727
  %v2762 = vadd.f32 %v2545, %v2729
  %v2763 = vld [vmem:[%s183 + $0x4] sm:$0xff]
  %v2764 = vld [vmem:[%s183 + $0xc] sm:$0xff]
  %v2765 = vld [vmem:[%s183 + $0x14] sm:$0xff]
  %v2766 = vld [vmem:[%s183 + $0x1c] sm:$0xff]
  %v2767 = vld [vmem:[%s183 + $0x24] sm:$0xff]
  %v2768 = vld [vmem:[%s183 + $0x2c] sm:$0xff]
  %v2769 = vld [vmem:[%s183 + $0x34] sm:$0xff]
  %v2770 = vld [vmem:[%s183 + $0x3c] sm:$0xff]
  %v2771 = vld [vmem:[%s183 + $0x44] sm:$0xff]
  %v2772 = vld [vmem:[%s183 + $0x4c] sm:$0xff]
  %v2773 = vld [vmem:[%s183 + $0x54] sm:$0xff]
  %v2774 = vld [vmem:[%s183 + $0x5c] sm:$0xff]
  %v2775 = vld [vmem:[%s183 + $0x64] sm:$0xff]
  %v2776 = vld [vmem:[%s183 + $0x6c] sm:$0xff]
  %v2777 = vld [vmem:[%s183 + $0x74] sm:$0xff]
  %v2778 = vld [vmem:[%s183 + $0x7c] sm:$0xff]
  %v2779 = vld [vmem:[%s183 + $0x84] sm:$0xff]
  %v2780 = vld [vmem:[%s183 + $0x8c] sm:$0xff]
  %v2781 = vld [vmem:[%s183 + $0x94] sm:$0xff]
  %v2782 = vld [vmem:[%s183 + $0x9c] sm:$0xff]
  %v2783 = vld [vmem:[%s183 + $0xa4] sm:$0xff]
  %v2784 = vld [vmem:[%s183 + $0xac] sm:$0xff]
  %v2785 = vld [vmem:[%s183 + $0xb4] sm:$0xff]
  %v2786 = vld [vmem:[%s183 + $0xbc] sm:$0xff]
  %v2787 = vld [vmem:[%s183 + $0xc4] sm:$0xff]
  %v2788 = vld [vmem:[%s183 + $0xcc] sm:$0xff]
  %v2789 = vld [vmem:[%s183 + $0xd4] sm:$0xff]
  %v2790 = vld [vmem:[%s183 + $0xdc] sm:$0xff]
  %v2791 = vld [vmem:[%s183 + $0xe4] sm:$0xff]
  %v2792 = vld [vmem:[%s183 + $0xec] sm:$0xff]
  %v2793 = vld [vmem:[%s183 + $0xf4] sm:$0xff]
  %v2794 = vld [vmem:[%s183 + $0xfc] sm:$0xff]
  %v2795 = vpack.c.bf16 %v2764, %v2763
  %v2796 = vpack.c.bf16 %v2766, %v2765
  %v2797 = vpack.c.bf16 %v2768, %v2767
  %v2798 = vpack.c.bf16 %v2770, %v2769
  %v2799 = vpack.c.bf16 %v2772, %v2771
  %v2800 = vpack.c.bf16 %v2774, %v2773
  %v2801 = vpack.c.bf16 %v2776, %v2775
  %v2802 = vpack.c.bf16 %v2778, %v2777
  %v2803 = vpack.c.bf16 %v2780, %v2779
  %v2804 = vpack.c.bf16 %v2782, %v2781
  %v2805 = vpack.c.bf16 %v2784, %v2783
  %v2806 = vpack.c.bf16 %v2786, %v2785
  %v2807 = vpack.c.bf16 %v2788, %v2787
  %v2808 = vpack.c.bf16 %v2790, %v2789
  %v2809 = vpack.c.bf16 %v2792, %v2791
  %v2810 = vpack.c.bf16 %v2794, %v2793
  %v2812 = vsel %vm83, %v2795, 0
  %v2815 = vsel %vm83, %v2796, 0
  %v2818 = vsel %vm83, %v2797, 0
  %v2821 = vsel %vm83, %v2798, 0
  %v2824 = vsel %vm83, %v2799, 0
  %v2827 = vsel %vm83, %v2800, 0
  %v2830 = vsel %vm83, %v2801, 0
  %v2833 = vsel %vm83, %v2802, 0
  %v2836 = vsel %vm83, %v2803, 0
  %v2839 = vsel %vm83, %v2804, 0
  %v2842 = vsel %vm83, %v2805, 0
  %v2845 = vsel %vm83, %v2806, 0
  %v2848 = vsel %vm83, %v2807, 0
  %v2851 = vsel %vm83, %v2808, 0
  %v2854 = vsel %vm83, %v2809, 0
  %v2857 = vsel %vm83, %v2810, 0
  %2859 = vmatpush.bf16.msra.mxu0 0
  %2860 = vmatpush.bf16.msra.mxu0 0
  %2861 = vmatpush.bf16.msra.mxu0 0
  %2862 = vmatpush.bf16.msra.mxu0 0
  %2863 = vmatpush.bf16.msra.mxu0 0
  %2864 = vmatpush.bf16.msra.mxu0 0
  %2865 = vmatpush.bf16.msra.mxu0 0
  %2866 = vmatpush.bf16.msra.mxu0 %v1110
  %2867 = vmatmul.bf16.gmra.mxu0 %v2812
  %v2868 = vpop.f32.mrf.mxu0
  %v2869 = vadd.f32 0.0, %v2868
  %v2870 = vpop.f32.mrf.mxu0
  %v2871 = vadd.f32 0.0, %v2870
  %2872 = vmatmul.bf16.gmra.mxu0 %v2815
  %v2873 = vpop.f32.mrf.mxu0
  %v2874 = vadd.f32 0.0, %v2873
  %v2875 = vpop.f32.mrf.mxu0
  %v2876 = vadd.f32 0.0, %v2875
  %2877 = vmatmul.bf16.gmra.mxu0 %v2818
  %v2878 = vpop.f32.mrf.mxu0
  %v2879 = vadd.f32 0.0, %v2878
  %v2880 = vpop.f32.mrf.mxu0
  %v2881 = vadd.f32 0.0, %v2880
  %2882 = vmatmul.bf16.gmra.mxu0 %v2821
  %v2883 = vpop.f32.mrf.mxu0
  %v2884 = vadd.f32 0.0, %v2883
  %v2885 = vpop.f32.mrf.mxu0
  %v2886 = vadd.f32 0.0, %v2885
  %2887 = vmatmul.bf16.gmra.mxu0 %v2824
  %v2888 = vpop.f32.mrf.mxu0
  %v2889 = vadd.f32 0.0, %v2888
  %v2890 = vpop.f32.mrf.mxu0
  %v2891 = vadd.f32 0.0, %v2890
  %2892 = vmatmul.bf16.gmra.mxu0 %v2827
  %v2893 = vpop.f32.mrf.mxu0
  %v2894 = vadd.f32 0.0, %v2893
  %v2895 = vpop.f32.mrf.mxu0
  %v2896 = vadd.f32 0.0, %v2895
  %2897 = vmatmul.bf16.gmra.mxu0 %v2830
  %v2898 = vpop.f32.mrf.mxu0
  %v2899 = vadd.f32 0.0, %v2898
  %v2900 = vpop.f32.mrf.mxu0
  %v2901 = vadd.f32 0.0, %v2900
  %2902 = vmatmul.bf16.gmra.mxu0 %v2833
  %v2903 = vpop.f32.mrf.mxu0
  %v2904 = vadd.f32 0.0, %v2903
  %v2905 = vpop.f32.mrf.mxu0
  %v2906 = vadd.f32 0.0, %v2905
  %2907 = vmatmul.bf16.gmra.mxu0 %v2836
  %v2908 = vpop.f32.mrf.mxu0
  %v2909 = vadd.f32 0.0, %v2908
  %v2910 = vpop.f32.mrf.mxu0
  %v2911 = vadd.f32 0.0, %v2910
  %2912 = vmatmul.bf16.gmra.mxu0 %v2839
  %v2913 = vpop.f32.mrf.mxu0
  %v2914 = vadd.f32 0.0, %v2913
  %v2915 = vpop.f32.mrf.mxu0
  %v2916 = vadd.f32 0.0, %v2915
  %2917 = vmatmul.bf16.gmra.mxu0 %v2842
  %v2918 = vpop.f32.mrf.mxu0
  %v2919 = vadd.f32 0.0, %v2918
  %v2920 = vpop.f32.mrf.mxu0
  %v2921 = vadd.f32 0.0, %v2920
  %2922 = vmatmul.bf16.gmra.mxu0 %v2845
  %v2923 = vpop.f32.mrf.mxu0
  %v2924 = vadd.f32 0.0, %v2923
  %v2925 = vpop.f32.mrf.mxu0
  %v2926 = vadd.f32 0.0, %v2925
  %2927 = vmatmul.bf16.gmra.mxu0 %v2848
  %v2928 = vpop.f32.mrf.mxu0
  %v2929 = vadd.f32 0.0, %v2928
  %v2930 = vpop.f32.mrf.mxu0
  %v2931 = vadd.f32 0.0, %v2930
  %2932 = vmatmul.bf16.gmra.mxu0 %v2851
  %v2933 = vpop.f32.mrf.mxu0
  %v2934 = vadd.f32 0.0, %v2933
  %v2935 = vpop.f32.mrf.mxu0
  %v2936 = vadd.f32 0.0, %v2935
  %2937 = vmatmul.bf16.gmra.mxu0 %v2854
  %v2938 = vpop.f32.mrf.mxu0
  %v2939 = vadd.f32 0.0, %v2938
  %v2940 = vpop.f32.mrf.mxu0
  %v2941 = vadd.f32 0.0, %v2940
  %2942 = vmatmul.bf16.gmra.mxu0 %v2857
  %v2943 = vpop.f32.mrf.mxu0
  %v2944 = vadd.f32 0.0, %v2943
  %v2945 = vpop.f32.mrf.mxu0
  %v2946 = vadd.f32 0.0, %v2945
  %2947 = vdwg.mxu0
  %v2948 = vadd.f32 %v2731, %v2869
  %v2949 = vadd.f32 %v2732, %v2871
  %v2950 = vadd.f32 %v2733, %v2874
  %v2951 = vadd.f32 %v2734, %v2876
  %v2952 = vadd.f32 %v2735, %v2879
  %v2953 = vadd.f32 %v2736, %v2881
  %v2954 = vadd.f32 %v2737, %v2884
  %v2955 = vadd.f32 %v2738, %v2886
  %v2956 = vadd.f32 %v2739, %v2889
  %v2957 = vadd.f32 %v2740, %v2891
  %v2958 = vadd.f32 %v2741, %v2894
  %v2959 = vadd.f32 %v2742, %v2896
  %v2960 = vadd.f32 %v2743, %v2899
  %v2961 = vadd.f32 %v2744, %v2901
  %v2962 = vadd.f32 %v2745, %v2904
  %v2963 = vadd.f32 %v2746, %v2906
  %v2964 = vadd.f32 %v2747, %v2909
  %v2965 = vadd.f32 %v2748, %v2911
  %v2966 = vadd.f32 %v2749, %v2914
  %v2967 = vadd.f32 %v2750, %v2916
  %v2968 = vadd.f32 %v2751, %v2919
  %v2969 = vadd.f32 %v2752, %v2921
  %v2970 = vadd.f32 %v2753, %v2924
  %v2971 = vadd.f32 %v2754, %v2926
  %v2972 = vadd.f32 %v2755, %v2929
  %v2973 = vadd.f32 %v2756, %v2931
  %v2974 = vadd.f32 %v2757, %v2934
  %v2975 = vadd.f32 %v2758, %v2936
  %v2976 = vadd.f32 %v2759, %v2939
  %v2977 = vadd.f32 %v2760, %v2941
  %v2978 = vadd.f32 %v2761, %v2944
  %v2979 = vadd.f32 %v2762, %v2946
  %v2980 = vld [vmem:[%s183 + $0x5] sm:$0xff]
  %v2981 = vld [vmem:[%s183 + $0xd] sm:$0xff]
  %v2982 = vld [vmem:[%s183 + $0x15] sm:$0xff]
  %v2983 = vld [vmem:[%s183 + $0x1d] sm:$0xff]
  %v2984 = vld [vmem:[%s183 + $0x25] sm:$0xff]
  %v2985 = vld [vmem:[%s183 + $0x2d] sm:$0xff]
  %v2986 = vld [vmem:[%s183 + $0x35] sm:$0xff]
  %v2987 = vld [vmem:[%s183 + $0x3d] sm:$0xff]
  %v2988 = vld [vmem:[%s183 + $0x45] sm:$0xff]
  %v2989 = vld [vmem:[%s183 + $0x4d] sm:$0xff]
  %v2990 = vld [vmem:[%s183 + $0x55] sm:$0xff]
  %v2991 = vld [vmem:[%s183 + $0x5d] sm:$0xff]
  %v2992 = vld [vmem:[%s183 + $0x65] sm:$0xff]
  %v2993 = vld [vmem:[%s183 + $0x6d] sm:$0xff]
  %v2994 = vld [vmem:[%s183 + $0x75] sm:$0xff]
  %v2995 = vld [vmem:[%s183 + $0x7d] sm:$0xff]
  %v2996 = vld [vmem:[%s183 + $0x85] sm:$0xff]
  %v2997 = vld [vmem:[%s183 + $0x8d] sm:$0xff]
  %v2998 = vld [vmem:[%s183 + $0x95] sm:$0xff]
  %v2999 = vld [vmem:[%s183 + $0x9d] sm:$0xff]
  %v3000 = vld [vmem:[%s183 + $0xa5] sm:$0xff]
  %v3001 = vld [vmem:[%s183 + $0xad] sm:$0xff]
  %v3002 = vld [vmem:[%s183 + $0xb5] sm:$0xff]
  %v3003 = vld [vmem:[%s183 + $0xbd] sm:$0xff]
  %v3004 = vld [vmem:[%s183 + $0xc5] sm:$0xff]
  %v3005 = vld [vmem:[%s183 + $0xcd] sm:$0xff]
  %v3006 = vld [vmem:[%s183 + $0xd5] sm:$0xff]
  %v3007 = vld [vmem:[%s183 + $0xdd] sm:$0xff]
  %v3008 = vld [vmem:[%s183 + $0xe5] sm:$0xff]
  %v3009 = vld [vmem:[%s183 + $0xed] sm:$0xff]
  %v3010 = vld [vmem:[%s183 + $0xf5] sm:$0xff]
  %v3011 = vld [vmem:[%s183 + $0xfd] sm:$0xff]
  %v3012 = vpack.c.bf16 %v2981, %v2980
  %v3013 = vpack.c.bf16 %v2983, %v2982
  %v3014 = vpack.c.bf16 %v2985, %v2984
  %v3015 = vpack.c.bf16 %v2987, %v2986
  %v3016 = vpack.c.bf16 %v2989, %v2988
  %v3017 = vpack.c.bf16 %v2991, %v2990
  %v3018 = vpack.c.bf16 %v2993, %v2992
  %v3019 = vpack.c.bf16 %v2995, %v2994
  %v3020 = vpack.c.bf16 %v2997, %v2996
  %v3021 = vpack.c.bf16 %v2999, %v2998
  %v3022 = vpack.c.bf16 %v3001, %v3000
  %v3023 = vpack.c.bf16 %v3003, %v3002
  %v3024 = vpack.c.bf16 %v3005, %v3004
  %v3025 = vpack.c.bf16 %v3007, %v3006
  %v3026 = vpack.c.bf16 %v3009, %v3008
  %v3027 = vpack.c.bf16 %v3011, %v3010
  %v3029 = vsel %vm83, %v3012, 0
  %v3032 = vsel %vm83, %v3013, 0
  %v3035 = vsel %vm83, %v3014, 0
  %v3038 = vsel %vm83, %v3015, 0
  %v3041 = vsel %vm83, %v3016, 0
  %v3044 = vsel %vm83, %v3017, 0
  %v3047 = vsel %vm83, %v3018, 0
  %v3050 = vsel %vm83, %v3019, 0
  %v3053 = vsel %vm83, %v3020, 0
  %v3056 = vsel %vm83, %v3021, 0
  %v3059 = vsel %vm83, %v3022, 0
  %v3062 = vsel %vm83, %v3023, 0
  %v3065 = vsel %vm83, %v3024, 0
  %v3068 = vsel %vm83, %v3025, 0
  %v3071 = vsel %vm83, %v3026, 0
  %v3074 = vsel %vm83, %v3027, 0
  %3076 = vmatpush.bf16.msra.mxu0 0
  %3077 = vmatpush.bf16.msra.mxu0 0
  %3078 = vmatpush.bf16.msra.mxu0 0
  %3079 = vmatpush.bf16.msra.mxu0 0
  %3080 = vmatpush.bf16.msra.mxu0 0
  %3081 = vmatpush.bf16.msra.mxu0 0
  %3082 = vmatpush.bf16.msra.mxu0 0
  %3083 = vmatpush.bf16.msra.mxu0 %v1336
  %3084 = vmatmul.bf16.gmra.mxu0 %v3029
  %v3085 = vpop.f32.mrf.mxu0
  %v3086 = vadd.f32 0.0, %v3085
  %v3087 = vpop.f32.mrf.mxu0
  %v3088 = vadd.f32 0.0, %v3087
  %3089 = vmatmul.bf16.gmra.mxu0 %v3032
  %v3090 = vpop.f32.mrf.mxu0
  %v3091 = vadd.f32 0.0, %v3090
  %v3092 = vpop.f32.mrf.mxu0
  %v3093 = vadd.f32 0.0, %v3092
  %3094 = vmatmul.bf16.gmra.mxu0 %v3035
  %v3095 = vpop.f32.mrf.mxu0
  %v3096 = vadd.f32 0.0, %v3095
  %v3097 = vpop.f32.mrf.mxu0
  %v3098 = vadd.f32 0.0, %v3097
  %3099 = vmatmul.bf16.gmra.mxu0 %v3038
  %v3100 = vpop.f32.mrf.mxu0
  %v3101 = vadd.f32 0.0, %v3100
  %v3102 = vpop.f32.mrf.mxu0
  %v3103 = vadd.f32 0.0, %v3102
  %3104 = vmatmul.bf16.gmra.mxu0 %v3041
  %v3105 = vpop.f32.mrf.mxu0
  %v3106 = vadd.f32 0.0, %v3105
  %v3107 = vpop.f32.mrf.mxu0
  %v3108 = vadd.f32 0.0, %v3107
  %3109 = vmatmul.bf16.gmra.mxu0 %v3044
  %v3110 = vpop.f32.mrf.mxu0
  %v3111 = vadd.f32 0.0, %v3110
  %v3112 = vpop.f32.mrf.mxu0
  %v3113 = vadd.f32 0.0, %v3112
  %3114 = vmatmul.bf16.gmra.mxu0 %v3047
  %v3115 = vpop.f32.mrf.mxu0
  %v3116 = vadd.f32 0.0, %v3115
  %v3117 = vpop.f32.mrf.mxu0
  %v3118 = vadd.f32 0.0, %v3117
  %3119 = vmatmul.bf16.gmra.mxu0 %v3050
  %v3120 = vpop.f32.mrf.mxu0
  %v3121 = vadd.f32 0.0, %v3120
  %v3122 = vpop.f32.mrf.mxu0
  %v3123 = vadd.f32 0.0, %v3122
  %3124 = vmatmul.bf16.gmra.mxu0 %v3053
  %v3125 = vpop.f32.mrf.mxu0
  %v3126 = vadd.f32 0.0, %v3125
  %v3127 = vpop.f32.mrf.mxu0
  %v3128 = vadd.f32 0.0, %v3127
  %3129 = vmatmul.bf16.gmra.mxu0 %v3056
  %v3130 = vpop.f32.mrf.mxu0
  %v3131 = vadd.f32 0.0, %v3130
  %v3132 = vpop.f32.mrf.mxu0
  %v3133 = vadd.f32 0.0, %v3132
  %3134 = vmatmul.bf16.gmra.mxu0 %v3059
  %v3135 = vpop.f32.mrf.mxu0
  %v3136 = vadd.f32 0.0, %v3135
  %v3137 = vpop.f32.mrf.mxu0
  %v3138 = vadd.f32 0.0, %v3137
  %3139 = vmatmul.bf16.gmra.mxu0 %v3062
  %v3140 = vpop.f32.mrf.mxu0
  %v3141 = vadd.f32 0.0, %v3140
  %v3142 = vpop.f32.mrf.mxu0
  %v3143 = vadd.f32 0.0, %v3142
  %3144 = vmatmul.bf16.gmra.mxu0 %v3065
  %v3145 = vpop.f32.mrf.mxu0
  %v3146 = vadd.f32 0.0, %v3145
  %v3147 = vpop.f32.mrf.mxu0
  %v3148 = vadd.f32 0.0, %v3147
  %3149 = vmatmul.bf16.gmra.mxu0 %v3068
  %v3150 = vpop.f32.mrf.mxu0
  %v3151 = vadd.f32 0.0, %v3150
  %v3152 = vpop.f32.mrf.mxu0
  %v3153 = vadd.f32 0.0, %v3152
  %3154 = vmatmul.bf16.gmra.mxu0 %v3071
  %v3155 = vpop.f32.mrf.mxu0
  %v3156 = vadd.f32 0.0, %v3155
  %v3157 = vpop.f32.mrf.mxu0
  %v3158 = vadd.f32 0.0, %v3157
  %3159 = vmatmul.bf16.gmra.mxu0 %v3074
  %v3160 = vpop.f32.mrf.mxu0
  %v3161 = vadd.f32 0.0, %v3160
  %v3162 = vpop.f32.mrf.mxu0
  %v3163 = vadd.f32 0.0, %v3162
  %3164 = vdwg.mxu0
  %v3165 = vadd.f32 %v2948, %v3086
  %v3166 = vadd.f32 %v2949, %v3088
  %v3167 = vadd.f32 %v2950, %v3091
  %v3168 = vadd.f32 %v2951, %v3093
  %v3169 = vadd.f32 %v2952, %v3096
  %v3170 = vadd.f32 %v2953, %v3098
  %v3171 = vadd.f32 %v2954, %v3101
  %v3172 = vadd.f32 %v2955, %v3103
  %v3173 = vadd.f32 %v2956, %v3106
  %v3174 = vadd.f32 %v2957, %v3108
  %v3175 = vadd.f32 %v2958, %v3111
  %v3176 = vadd.f32 %v2959, %v3113
  %v3177 = vadd.f32 %v2960, %v3116
  %v3178 = vadd.f32 %v2961, %v3118
  %v3179 = vadd.f32 %v2962, %v3121
  %v3180 = vadd.f32 %v2963, %v3123
  %v3181 = vadd.f32 %v2964, %v3126
  %v3182 = vadd.f32 %v2965, %v3128
  %v3183 = vadd.f32 %v2966, %v3131
  %v3184 = vadd.f32 %v2967, %v3133
  %v3185 = vadd.f32 %v2968, %v3136
  %v3186 = vadd.f32 %v2969, %v3138
  %v3187 = vadd.f32 %v2970, %v3141
  %v3188 = vadd.f32 %v2971, %v3143
  %v3189 = vadd.f32 %v2972, %v3146
  %v3190 = vadd.f32 %v2973, %v3148
  %v3191 = vadd.f32 %v2974, %v3151
  %v3192 = vadd.f32 %v2975, %v3153
  %v3193 = vadd.f32 %v2976, %v3156
  %v3194 = vadd.f32 %v2977, %v3158
  %v3195 = vadd.f32 %v2978, %v3161
  %v3196 = vadd.f32 %v2979, %v3163
  %v3197 = vld [vmem:[%s183 + $0x6] sm:$0xff]
  %v3198 = vld [vmem:[%s183 + $0xe] sm:$0xff]
  %v3199 = vld [vmem:[%s183 + $0x16] sm:$0xff]
  %v3200 = vld [vmem:[%s183 + $0x1e] sm:$0xff]
  %v3201 = vld [vmem:[%s183 + $0x26] sm:$0xff]
  %v3202 = vld [vmem:[%s183 + $0x2e] sm:$0xff]
  %v3203 = vld [vmem:[%s183 + $0x36] sm:$0xff]
  %v3204 = vld [vmem:[%s183 + $0x3e] sm:$0xff]
  %v3205 = vld [vmem:[%s183 + $0x46] sm:$0xff]
  %v3206 = vld [vmem:[%s183 + $0x4e] sm:$0xff]
  %v3207 = vld [vmem:[%s183 + $0x56] sm:$0xff]
  %v3208 = vld [vmem:[%s183 + $0x5e] sm:$0xff]
  %v3209 = vld [vmem:[%s183 + $0x66] sm:$0xff]
  %v3210 = vld [vmem:[%s183 + $0x6e] sm:$0xff]
  %v3211 = vld [vmem:[%s183 + $0x76] sm:$0xff]
  %v3212 = vld [vmem:[%s183 + $0x7e] sm:$0xff]
  %v3213 = vld [vmem:[%s183 + $0x86] sm:$0xff]
  %v3214 = vld [vmem:[%s183 + $0x8e] sm:$0xff]
  %v3215 = vld [vmem:[%s183 + $0x96] sm:$0xff]
  %v3216 = vld [vmem:[%s183 + $0x9e] sm:$0xff]
  %v3217 = vld [vmem:[%s183 + $0xa6] sm:$0xff]
  %v3218 = vld [vmem:[%s183 + $0xae] sm:$0xff]
  %v3219 = vld [vmem:[%s183 + $0xb6] sm:$0xff]
  %v3220 = vld [vmem:[%s183 + $0xbe] sm:$0xff]
  %v3221 = vld [vmem:[%s183 + $0xc6] sm:$0xff]
  %v3222 = vld [vmem:[%s183 + $0xce] sm:$0xff]
  %v3223 = vld [vmem:[%s183 + $0xd6] sm:$0xff]
  %v3224 = vld [vmem:[%s183 + $0xde] sm:$0xff]
  %v3225 = vld [vmem:[%s183 + $0xe6] sm:$0xff]
  %v3226 = vld [vmem:[%s183 + $0xee] sm:$0xff]
  %v3227 = vld [vmem:[%s183 + $0xf6] sm:$0xff]
  %v3228 = vld [vmem:[%s183 + $0xfe] sm:$0xff]
  %v3229 = vpack.c.bf16 %v3198, %v3197
  %v3230 = vpack.c.bf16 %v3200, %v3199
  %v3231 = vpack.c.bf16 %v3202, %v3201
  %v3232 = vpack.c.bf16 %v3204, %v3203
  %v3233 = vpack.c.bf16 %v3206, %v3205
  %v3234 = vpack.c.bf16 %v3208, %v3207
  %v3235 = vpack.c.bf16 %v3210, %v3209
  %v3236 = vpack.c.bf16 %v3212, %v3211
  %v3237 = vpack.c.bf16 %v3214, %v3213
  %v3238 = vpack.c.bf16 %v3216, %v3215
  %v3239 = vpack.c.bf16 %v3218, %v3217
  %v3240 = vpack.c.bf16 %v3220, %v3219
  %v3241 = vpack.c.bf16 %v3222, %v3221
  %v3242 = vpack.c.bf16 %v3224, %v3223
  %v3243 = vpack.c.bf16 %v3226, %v3225
  %v3244 = vpack.c.bf16 %v3228, %v3227
  %v3246 = vsel %vm83, %v3229, 0
  %v3249 = vsel %vm83, %v3230, 0
  %v3252 = vsel %vm83, %v3231, 0
  %v3255 = vsel %vm83, %v3232, 0
  %v3258 = vsel %vm83, %v3233, 0
  %v3261 = vsel %vm83, %v3234, 0
  %v3264 = vsel %vm83, %v3235, 0
  %v3267 = vsel %vm83, %v3236, 0
  %v3270 = vsel %vm83, %v3237, 0
  %v3273 = vsel %vm83, %v3238, 0
  %v3276 = vsel %vm83, %v3239, 0
  %v3279 = vsel %vm83, %v3240, 0
  %v3282 = vsel %vm83, %v3241, 0
  %v3285 = vsel %vm83, %v3242, 0
  %v3288 = vsel %vm83, %v3243, 0
  %v3291 = vsel %vm83, %v3244, 0
  %3293 = vmatpush.bf16.msra.mxu0 0
  %3294 = vmatpush.bf16.msra.mxu0 0
  %3295 = vmatpush.bf16.msra.mxu0 0
  %3296 = vmatpush.bf16.msra.mxu0 0
  %3297 = vmatpush.bf16.msra.mxu0 0
  %3298 = vmatpush.bf16.msra.mxu0 0
  %3299 = vmatpush.bf16.msra.mxu0 0
  %3300 = vmatpush.bf16.msra.mxu0 %v1562
  %3301 = vmatmul.bf16.gmra.mxu0 %v3246
  %v3302 = vpop.f32.mrf.mxu0
  %v3303 = vadd.f32 0.0, %v3302
  %v3304 = vpop.f32.mrf.mxu0
  %v3305 = vadd.f32 0.0, %v3304
  %3306 = vmatmul.bf16.gmra.mxu0 %v3249
  %v3307 = vpop.f32.mrf.mxu0
  %v3308 = vadd.f32 0.0, %v3307
  %v3309 = vpop.f32.mrf.mxu0
  %v3310 = vadd.f32 0.0, %v3309
  %3311 = vmatmul.bf16.gmra.mxu0 %v3252
  %v3312 = vpop.f32.mrf.mxu0
  %v3313 = vadd.f32 0.0, %v3312
  %v3314 = vpop.f32.mrf.mxu0
  %v3315 = vadd.f32 0.0, %v3314
  %3316 = vmatmul.bf16.gmra.mxu0 %v3255
  %v3317 = vpop.f32.mrf.mxu0
  %v3318 = vadd.f32 0.0, %v3317
  %v3319 = vpop.f32.mrf.mxu0
  %v3320 = vadd.f32 0.0, %v3319
  %3321 = vmatmul.bf16.gmra.mxu0 %v3258
  %v3322 = vpop.f32.mrf.mxu0
  %v3323 = vadd.f32 0.0, %v3322
  %v3324 = vpop.f32.mrf.mxu0
  %v3325 = vadd.f32 0.0, %v3324
  %3326 = vmatmul.bf16.gmra.mxu0 %v3261
  %v3327 = vpop.f32.mrf.mxu0
  %v3328 = vadd.f32 0.0, %v3327
  %v3329 = vpop.f32.mrf.mxu0
  %v3330 = vadd.f32 0.0, %v3329
  %3331 = vmatmul.bf16.gmra.mxu0 %v3264
  %v3332 = vpop.f32.mrf.mxu0
  %v3333 = vadd.f32 0.0, %v3332
  %v3334 = vpop.f32.mrf.mxu0
  %v3335 = vadd.f32 0.0, %v3334
  %3336 = vmatmul.bf16.gmra.mxu0 %v3267
  %v3337 = vpop.f32.mrf.mxu0
  %v3338 = vadd.f32 0.0, %v3337
  %v3339 = vpop.f32.mrf.mxu0
  %v3340 = vadd.f32 0.0, %v3339
  %3341 = vmatmul.bf16.gmra.mxu0 %v3270
  %v3342 = vpop.f32.mrf.mxu0
  %v3343 = vadd.f32 0.0, %v3342
  %v3344 = vpop.f32.mrf.mxu0
  %v3345 = vadd.f32 0.0, %v3344
  %3346 = vmatmul.bf16.gmra.mxu0 %v3273
  %v3347 = vpop.f32.mrf.mxu0
  %v3348 = vadd.f32 0.0, %v3347
  %v3349 = vpop.f32.mrf.mxu0
  %v3350 = vadd.f32 0.0, %v3349
  %3351 = vmatmul.bf16.gmra.mxu0 %v3276
  %v3352 = vpop.f32.mrf.mxu0
  %v3353 = vadd.f32 0.0, %v3352
  %v3354 = vpop.f32.mrf.mxu0
  %v3355 = vadd.f32 0.0, %v3354
  %3356 = vmatmul.bf16.gmra.mxu0 %v3279
  %v3357 = vpop.f32.mrf.mxu0
  %v3358 = vadd.f32 0.0, %v3357
  %v3359 = vpop.f32.mrf.mxu0
  %v3360 = vadd.f32 0.0, %v3359
  %3361 = vmatmul.bf16.gmra.mxu0 %v3282
  %v3362 = vpop.f32.mrf.mxu0
  %v3363 = vadd.f32 0.0, %v3362
  %v3364 = vpop.f32.mrf.mxu0
  %v3365 = vadd.f32 0.0, %v3364
  %3366 = vmatmul.bf16.gmra.mxu0 %v3285
  %v3367 = vpop.f32.mrf.mxu0
  %v3368 = vadd.f32 0.0, %v3367
  %v3369 = vpop.f32.mrf.mxu0
  %v3370 = vadd.f32 0.0, %v3369
  %3371 = vmatmul.bf16.gmra.mxu0 %v3288
  %v3372 = vpop.f32.mrf.mxu0
  %v3373 = vadd.f32 0.0, %v3372
  %v3374 = vpop.f32.mrf.mxu0
  %v3375 = vadd.f32 0.0, %v3374
  %3376 = vmatmul.bf16.gmra.mxu0 %v3291
  %v3377 = vpop.f32.mrf.mxu0
  %v3378 = vadd.f32 0.0, %v3377
  %v3379 = vpop.f32.mrf.mxu0
  %v3380 = vadd.f32 0.0, %v3379
  %3381 = vdwg.mxu0
  %v3382 = vadd.f32 %v3165, %v3303
  %v3383 = vadd.f32 %v3166, %v3305
  %v3384 = vadd.f32 %v3167, %v3308
  %v3385 = vadd.f32 %v3168, %v3310
  %v3386 = vadd.f32 %v3169, %v3313
  %v3387 = vadd.f32 %v3170, %v3315
  %v3388 = vadd.f32 %v3171, %v3318
  %v3389 = vadd.f32 %v3172, %v3320
  %v3390 = vadd.f32 %v3173, %v3323
  %v3391 = vadd.f32 %v3174, %v3325
  %v3392 = vadd.f32 %v3175, %v3328
  %v3393 = vadd.f32 %v3176, %v3330
  %v3394 = vadd.f32 %v3177, %v3333
  %v3395 = vadd.f32 %v3178, %v3335
  %v3396 = vadd.f32 %v3179, %v3338
  %v3397 = vadd.f32 %v3180, %v3340
  %v3398 = vadd.f32 %v3181, %v3343
  %v3399 = vadd.f32 %v3182, %v3345
  %v3400 = vadd.f32 %v3183, %v3348
  %v3401 = vadd.f32 %v3184, %v3350
  %v3402 = vadd.f32 %v3185, %v3353
  %v3403 = vadd.f32 %v3186, %v3355
  %v3404 = vadd.f32 %v3187, %v3358
  %v3405 = vadd.f32 %v3188, %v3360
  %v3406 = vadd.f32 %v3189, %v3363
  %v3407 = vadd.f32 %v3190, %v3365
  %v3408 = vadd.f32 %v3191, %v3368
  %v3409 = vadd.f32 %v3192, %v3370
  %v3410 = vadd.f32 %v3193, %v3373
  %v3411 = vadd.f32 %v3194, %v3375
  %v3412 = vadd.f32 %v3195, %v3378
  %v3413 = vadd.f32 %v3196, %v3380
  %v3414 = vld [vmem:[%s183 + $0x7] sm:$0xff]
  %v3415 = vld [vmem:[%s183 + $0xf] sm:$0xff]
  %v3416 = vld [vmem:[%s183 + $0x17] sm:$0xff]
  %v3417 = vld [vmem:[%s183 + $0x1f] sm:$0xff]
  %v3418 = vld [vmem:[%s183 + $0x27] sm:$0xff]
  %v3419 = vld [vmem:[%s183 + $0x2f] sm:$0xff]
  %v3420 = vld [vmem:[%s183 + $0x37] sm:$0xff]
  %v3421 = vld [vmem:[%s183 + $0x3f] sm:$0xff]
  %v3422 = vld [vmem:[%s183 + $0x47] sm:$0xff]
  %v3423 = vld [vmem:[%s183 + $0x4f] sm:$0xff]
  %v3424 = vld [vmem:[%s183 + $0x57] sm:$0xff]
  %v3425 = vld [vmem:[%s183 + $0x5f] sm:$0xff]
  %v3426 = vld [vmem:[%s183 + $0x67] sm:$0xff]
  %v3427 = vld [vmem:[%s183 + $0x6f] sm:$0xff]
  %v3428 = vld [vmem:[%s183 + $0x77] sm:$0xff]
  %v3429 = vld [vmem:[%s183 + $0x7f] sm:$0xff]
  %v3430 = vld [vmem:[%s183 + $0x87] sm:$0xff]
  %v3431 = vld [vmem:[%s183 + $0x8f] sm:$0xff]
  %v3432 = vld [vmem:[%s183 + $0x97] sm:$0xff]
  %v3433 = vld [vmem:[%s183 + $0x9f] sm:$0xff]
  %v3434 = vld [vmem:[%s183 + $0xa7] sm:$0xff]
  %v3435 = vld [vmem:[%s183 + $0xaf] sm:$0xff]
  %v3436 = vld [vmem:[%s183 + $0xb7] sm:$0xff]
  %v3437 = vld [vmem:[%s183 + $0xbf] sm:$0xff]
  %v3438 = vld [vmem:[%s183 + $0xc7] sm:$0xff]
  %v3439 = vld [vmem:[%s183 + $0xcf] sm:$0xff]
  %v3440 = vld [vmem:[%s183 + $0xd7] sm:$0xff]
  %v3441 = vld [vmem:[%s183 + $0xdf] sm:$0xff]
  %v3442 = vld [vmem:[%s183 + $0xe7] sm:$0xff]
  %v3443 = vld [vmem:[%s183 + $0xef] sm:$0xff]
  %v3444 = vld [vmem:[%s183 + $0xf7] sm:$0xff]
  %v3445 = vld [vmem:[%s183 + $0xff] sm:$0xff]
  %v3446 = vpack.c.bf16 %v3415, %v3414
  %v3447 = vpack.c.bf16 %v3417, %v3416
  %v3448 = vpack.c.bf16 %v3419, %v3418
  %v3449 = vpack.c.bf16 %v3421, %v3420
  %v3450 = vpack.c.bf16 %v3423, %v3422
  %v3451 = vpack.c.bf16 %v3425, %v3424
  %v3452 = vpack.c.bf16 %v3427, %v3426
  %v3453 = vpack.c.bf16 %v3429, %v3428
  %v3454 = vpack.c.bf16 %v3431, %v3430
  %v3455 = vpack.c.bf16 %v3433, %v3432
  %v3456 = vpack.c.bf16 %v3435, %v3434
  %v3457 = vpack.c.bf16 %v3437, %v3436
  %v3458 = vpack.c.bf16 %v3439, %v3438
  %v3459 = vpack.c.bf16 %v3441, %v3440
  %v3460 = vpack.c.bf16 %v3443, %v3442
  %v3461 = vpack.c.bf16 %v3445, %v3444
  %v3463 = vsel %vm83, %v3446, 0
  %v3466 = vsel %vm83, %v3447, 0
  %v3469 = vsel %vm83, %v3448, 0
  %v3472 = vsel %vm83, %v3449, 0
  %v3475 = vsel %vm83, %v3450, 0
  %v3478 = vsel %vm83, %v3451, 0
  %v3481 = vsel %vm83, %v3452, 0
  %v3484 = vsel %vm83, %v3453, 0
  %v3487 = vsel %vm83, %v3454, 0
  %v3490 = vsel %vm83, %v3455, 0
  %v3493 = vsel %vm83, %v3456, 0
  %v3496 = vsel %vm83, %v3457, 0
  %v3499 = vsel %vm83, %v3458, 0
  %v3502 = vsel %vm83, %v3459, 0
  %v3505 = vsel %vm83, %v3460, 0
  %v3508 = vsel %vm83, %v3461, 0
  %3510 = vmatpush.bf16.msra.mxu0 0
  %3511 = vmatpush.bf16.msra.mxu0 0
  %3512 = vmatpush.bf16.msra.mxu0 0
  %3513 = vmatpush.bf16.msra.mxu0 0
  %3514 = vmatpush.bf16.msra.mxu0 0
  %3515 = vmatpush.bf16.msra.mxu0 0
  %3516 = vmatpush.bf16.msra.mxu0 0
  %3517 = vmatpush.bf16.msra.mxu0 %v1788
  %3518 = vmatmul.bf16.gmra.mxu0 %v3463
  %v3519 = vpop.f32.mrf.mxu0
  %v3520 = vadd.f32 0.0, %v3519
  %v3521 = vpop.f32.mrf.mxu0
  %v3522 = vadd.f32 0.0, %v3521
  %3523 = vmatmul.bf16.gmra.mxu0 %v3466
  %v3524 = vpop.f32.mrf.mxu0
  %v3525 = vadd.f32 0.0, %v3524
  %v3526 = vpop.f32.mrf.mxu0
  %v3527 = vadd.f32 0.0, %v3526
  %3528 = vmatmul.bf16.gmra.mxu0 %v3469
  %v3529 = vpop.f32.mrf.mxu0
  %v3530 = vadd.f32 0.0, %v3529
  %v3531 = vpop.f32.mrf.mxu0
  %v3532 = vadd.f32 0.0, %v3531
  %3533 = vmatmul.bf16.gmra.mxu0 %v3472
  %v3534 = vpop.f32.mrf.mxu0
  %v3535 = vadd.f32 0.0, %v3534
  %v3536 = vpop.f32.mrf.mxu0
  %v3537 = vadd.f32 0.0, %v3536
  %3538 = vmatmul.bf16.gmra.mxu0 %v3475
  %v3539 = vpop.f32.mrf.mxu0
  %v3540 = vadd.f32 0.0, %v3539
  %v3541 = vpop.f32.mrf.mxu0
  %v3542 = vadd.f32 0.0, %v3541
  %3543 = vmatmul.bf16.gmra.mxu0 %v3478
  %v3544 = vpop.f32.mrf.mxu0
  %v3545 = vadd.f32 0.0, %v3544
  %v3546 = vpop.f32.mrf.mxu0
  %v3547 = vadd.f32 0.0, %v3546
  %3548 = vmatmul.bf16.gmra.mxu0 %v3481
  %v3549 = vpop.f32.mrf.mxu0
  %v3550 = vadd.f32 0.0, %v3549
  %v3551 = vpop.f32.mrf.mxu0
  %v3552 = vadd.f32 0.0, %v3551
  %3553 = vmatmul.bf16.gmra.mxu0 %v3484
  %v3554 = vpop.f32.mrf.mxu0
  %v3555 = vadd.f32 0.0, %v3554
  %v3556 = vpop.f32.mrf.mxu0
  %v3557 = vadd.f32 0.0, %v3556
  %3558 = vmatmul.bf16.gmra.mxu0 %v3487
  %v3559 = vpop.f32.mrf.mxu0
  %v3560 = vadd.f32 0.0, %v3559
  %v3561 = vpop.f32.mrf.mxu0
  %v3562 = vadd.f32 0.0, %v3561
  %3563 = vmatmul.bf16.gmra.mxu0 %v3490
  %v3564 = vpop.f32.mrf.mxu0
  %v3565 = vadd.f32 0.0, %v3564
  %v3566 = vpop.f32.mrf.mxu0
  %v3567 = vadd.f32 0.0, %v3566
  %3568 = vmatmul.bf16.gmra.mxu0 %v3493
  %v3569 = vpop.f32.mrf.mxu0
  %v3570 = vadd.f32 0.0, %v3569
  %v3571 = vpop.f32.mrf.mxu0
  %v3572 = vadd.f32 0.0, %v3571
  %3573 = vmatmul.bf16.gmra.mxu0 %v3496
  %v3574 = vpop.f32.mrf.mxu0
  %v3575 = vadd.f32 0.0, %v3574
  %v3576 = vpop.f32.mrf.mxu0
  %v3577 = vadd.f32 0.0, %v3576
  %3578 = vmatmul.bf16.gmra.mxu0 %v3499
  %v3579 = vpop.f32.mrf.mxu0
  %v3580 = vadd.f32 0.0, %v3579
  %v3581 = vpop.f32.mrf.mxu0
  %v3582 = vadd.f32 0.0, %v3581
  %3583 = vmatmul.bf16.gmra.mxu0 %v3502
  %v3584 = vpop.f32.mrf.mxu0
  %v3585 = vadd.f32 0.0, %v3584
  %v3586 = vpop.f32.mrf.mxu0
  %v3587 = vadd.f32 0.0, %v3586
  %3588 = vmatmul.bf16.gmra.mxu0 %v3505
  %v3589 = vpop.f32.mrf.mxu0
  %v3590 = vadd.f32 0.0, %v3589
  %v3591 = vpop.f32.mrf.mxu0
  %v3592 = vadd.f32 0.0, %v3591
  %3593 = vmatmul.bf16.gmra.mxu0 %v3508
  %v3594 = vpop.f32.mrf.mxu0
  %v3595 = vadd.f32 0.0, %v3594
  %v3596 = vpop.f32.mrf.mxu0
  %v3597 = vadd.f32 0.0, %v3596
  %3598 = vdwg.mxu0
  %v3599 = vadd.f32 %v3382, %v3520
  %v3600 = vadd.f32 %v3383, %v3522
  %v3601 = vadd.f32 %v3384, %v3525
  %v3602 = vadd.f32 %v3385, %v3527
  %v3603 = vadd.f32 %v3386, %v3530
  %v3604 = vadd.f32 %v3387, %v3532
  %v3605 = vadd.f32 %v3388, %v3535
  %v3606 = vadd.f32 %v3389, %v3537
  %v3607 = vadd.f32 %v3390, %v3540
  %v3608 = vadd.f32 %v3391, %v3542
  %v3609 = vadd.f32 %v3392, %v3545
  %v3610 = vadd.f32 %v3393, %v3547
  %v3611 = vadd.f32 %v3394, %v3550
  %v3612 = vadd.f32 %v3395, %v3552
  %v3613 = vadd.f32 %v3396, %v3555
  %v3614 = vadd.f32 %v3397, %v3557
  %v3615 = vadd.f32 %v3398, %v3560
  %v3616 = vadd.f32 %v3399, %v3562
  %v3617 = vadd.f32 %v3400, %v3565
  %v3618 = vadd.f32 %v3401, %v3567
  %v3619 = vadd.f32 %v3402, %v3570
  %v3620 = vadd.f32 %v3403, %v3572
  %v3621 = vadd.f32 %v3404, %v3575
  %v3622 = vadd.f32 %v3405, %v3577
  %v3623 = vadd.f32 %v3406, %v3580
  %v3624 = vadd.f32 %v3407, %v3582
  %v3625 = vadd.f32 %v3408, %v3585
  %v3626 = vadd.f32 %v3409, %v3587
  %v3627 = vadd.f32 %v3410, %v3590
  %v3628 = vadd.f32 %v3411, %v3592
  %v3629 = vadd.f32 %v3412, %v3595
  %v3630 = vadd.f32 %v3413, %v3597
  %vm3631 = vcmask 523264
  %v3632 = vsel %vm3631, %v1927, 0.0
  %v3633 = vsel %vm3631, %v1928, 0.0
  %v3634 = vadd.f32 %v3632, %v3633
  %v3635 = vsel %vm3631, %v1929, 0.0
  %v3636 = vadd.f32 %v3634, %v3635
  %v3637 = vsel %vm3631, %v1930, 0.0
  %v3638 = vadd.f32 %v3636, %v3637
  %v3639 = vsel %vm3631, %v1931, 0.0
  %v3640 = vadd.f32 %v3638, %v3639
  %v3641 = vsel %vm3631, %v1932, 0.0
  %v3642 = vadd.f32 %v3640, %v3641
  %v3643 = vsel %vm3631, %v1933, 0.0
  %v3644 = vadd.f32 %v3642, %v3643
  %v3645 = vsel %vm3631, %v1934, 0.0
  %v3646 = vadd.f32 %v3644, %v3645
  %v3647 = vsel %vm3631, %v1935, 0.0
  %v3648 = vadd.f32 %v3646, %v3647
  %v3649 = vsel %vm3631, %v1936, 0.0
  %v3650 = vadd.f32 %v3648, %v3649
  %v3651 = vsel %vm3631, %v1937, 0.0
  %v3652 = vadd.f32 %v3650, %v3651
  %v3653 = vsel %vm3631, %v1938, 0.0
  %v3654 = vadd.f32 %v3652, %v3653
  %v3655 = vsel %vm3631, %v1939, 0.0
  %v3656 = vadd.f32 %v3654, %v3655
  %v3657 = vsel %vm3631, %v1940, 0.0
  %v3658 = vadd.f32 %v3656, %v3657
  %v3659 = vsel %vm3631, %v1941, 0.0
  %v3660 = vadd.f32 %v3658, %v3659
  %v3661 = vsel %vm3631, %v1942, 0.0
  %v3662 = vadd.f32 %v3660, %v3661
  %v3663 = vsel %vm3631, %v1943, 0.0
  %v3664 = vadd.f32 %v3662, %v3663
  %v3665 = vsel %vm3631, %v1944, 0.0
  %v3666 = vadd.f32 %v3664, %v3665
  %v3667 = vsel %vm3631, %v1945, 0.0
  %v3668 = vadd.f32 %v3666, %v3667
  %v3669 = vsel %vm3631, %v1946, 0.0
  %v3670 = vadd.f32 %v3668, %v3669
  %v3671 = vsel %vm3631, %v1947, 0.0
  %v3672 = vadd.f32 %v3670, %v3671
  %v3673 = vsel %vm3631, %v1948, 0.0
  %v3674 = vadd.f32 %v3672, %v3673
  %v3675 = vsel %vm3631, %v1949, 0.0
  %v3676 = vadd.f32 %v3674, %v3675
  %v3677 = vsel %vm3631, %v1950, 0.0
  %v3678 = vadd.f32 %v3676, %v3677
  %v3679 = vsel %vm3631, %v1951, 0.0
  %v3680 = vadd.f32 %v3678, %v3679
  %v3681 = vsel %vm3631, %v1952, 0.0
  %v3682 = vadd.f32 %v3680, %v3681
  %v3683 = vsel %vm3631, %v1953, 0.0
  %v3684 = vadd.f32 %v3682, %v3683
  %v3685 = vsel %vm3631, %v1954, 0.0
  %v3686 = vadd.f32 %v3684, %v3685
  %v3687 = vsel %vm3631, %v1955, 0.0
  %v3688 = vadd.f32 %v3686, %v3687
  %v3689 = vsel %vm3631, %v1956, 0.0
  %v3690 = vadd.f32 %v3688, %v3689
  %v3691 = vsel %vm3631, %v1957, 0.0
  %v3692 = vadd.f32 %v3690, %v3691
  %v3693 = vsel %vm3631, %v1958, 0.0
  %v3694 = vadd.f32 %v3692, %v3693
  %v3695 = vrot.slane %v3694, 4
  %v3696 = vadd.f32 %v3694, %v3695
  %v3697 = vrot.slane %v3696, 2
  %v3698 = vadd.f32 %v3696, %v3697
  %v3699 = vrot.slane %v3698, 1
  %v3700 = vadd.f32 %v3698, %v3699
  %v3701 = vadd.f32 %v3700, 0.0
  %v3702 = vmul.f32 %v1927, %v1927
  %v3703 = vmul.f32 %v1928, %v1928
  %v3704 = vmul.f32 %v1929, %v1929
  %v3705 = vmul.f32 %v1930, %v1930
  %v3706 = vmul.f32 %v1931, %v1931
  %v3707 = vmul.f32 %v1932, %v1932
  %v3708 = vmul.f32 %v1933, %v1933
  %v3709 = vmul.f32 %v1934, %v1934
  %v3710 = vmul.f32 %v1935, %v1935
  %v3711 = vmul.f32 %v1936, %v1936
  %v3712 = vmul.f32 %v1937, %v1937
  %v3713 = vmul.f32 %v1938, %v1938
  %v3714 = vmul.f32 %v1939, %v1939
  %v3715 = vmul.f32 %v1940, %v1940
  %v3716 = vmul.f32 %v1941, %v1941
  %v3717 = vmul.f32 %v1942, %v1942
  %v3718 = vmul.f32 %v1943, %v1943
  %v3719 = vmul.f32 %v1944, %v1944
  %v3720 = vmul.f32 %v1945, %v1945
  %v3721 = vmul.f32 %v1946, %v1946
  %v3722 = vmul.f32 %v1947, %v1947
  %v3723 = vmul.f32 %v1948, %v1948
  %v3724 = vmul.f32 %v1949, %v1949
  %v3725 = vmul.f32 %v1950, %v1950
  %v3726 = vmul.f32 %v1951, %v1951
  %v3727 = vmul.f32 %v1952, %v1952
  %v3728 = vmul.f32 %v1953, %v1953
  %v3729 = vmul.f32 %v1954, %v1954
  %v3730 = vmul.f32 %v1955, %v1955
  %v3731 = vmul.f32 %v1956, %v1956
  %v3732 = vmul.f32 %v1957, %v1957
  %v3733 = vmul.f32 %v1958, %v1958
  %v3734 = vsel %vm3631, %v3702, 0.0
  %v3735 = vsel %vm3631, %v3703, 0.0
  %v3736 = vadd.f32 %v3734, %v3735
  %v3737 = vsel %vm3631, %v3704, 0.0
  %v3738 = vadd.f32 %v3736, %v3737
  %v3739 = vsel %vm3631, %v3705, 0.0
  %v3740 = vadd.f32 %v3738, %v3739
  %v3741 = vsel %vm3631, %v3706, 0.0
  %v3742 = vadd.f32 %v3740, %v3741
  %v3743 = vsel %vm3631, %v3707, 0.0
  %v3744 = vadd.f32 %v3742, %v3743
  %v3745 = vsel %vm3631, %v3708, 0.0
  %v3746 = vadd.f32 %v3744, %v3745
  %v3747 = vsel %vm3631, %v3709, 0.0
  %v3748 = vadd.f32 %v3746, %v3747
  %v3749 = vsel %vm3631, %v3710, 0.0
  %v3750 = vadd.f32 %v3748, %v3749
  %v3751 = vsel %vm3631, %v3711, 0.0
  %v3752 = vadd.f32 %v3750, %v3751
  %v3753 = vsel %vm3631, %v3712, 0.0
  %v3754 = vadd.f32 %v3752, %v3753
  %v3755 = vsel %vm3631, %v3713, 0.0
  %v3756 = vadd.f32 %v3754, %v3755
  %v3757 = vsel %vm3631, %v3714, 0.0
  %v3758 = vadd.f32 %v3756, %v3757
  %v3759 = vsel %vm3631, %v3715, 0.0
  %v3760 = vadd.f32 %v3758, %v3759
  %v3761 = vsel %vm3631, %v3716, 0.0
  %v3762 = vadd.f32 %v3760, %v3761
  %v3763 = vsel %vm3631, %v3717, 0.0
  %v3764 = vadd.f32 %v3762, %v3763
  %v3765 = vsel %vm3631, %v3718, 0.0
  %v3766 = vadd.f32 %v3764, %v3765
  %v3767 = vsel %vm3631, %v3719, 0.0
  %v3768 = vadd.f32 %v3766, %v3767
  %v3769 = vsel %vm3631, %v3720, 0.0
  %v3770 = vadd.f32 %v3768, %v3769
  %v3771 = vsel %vm3631, %v3721, 0.0
  %v3772 = vadd.f32 %v3770, %v3771
  %v3773 = vsel %vm3631, %v3722, 0.0
  %v3774 = vadd.f32 %v3772, %v3773
  %v3775 = vsel %vm3631, %v3723, 0.0
  %v3776 = vadd.f32 %v3774, %v3775
  %v3777 = vsel %vm3631, %v3724, 0.0
  %v3778 = vadd.f32 %v3776, %v3777
  %v3779 = vsel %vm3631, %v3725, 0.0
  %v3780 = vadd.f32 %v3778, %v3779
  %v3781 = vsel %vm3631, %v3726, 0.0
  %v3782 = vadd.f32 %v3780, %v3781
  %v3783 = vsel %vm3631, %v3727, 0.0
  %v3784 = vadd.f32 %v3782, %v3783
  %v3785 = vsel %vm3631, %v3728, 0.0
  %v3786 = vadd.f32 %v3784, %v3785
  %v3787 = vsel %vm3631, %v3729, 0.0
  %v3788 = vadd.f32 %v3786, %v3787
  %v3789 = vsel %vm3631, %v3730, 0.0
  %v3790 = vadd.f32 %v3788, %v3789
  %v3791 = vsel %vm3631, %v3731, 0.0
  %v3792 = vadd.f32 %v3790, %v3791
  %v3793 = vsel %vm3631, %v3732, 0.0
  %v3794 = vadd.f32 %v3792, %v3793
  %v3795 = vsel %vm3631, %v3733, 0.0
  %v3796 = vadd.f32 %v3794, %v3795
  %v3797 = vrot.slane %v3796, 4
  %v3798 = vadd.f32 %v3796, %v3797
  %v3799 = vrot.slane %v3798, 2
  %v3800 = vadd.f32 %v3798, %v3799
  %v3801 = vrot.slane %v3800, 1
  %v3802 = vadd.f32 %v3800, %v3801
  %v3803 = vadd.f32 %v3802, 0.0
  %v3804 = vsel %vm3631, %v3599, 0.0
  %v3805 = vsel %vm3631, %v3600, 0.0
  %v3806 = vadd.f32 %v3804, %v3805
  %v3807 = vsel %vm3631, %v3601, 0.0
  %v3808 = vadd.f32 %v3806, %v3807
  %v3809 = vsel %vm3631, %v3602, 0.0
  %v3810 = vadd.f32 %v3808, %v3809
  %v3811 = vsel %vm3631, %v3603, 0.0
  %v3812 = vadd.f32 %v3810, %v3811
  %v3813 = vsel %vm3631, %v3604, 0.0
  %v3814 = vadd.f32 %v3812, %v3813
  %v3815 = vsel %vm3631, %v3605, 0.0
  %v3816 = vadd.f32 %v3814, %v3815
  %v3817 = vsel %vm3631, %v3606, 0.0
  %v3818 = vadd.f32 %v3816, %v3817
  %v3819 = vsel %vm3631, %v3607, 0.0
  %v3820 = vadd.f32 %v3818, %v3819
  %v3821 = vsel %vm3631, %v3608, 0.0
  %v3822 = vadd.f32 %v3820, %v3821
  %v3823 = vsel %vm3631, %v3609, 0.0
  %v3824 = vadd.f32 %v3822, %v3823
  %v3825 = vsel %vm3631, %v3610, 0.0
  %v3826 = vadd.f32 %v3824, %v3825
  %v3827 = vsel %vm3631, %v3611, 0.0
  %v3828 = vadd.f32 %v3826, %v3827
  %v3829 = vsel %vm3631, %v3612, 0.0
  %v3830 = vadd.f32 %v3828, %v3829
  %v3831 = vsel %vm3631, %v3613, 0.0
  %v3832 = vadd.f32 %v3830, %v3831
  %v3833 = vsel %vm3631, %v3614, 0.0
  %v3834 = vadd.f32 %v3832, %v3833
  %v3835 = vsel %vm3631, %v3615, 0.0
  %v3836 = vadd.f32 %v3834, %v3835
  %v3837 = vsel %vm3631, %v3616, 0.0
  %v3838 = vadd.f32 %v3836, %v3837
  %v3839 = vsel %vm3631, %v3617, 0.0
  %v3840 = vadd.f32 %v3838, %v3839
  %v3841 = vsel %vm3631, %v3618, 0.0
  %v3842 = vadd.f32 %v3840, %v3841
  %v3843 = vsel %vm3631, %v3619, 0.0
  %v3844 = vadd.f32 %v3842, %v3843
  %v3845 = vsel %vm3631, %v3620, 0.0
  %v3846 = vadd.f32 %v3844, %v3845
  %v3847 = vsel %vm3631, %v3621, 0.0
  %v3848 = vadd.f32 %v3846, %v3847
  %v3849 = vsel %vm3631, %v3622, 0.0
  %v3850 = vadd.f32 %v3848, %v3849
  %v3851 = vsel %vm3631, %v3623, 0.0
  %v3852 = vadd.f32 %v3850, %v3851
  %v3853 = vsel %vm3631, %v3624, 0.0
  %v3854 = vadd.f32 %v3852, %v3853
  %v3855 = vsel %vm3631, %v3625, 0.0
  %v3856 = vadd.f32 %v3854, %v3855
  %v3857 = vsel %vm3631, %v3626, 0.0
  %v3858 = vadd.f32 %v3856, %v3857
  %v3859 = vsel %vm3631, %v3627, 0.0
  %v3860 = vadd.f32 %v3858, %v3859
  %v3861 = vsel %vm3631, %v3628, 0.0
  %v3862 = vadd.f32 %v3860, %v3861
  %v3863 = vsel %vm3631, %v3629, 0.0
  %v3864 = vadd.f32 %v3862, %v3863
  %v3865 = vsel %vm3631, %v3630, 0.0
  %v3866 = vadd.f32 %v3864, %v3865
  %v3867 = vrot.slane %v3866, 4
  %v3868 = vadd.f32 %v3866, %v3867
  %v3869 = vrot.slane %v3868, 2
  %v3870 = vadd.f32 %v3868, %v3869
  %v3871 = vrot.slane %v3870, 1
  %v3872 = vadd.f32 %v3870, %v3871
  %v3873 = vadd.f32 %v3701, %v3872
  %v3874 = vmul.f32 %v3599, %v3599
  %v3875 = vmul.f32 %v3600, %v3600
  %v3876 = vmul.f32 %v3601, %v3601
  %v3877 = vmul.f32 %v3602, %v3602
  %v3878 = vmul.f32 %v3603, %v3603
  %v3879 = vmul.f32 %v3604, %v3604
  %v3880 = vmul.f32 %v3605, %v3605
  %v3881 = vmul.f32 %v3606, %v3606
  %v3882 = vmul.f32 %v3607, %v3607
  %v3883 = vmul.f32 %v3608, %v3608
  %v3884 = vmul.f32 %v3609, %v3609
  %v3885 = vmul.f32 %v3610, %v3610
  %v3886 = vmul.f32 %v3611, %v3611
  %v3887 = vmul.f32 %v3612, %v3612
  %v3888 = vmul.f32 %v3613, %v3613
  %v3889 = vmul.f32 %v3614, %v3614
  %v3890 = vmul.f32 %v3615, %v3615
  %v3891 = vmul.f32 %v3616, %v3616
  %v3892 = vmul.f32 %v3617, %v3617
  %v3893 = vmul.f32 %v3618, %v3618
  %v3894 = vmul.f32 %v3619, %v3619
  %v3895 = vmul.f32 %v3620, %v3620
  %v3896 = vmul.f32 %v3621, %v3621
  %v3897 = vmul.f32 %v3622, %v3622
  %v3898 = vmul.f32 %v3623, %v3623
  %v3899 = vmul.f32 %v3624, %v3624
  %v3900 = vmul.f32 %v3625, %v3625
  %v3901 = vmul.f32 %v3626, %v3626
  %v3902 = vmul.f32 %v3627, %v3627
  %v3903 = vmul.f32 %v3628, %v3628
  %v3904 = vmul.f32 %v3629, %v3629
  %v3905 = vmul.f32 %v3630, %v3630
  %v3906 = vsel %vm3631, %v3874, 0.0
  %v3907 = vsel %vm3631, %v3875, 0.0
  %v3908 = vadd.f32 %v3906, %v3907
  %v3909 = vsel %vm3631, %v3876, 0.0
  %v3910 = vadd.f32 %v3908, %v3909
  %v3911 = vsel %vm3631, %v3877, 0.0
  %v3912 = vadd.f32 %v3910, %v3911
  %v3913 = vsel %vm3631, %v3878, 0.0
  %v3914 = vadd.f32 %v3912, %v3913
  %v3915 = vsel %vm3631, %v3879, 0.0
  %v3916 = vadd.f32 %v3914, %v3915
  %v3917 = vsel %vm3631, %v3880, 0.0
  %v3918 = vadd.f32 %v3916, %v3917
  %v3919 = vsel %vm3631, %v3881, 0.0
  %v3920 = vadd.f32 %v3918, %v3919
  %v3921 = vsel %vm3631, %v3882, 0.0
  %v3922 = vadd.f32 %v3920, %v3921
  %v3923 = vsel %vm3631, %v3883, 0.0
  %v3924 = vadd.f32 %v3922, %v3923
  %v3925 = vsel %vm3631, %v3884, 0.0
  %v3926 = vadd.f32 %v3924, %v3925
  %v3927 = vsel %vm3631, %v3885, 0.0
  %v3928 = vadd.f32 %v3926, %v3927
  %v3929 = vsel %vm3631, %v3886, 0.0
  %v3930 = vadd.f32 %v3928, %v3929
  %v3931 = vsel %vm3631, %v3887, 0.0
  %v3932 = vadd.f32 %v3930, %v3931
  %v3933 = vsel %vm3631, %v3888, 0.0
  %v3934 = vadd.f32 %v3932, %v3933
  %v3935 = vsel %vm3631, %v3889, 0.0
  %v3936 = vadd.f32 %v3934, %v3935
  %v3937 = vsel %vm3631, %v3890, 0.0
  %v3938 = vadd.f32 %v3936, %v3937
  %v3939 = vsel %vm3631, %v3891, 0.0
  %v3940 = vadd.f32 %v3938, %v3939
  %v3941 = vsel %vm3631, %v3892, 0.0
  %v3942 = vadd.f32 %v3940, %v3941
  %v3943 = vsel %vm3631, %v3893, 0.0
  %v3944 = vadd.f32 %v3942, %v3943
  %v3945 = vsel %vm3631, %v3894, 0.0
  %v3946 = vadd.f32 %v3944, %v3945
  %v3947 = vsel %vm3631, %v3895, 0.0
  %v3948 = vadd.f32 %v3946, %v3947
  %v3949 = vsel %vm3631, %v3896, 0.0
  %v3950 = vadd.f32 %v3948, %v3949
  %v3951 = vsel %vm3631, %v3897, 0.0
  %v3952 = vadd.f32 %v3950, %v3951
  %v3953 = vsel %vm3631, %v3898, 0.0
  %v3954 = vadd.f32 %v3952, %v3953
  %v3955 = vsel %vm3631, %v3899, 0.0
  %v3956 = vadd.f32 %v3954, %v3955
  %v3957 = vsel %vm3631, %v3900, 0.0
  %v3958 = vadd.f32 %v3956, %v3957
  %v3959 = vsel %vm3631, %v3901, 0.0
  %v3960 = vadd.f32 %v3958, %v3959
  %v3961 = vsel %vm3631, %v3902, 0.0
  %v3962 = vadd.f32 %v3960, %v3961
  %v3963 = vsel %vm3631, %v3903, 0.0
  %v3964 = vadd.f32 %v3962, %v3963
  %v3965 = vsel %vm3631, %v3904, 0.0
  %v3966 = vadd.f32 %v3964, %v3965
  %v3967 = vsel %vm3631, %v3905, 0.0
  %v3968 = vadd.f32 %v3966, %v3967
  %v3969 = vrot.slane %v3968, 4
  %v3970 = vadd.f32 %v3968, %v3969
  %v3971 = vrot.slane %v3970, 2
  %v3972 = vadd.f32 %v3970, %v3971
  %v3973 = vrot.slane %v3972, 1
  %v3974 = vadd.f32 %v3972, %v3973
  %v3975 = vadd.f32 %v3803, %v3974
  %v3976 = vrcp.pop 512.0
  %v3977 = vmul.f32 512.0, %v3976
  %v3978 = vsub.f32 1.0, %v3977
  %v3979 = vmul.f32 %v3976, %v3978
  %v3980 = vadd.f32 %v3976, %v3979
  %vm3981 = vweird.f32 %v3976
  %v3982 = vsel %vm3981, %v3976, %v3980
  %v3983 = vmul.f32 %v3873, %v3982
  %v3984 = vmul.f32 %v3975, %v3982
  %v3985 = vmul.f32 %v3983, %v3983
  %v3986 = vsub.f32 %v3984, %v3985
  %v3987 = vmax.f32 %v3986, 0.0
  %v3988 = vadd.f32 %v3987, 1e-05
  %v3989 = vrsqrt.pop %v3988
  %v3990 = vmul.f32 %v3989, %v3988
  %v3991 = vmul.f32 %v3990, %v3989
  %v3992 = vmul.f32 0.5, %v3991
  %v3993 = vsub.f32 1.5, %v3992
  %v3994 = vmul.f32 %v3989, %v3993
  %vm3995 = vweird.f32 %v3988
  %vm3996 = vweird.f32 %v3989
  %vm3997 = vmor %vm3995, %vm3996
  %v3998 = vsel %vm3997, %v3989, %v3994
  %v3999 = vld [vmem:[%s2] sm:$0x1]
  %v4000 = vmul.f32 %v3998, %v3999
  %v4001 = vld [vmem:[%s3] sm:$0x1]
  %v4002 = vmul.f32 %v3983, %v4000
  %v4003 = vsub.f32 %v4001, %v4002
  %v4004 = vperm.slane %v4000, 0
  %v4005 = vmul.f32 %v1927, %v4004
  %v4006 = vmul.f32 %v1928, %v4004
  %v4007 = vmul.f32 %v1929, %v4004
  %v4008 = vmul.f32 %v1930, %v4004
  %v4009 = vmul.f32 %v1931, %v4004
  %v4010 = vmul.f32 %v1932, %v4004
  %v4011 = vmul.f32 %v1933, %v4004
  %v4012 = vmul.f32 %v1934, %v4004
  %v4013 = vmul.f32 %v1935, %v4004
  %v4014 = vmul.f32 %v1936, %v4004
  %v4015 = vmul.f32 %v1937, %v4004
  %v4016 = vmul.f32 %v1938, %v4004
  %v4017 = vmul.f32 %v1939, %v4004
  %v4018 = vmul.f32 %v1940, %v4004
  %v4019 = vmul.f32 %v1941, %v4004
  %v4020 = vmul.f32 %v1942, %v4004
  %v4021 = vmul.f32 %v1943, %v4004
  %v4022 = vmul.f32 %v1944, %v4004
  %v4023 = vmul.f32 %v1945, %v4004
  %v4024 = vmul.f32 %v1946, %v4004
  %v4025 = vmul.f32 %v1947, %v4004
  %v4026 = vmul.f32 %v1948, %v4004
  %v4027 = vmul.f32 %v1949, %v4004
  %v4028 = vmul.f32 %v1950, %v4004
  %v4029 = vmul.f32 %v1951, %v4004
  %v4030 = vmul.f32 %v1952, %v4004
  %v4031 = vmul.f32 %v1953, %v4004
  %v4032 = vmul.f32 %v1954, %v4004
  %v4033 = vmul.f32 %v1955, %v4004
  %v4034 = vmul.f32 %v1956, %v4004
  %v4035 = vmul.f32 %v1957, %v4004
  %v4036 = vmul.f32 %v1958, %v4004
  %v4038 = vperm.slane %v4003, 0
  %v4040 = vadd.f32 %v4005, %v4038
  %v4041 = vadd.f32 %v4006, %v4038
  %v4042 = vadd.f32 %v4007, %v4038
  %v4043 = vadd.f32 %v4008, %v4038
  %v4044 = vadd.f32 %v4009, %v4038
  %v4045 = vadd.f32 %v4010, %v4038
  %v4046 = vadd.f32 %v4011, %v4038
  %v4047 = vadd.f32 %v4012, %v4038
  %v4048 = vadd.f32 %v4013, %v4038
  %v4049 = vadd.f32 %v4014, %v4038
  %v4050 = vadd.f32 %v4015, %v4038
  %v4051 = vadd.f32 %v4016, %v4038
  %v4052 = vadd.f32 %v4017, %v4038
  %v4053 = vadd.f32 %v4018, %v4038
  %v4054 = vadd.f32 %v4019, %v4038
  %v4055 = vadd.f32 %v4020, %v4038
  %v4056 = vadd.f32 %v4021, %v4038
  %v4057 = vadd.f32 %v4022, %v4038
  %v4058 = vadd.f32 %v4023, %v4038
  %v4059 = vadd.f32 %v4024, %v4038
  %v4060 = vadd.f32 %v4025, %v4038
  %v4061 = vadd.f32 %v4026, %v4038
  %v4062 = vadd.f32 %v4027, %v4038
  %v4063 = vadd.f32 %v4028, %v4038
  %v4064 = vadd.f32 %v4029, %v4038
  %v4065 = vadd.f32 %v4030, %v4038
  %v4066 = vadd.f32 %v4031, %v4038
  %v4067 = vadd.f32 %v4032, %v4038
  %v4068 = vadd.f32 %v4033, %v4038
  %v4069 = vadd.f32 %v4034, %v4038
  %v4070 = vadd.f32 %v4035, %v4038
  %v4071 = vadd.f32 %v4036, %v4038
  %v4072 = vmax.f32 %v4040, 0.0
  %v4073 = vmax.f32 %v4041, 0.0
  %v4074 = vmax.f32 %v4042, 0.0
  %v4075 = vmax.f32 %v4043, 0.0
  %v4076 = vmax.f32 %v4044, 0.0
  %v4077 = vmax.f32 %v4045, 0.0
  %v4078 = vmax.f32 %v4046, 0.0
  %v4079 = vmax.f32 %v4047, 0.0
  %v4080 = vmax.f32 %v4048, 0.0
  %v4081 = vmax.f32 %v4049, 0.0
  %v4082 = vmax.f32 %v4050, 0.0
  %v4083 = vmax.f32 %v4051, 0.0
  %v4084 = vmax.f32 %v4052, 0.0
  %v4085 = vmax.f32 %v4053, 0.0
  %v4086 = vmax.f32 %v4054, 0.0
  %v4087 = vmax.f32 %v4055, 0.0
  %v4088 = vmax.f32 %v4056, 0.0
  %v4089 = vmax.f32 %v4057, 0.0
  %v4090 = vmax.f32 %v4058, 0.0
  %v4091 = vmax.f32 %v4059, 0.0
  %v4092 = vmax.f32 %v4060, 0.0
  %v4093 = vmax.f32 %v4061, 0.0
  %v4094 = vmax.f32 %v4062, 0.0
  %v4095 = vmax.f32 %v4063, 0.0
  %v4096 = vmax.f32 %v4064, 0.0
  %v4097 = vmax.f32 %v4065, 0.0
  %v4098 = vmax.f32 %v4066, 0.0
  %v4099 = vmax.f32 %v4067, 0.0
  %v4100 = vmax.f32 %v4068, 0.0
  %v4101 = vmax.f32 %v4069, 0.0
  %v4102 = vmax.f32 %v4070, 0.0
  %v4103 = vmax.f32 %v4071, 0.0
  %v4104 = vmul.f32 %v3599, %v4004
  %v4105 = vmul.f32 %v3600, %v4004
  %v4106 = vmul.f32 %v3601, %v4004
  %v4107 = vmul.f32 %v3602, %v4004
  %v4108 = vmul.f32 %v3603, %v4004
  %v4109 = vmul.f32 %v3604, %v4004
  %v4110 = vmul.f32 %v3605, %v4004
  %v4111 = vmul.f32 %v3606, %v4004
  %v4112 = vmul.f32 %v3607, %v4004
  %v4113 = vmul.f32 %v3608, %v4004
  %v4114 = vmul.f32 %v3609, %v4004
  %v4115 = vmul.f32 %v3610, %v4004
  %v4116 = vmul.f32 %v3611, %v4004
  %v4117 = vmul.f32 %v3612, %v4004
  %v4118 = vmul.f32 %v3613, %v4004
  %v4119 = vmul.f32 %v3614, %v4004
  %v4120 = vmul.f32 %v3615, %v4004
  %v4121 = vmul.f32 %v3616, %v4004
  %v4122 = vmul.f32 %v3617, %v4004
  %v4123 = vmul.f32 %v3618, %v4004
  %v4124 = vmul.f32 %v3619, %v4004
  %v4125 = vmul.f32 %v3620, %v4004
  %v4126 = vmul.f32 %v3621, %v4004
  %v4127 = vmul.f32 %v3622, %v4004
  %v4128 = vmul.f32 %v3623, %v4004
  %v4129 = vmul.f32 %v3624, %v4004
  %v4130 = vmul.f32 %v3625, %v4004
  %v4131 = vmul.f32 %v3626, %v4004
  %v4132 = vmul.f32 %v3627, %v4004
  %v4133 = vmul.f32 %v3628, %v4004
  %v4134 = vmul.f32 %v3629, %v4004
  %v4135 = vmul.f32 %v3630, %v4004
  %v4136 = vadd.f32 %v4104, %v4038
  %v4137 = vadd.f32 %v4105, %v4038
  %v4138 = vadd.f32 %v4106, %v4038
  %v4139 = vadd.f32 %v4107, %v4038
  %v4140 = vadd.f32 %v4108, %v4038
  %v4141 = vadd.f32 %v4109, %v4038
  %v4142 = vadd.f32 %v4110, %v4038
  %v4143 = vadd.f32 %v4111, %v4038
  %v4144 = vadd.f32 %v4112, %v4038
  %v4145 = vadd.f32 %v4113, %v4038
  %v4146 = vadd.f32 %v4114, %v4038
  %v4147 = vadd.f32 %v4115, %v4038
  %v4148 = vadd.f32 %v4116, %v4038
  %v4149 = vadd.f32 %v4117, %v4038
  %v4150 = vadd.f32 %v4118, %v4038
  %v4151 = vadd.f32 %v4119, %v4038
  %v4152 = vadd.f32 %v4120, %v4038
  %v4153 = vadd.f32 %v4121, %v4038
  %v4154 = vadd.f32 %v4122, %v4038
  %v4155 = vadd.f32 %v4123, %v4038
  %v4156 = vadd.f32 %v4124, %v4038
  %v4157 = vadd.f32 %v4125, %v4038
  %v4158 = vadd.f32 %v4126, %v4038
  %v4159 = vadd.f32 %v4127, %v4038
  %v4160 = vadd.f32 %v4128, %v4038
  %v4161 = vadd.f32 %v4129, %v4038
  %v4162 = vadd.f32 %v4130, %v4038
  %v4163 = vadd.f32 %v4131, %v4038
  %v4164 = vadd.f32 %v4132, %v4038
  %v4165 = vadd.f32 %v4133, %v4038
  %v4166 = vadd.f32 %v4134, %v4038
  %v4167 = vadd.f32 %v4135, %v4038
  %v4168 = vmax.f32 %v4136, 0.0
  %v4169 = vmax.f32 %v4137, 0.0
  %v4170 = vmax.f32 %v4138, 0.0
  %v4171 = vmax.f32 %v4139, 0.0
  %v4172 = vmax.f32 %v4140, 0.0
  %v4173 = vmax.f32 %v4141, 0.0
  %v4174 = vmax.f32 %v4142, 0.0
  %v4175 = vmax.f32 %v4143, 0.0
  %v4176 = vmax.f32 %v4144, 0.0
  %v4177 = vmax.f32 %v4145, 0.0
  %v4178 = vmax.f32 %v4146, 0.0
  %v4179 = vmax.f32 %v4147, 0.0
  %v4180 = vmax.f32 %v4148, 0.0
  %v4181 = vmax.f32 %v4149, 0.0
  %v4182 = vmax.f32 %v4150, 0.0
  %v4183 = vmax.f32 %v4151, 0.0
  %v4184 = vmax.f32 %v4152, 0.0
  %v4185 = vmax.f32 %v4153, 0.0
  %v4186 = vmax.f32 %v4154, 0.0
  %v4187 = vmax.f32 %v4155, 0.0
  %v4188 = vmax.f32 %v4156, 0.0
  %v4189 = vmax.f32 %v4157, 0.0
  %v4190 = vmax.f32 %v4158, 0.0
  %v4191 = vmax.f32 %v4159, 0.0
  %v4192 = vmax.f32 %v4160, 0.0
  %v4193 = vmax.f32 %v4161, 0.0
  %v4194 = vmax.f32 %v4162, 0.0
  %v4195 = vmax.f32 %v4163, 0.0
  %v4196 = vmax.f32 %v4164, 0.0
  %v4197 = vmax.f32 %v4165, 0.0
  %v4198 = vmax.f32 %v4166, 0.0
  %v4199 = vmax.f32 %v4167, 0.0
  %v4200 = vpack.c.bf16 %v4072, %v4072
  %v4201 = vpack.c.bf16 %v4073, %v4073
  %v4202 = vpack.c.bf16 %v4074, %v4074
  %v4203 = vpack.c.bf16 %v4075, %v4075
  %v4204 = vpack.c.bf16 %v4076, %v4076
  %v4205 = vpack.c.bf16 %v4077, %v4077
  %v4206 = vpack.c.bf16 %v4078, %v4078
  %v4207 = vpack.c.bf16 %v4079, %v4079
  %v4208 = vpack.c.bf16 %v4080, %v4080
  %v4209 = vpack.c.bf16 %v4081, %v4081
  %v4210 = vpack.c.bf16 %v4082, %v4082
  %v4211 = vpack.c.bf16 %v4083, %v4083
  %v4212 = vpack.c.bf16 %v4084, %v4084
  %v4213 = vpack.c.bf16 %v4085, %v4085
  %v4214 = vpack.c.bf16 %v4086, %v4086
  %v4215 = vpack.c.bf16 %v4087, %v4087
  %v4216 = vpack.c.bf16 %v4088, %v4088
  %v4217 = vpack.c.bf16 %v4089, %v4089
  %v4218 = vpack.c.bf16 %v4090, %v4090
  %v4219 = vpack.c.bf16 %v4091, %v4091
  %v4220 = vpack.c.bf16 %v4092, %v4092
  %v4221 = vpack.c.bf16 %v4093, %v4093
  %v4222 = vpack.c.bf16 %v4094, %v4094
  %v4223 = vpack.c.bf16 %v4095, %v4095
  %v4224 = vpack.c.bf16 %v4096, %v4096
  %v4225 = vpack.c.bf16 %v4097, %v4097
  %v4226 = vpack.c.bf16 %v4098, %v4098
  %v4227 = vpack.c.bf16 %v4099, %v4099
  %v4228 = vpack.c.bf16 %v4100, %v4100
  %v4229 = vpack.c.bf16 %v4101, %v4101
  %v4230 = vpack.c.bf16 %v4102, %v4102
  %v4231 = vpack.c.bf16 %v4103, %v4103
  %vm4232 = vcmask 519168
  %4233 = vst.msk [vmem:[%s4] sm:$0xf] %vm4232, %v4200
  %4234 = vst.msk [vmem:[%s4 + $0x4] sm:$0xf] %vm4232, %v4201
  %4235 = vst.msk [vmem:[%s4 + $0x8] sm:$0xf] %vm4232, %v4202
  %4236 = vst.msk [vmem:[%s4 + $0xc] sm:$0xf] %vm4232, %v4203
  %4237 = vst.msk [vmem:[%s4 + $0x10] sm:$0xf] %vm4232, %v4204
  %4238 = vst.msk [vmem:[%s4 + $0x14] sm:$0xf] %vm4232, %v4205
  %4239 = vst.msk [vmem:[%s4 + $0x18] sm:$0xf] %vm4232, %v4206
  %4240 = vst.msk [vmem:[%s4 + $0x1c] sm:$0xf] %vm4232, %v4207
  %4241 = vst.msk [vmem:[%s4 + $0x20] sm:$0xf] %vm4232, %v4208
  %4242 = vst.msk [vmem:[%s4 + $0x24] sm:$0xf] %vm4232, %v4209
  %4243 = vst.msk [vmem:[%s4 + $0x28] sm:$0xf] %vm4232, %v4210
  %4244 = vst.msk [vmem:[%s4 + $0x2c] sm:$0xf] %vm4232, %v4211
  %4245 = vst.msk [vmem:[%s4 + $0x30] sm:$0xf] %vm4232, %v4212
  %4246 = vst.msk [vmem:[%s4 + $0x34] sm:$0xf] %vm4232, %v4213
  %4247 = vst.msk [vmem:[%s4 + $0x38] sm:$0xf] %vm4232, %v4214
  %4248 = vst.msk [vmem:[%s4 + $0x3c] sm:$0xf] %vm4232, %v4215
  %4249 = vst.msk [vmem:[%s4 + $0x40] sm:$0xf] %vm4232, %v4216
  %4250 = vst.msk [vmem:[%s4 + $0x44] sm:$0xf] %vm4232, %v4217
  %4251 = vst.msk [vmem:[%s4 + $0x48] sm:$0xf] %vm4232, %v4218
  %4252 = vst.msk [vmem:[%s4 + $0x4c] sm:$0xf] %vm4232, %v4219
  %4253 = vst.msk [vmem:[%s4 + $0x50] sm:$0xf] %vm4232, %v4220
  %4254 = vst.msk [vmem:[%s4 + $0x54] sm:$0xf] %vm4232, %v4221
  %4255 = vst.msk [vmem:[%s4 + $0x58] sm:$0xf] %vm4232, %v4222
  %4256 = vst.msk [vmem:[%s4 + $0x5c] sm:$0xf] %vm4232, %v4223
  %4257 = vst.msk [vmem:[%s4 + $0x60] sm:$0xf] %vm4232, %v4224
  %4258 = vst.msk [vmem:[%s4 + $0x64] sm:$0xf] %vm4232, %v4225
  %4259 = vst.msk [vmem:[%s4 + $0x68] sm:$0xf] %vm4232, %v4226
  %4260 = vst.msk [vmem:[%s4 + $0x6c] sm:$0xf] %vm4232, %v4227
  %4261 = vst.msk [vmem:[%s4 + $0x70] sm:$0xf] %vm4232, %v4228
  %4262 = vst.msk [vmem:[%s4 + $0x74] sm:$0xf] %vm4232, %v4229
  %4263 = vst.msk [vmem:[%s4 + $0x78] sm:$0xf] %vm4232, %v4230
  %4264 = vst.msk [vmem:[%s4 + $0x7c] sm:$0xf] %vm4232, %v4231
  %v4265 = vpack.c.bf16 %v4168, %v4168
  %v4266 = vpack.c.bf16 %v4169, %v4169
  %v4267 = vpack.c.bf16 %v4170, %v4170
  %v4268 = vpack.c.bf16 %v4171, %v4171
  %v4269 = vpack.c.bf16 %v4172, %v4172
  %v4270 = vpack.c.bf16 %v4173, %v4173
  %v4271 = vpack.c.bf16 %v4174, %v4174
  %v4272 = vpack.c.bf16 %v4175, %v4175
  %v4273 = vpack.c.bf16 %v4176, %v4176
  %v4274 = vpack.c.bf16 %v4177, %v4177
  %v4275 = vpack.c.bf16 %v4178, %v4178
  %v4276 = vpack.c.bf16 %v4179, %v4179
  %v4277 = vpack.c.bf16 %v4180, %v4180
  %v4278 = vpack.c.bf16 %v4181, %v4181
  %v4279 = vpack.c.bf16 %v4182, %v4182
  %v4280 = vpack.c.bf16 %v4183, %v4183
  %v4281 = vpack.c.bf16 %v4184, %v4184
  %v4282 = vpack.c.bf16 %v4185, %v4185
  %v4283 = vpack.c.bf16 %v4186, %v4186
  %v4284 = vpack.c.bf16 %v4187, %v4187
  %v4285 = vpack.c.bf16 %v4188, %v4188
  %v4286 = vpack.c.bf16 %v4189, %v4189
  %v4287 = vpack.c.bf16 %v4190, %v4190
  %v4288 = vpack.c.bf16 %v4191, %v4191
  %v4289 = vpack.c.bf16 %v4192, %v4192
  %v4290 = vpack.c.bf16 %v4193, %v4193
  %v4291 = vpack.c.bf16 %v4194, %v4194
  %v4292 = vpack.c.bf16 %v4195, %v4195
  %v4293 = vpack.c.bf16 %v4196, %v4196
  %v4294 = vpack.c.bf16 %v4197, %v4197
  %v4295 = vpack.c.bf16 %v4198, %v4198
  %v4296 = vpack.c.bf16 %v4199, %v4199
  %s4297 = scalar_lea.vmem %s4, 128
  %4298 = vst.msk [vmem:[%s4297] sm:$0xf] %vm4232, %v4265
  %4299 = vst.msk [vmem:[%s4297 + $0x4] sm:$0xf] %vm4232, %v4266
  %4300 = vst.msk [vmem:[%s4297 + $0x8] sm:$0xf] %vm4232, %v4267
  %4301 = vst.msk [vmem:[%s4297 + $0xc] sm:$0xf] %vm4232, %v4268
  %4302 = vst.msk [vmem:[%s4297 + $0x10] sm:$0xf] %vm4232, %v4269
  %4303 = vst.msk [vmem:[%s4297 + $0x14] sm:$0xf] %vm4232, %v4270
  %4304 = vst.msk [vmem:[%s4297 + $0x18] sm:$0xf] %vm4232, %v4271
  %4305 = vst.msk [vmem:[%s4297 + $0x1c] sm:$0xf] %vm4232, %v4272
  %4306 = vst.msk [vmem:[%s4297 + $0x20] sm:$0xf] %vm4232, %v4273
  %4307 = vst.msk [vmem:[%s4297 + $0x24] sm:$0xf] %vm4232, %v4274
  %4308 = vst.msk [vmem:[%s4297 + $0x28] sm:$0xf] %vm4232, %v4275
  %4309 = vst.msk [vmem:[%s4297 + $0x2c] sm:$0xf] %vm4232, %v4276
  %4310 = vst.msk [vmem:[%s4297 + $0x30] sm:$0xf] %vm4232, %v4277
  %4311 = vst.msk [vmem:[%s4297 + $0x34] sm:$0xf] %vm4232, %v4278
  %4312 = vst.msk [vmem:[%s4297 + $0x38] sm:$0xf] %vm4232, %v4279
  %4313 = vst.msk [vmem:[%s4297 + $0x3c] sm:$0xf] %vm4232, %v4280
  %4314 = vst.msk [vmem:[%s4297 + $0x40] sm:$0xf] %vm4232, %v4281
  %4315 = vst.msk [vmem:[%s4297 + $0x44] sm:$0xf] %vm4232, %v4282
  %4316 = vst.msk [vmem:[%s4297 + $0x48] sm:$0xf] %vm4232, %v4283
  %4317 = vst.msk [vmem:[%s4297 + $0x4c] sm:$0xf] %vm4232, %v4284
  %4318 = vst.msk [vmem:[%s4297 + $0x50] sm:$0xf] %vm4232, %v4285
  %4319 = vst.msk [vmem:[%s4297 + $0x54] sm:$0xf] %vm4232, %v4286
  %4320 = vst.msk [vmem:[%s4297 + $0x58] sm:$0xf] %vm4232, %v4287
  %4321 = vst.msk [vmem:[%s4297 + $0x5c] sm:$0xf] %vm4232, %v4288
  %4322 = vst.msk [vmem:[%s4297 + $0x60] sm:$0xf] %vm4232, %v4289
  %4323 = vst.msk [vmem:[%s4297 + $0x64] sm:$0xf] %vm4232, %v4290
  %4324 = vst.msk [vmem:[%s4297 + $0x68] sm:$0xf] %vm4232, %v4291
  %4325 = vst.msk [vmem:[%s4297 + $0x6c] sm:$0xf] %vm4232, %v4292
  %4326 = vst.msk [vmem:[%s4297 + $0x70] sm:$0xf] %vm4232, %v4293
  %4327 = vst.msk [vmem:[%s4297 + $0x74] sm:$0xf] %vm4232, %v4294
  %4328 = vst.msk [vmem:[%s4297 + $0x78] sm:$0xf] %vm4232, %v4295
  %4329 = vst.msk [vmem:[%s4297 + $0x7c] sm:$0xf] %vm4232, %v4296
  // Predicated region
  $region18: #{tpu_custom_call.1} parent=0 // pred_check
    _
  $region19: #{tpu_custom_call.1} parent=0 // pred_check_branch
    %4331 = sbr.rel (0) target = $region21
  $region20: #{tpu_custom_call.1} parent=0 // pred_region
    _
  $region21: #{tpu_custom_call.1} parent=0 // pred_fallthru
    _
  // Predicated region
  $region22: #{tpu_custom_call.1} parent=0 // pred_check
    _
  $region23: #{tpu_custom_call.1} parent=0 // pred_check_branch
    %4333 = sbr.rel (0) target = $region25
  $region24: #{tpu_custom_call.1} parent=0 // pred_region
    _
  $region25: #{tpu_custom_call.1} parent=0 // pred_fallthru
    _

</llo_original>
